<compile_context>
chip_gen: v7x
topology: tpu7x:2x2x1
jax: 0.10.0
libtpu: 0.0.40
codegen_flags: <defaults>
</compile_context>

<pallas_src>
import jax
import jax.numpy as jnp
from jax.experimental import pallas as pl
from jax.experimental.pallas import tpu as pltpu

EPS = 1e-5
CP = 128          # channel padding -> TPU lane width


def _round_up(x, m):
    return (x + m - 1) // m * m


# ------------------------------ Pallas kernels -------------------------------

def _matmul_stats_kernel(p_ref, w_ref, y_ref, sum_ref, sq_ref):
    """One (TM, K) @ (K, C) MXU matmul tile + per-tile column sum / sumsq."""
    acc = jnp.dot(p_ref[...], w_ref[...], preferred_element_type=jnp.float32)
    y_ref[...] = acc.astype(y_ref.dtype)
    sum_ref[...] = jnp.sum(acc, axis=0, keepdims=True)[None]          # (1,1,C)
    sq_ref[...] = jnp.sum(acc * acc, axis=0, keepdims=True)[None]     # (1,1,C)


def _affine_relu_kernel(x_ref, s_ref, b_ref, o_ref):
    """o = relu(x * s + b)   (per-channel affine == BatchNorm apply)."""
    o_ref[...] = jnp.maximum(x_ref[...] * s_ref[...] + b_ref[...],
                             0.0).astype(o_ref.dtype)


def _residual_fuse_kernel(y_ref, r_ref, sy_ref, by_ref, sr_ref, br_ref, o_ref):
    """o = relu( bn2(conv2) + bn_s(shortcut) ), fused per tile."""
    main = y_ref[...] * sy_ref[...] + by_ref[...]
    res = r_ref[...] * sr_ref[...] + br_ref[...]
    o_ref[...] = jnp.maximum(main + res, 0.0).astype(o_ref.dtype)


# ----------------------------- pallas_call wrappers ---------------------------

def _matmul_stats(patches, weights, tm):
    mp, k = patches.shape
    c = weights.shape[1]
    g = mp // tm
    y, psum, psq = pl.pallas_call(
        _matmul_stats_kernel,
        grid=(g,),
        in_specs=[pl.BlockSpec((tm, k), lambda i: (i, 0)),
                  pl.BlockSpec((k, c), lambda i: (0, 0))],
        out_specs=(pl.BlockSpec((tm, c), lambda i: (i, 0)),
                   pl.BlockSpec((1, 1, c), lambda i: (i, 0, 0)),
                   pl.BlockSpec((1, 1, c), lambda i: (i, 0, 0))),
        out_shape=(jax.ShapeDtypeStruct((mp, c), jnp.float32),
                   jax.ShapeDtypeStruct((g, 1, c), jnp.float32),
                   jax.ShapeDtypeStruct((g, 1, c), jnp.float32)),
        compiler_params=pltpu.CompilerParams(
            dimension_semantics=("parallel",)),
    )(patches, weights)
    return y, jnp.sum(psum, axis=(0, 1)), jnp.sum(psq, axis=(0, 1))


def _affine_relu(x, scale, shift, tm, col_block=0):
    mp = x.shape[0]
    g = mp // tm
    return pl.pallas_call(
        _affine_relu_kernel,
        grid=(g,),
        in_specs=[pl.BlockSpec((tm, CP), lambda i: (i, col_block)),
                  pl.BlockSpec((1, CP), lambda i: (0, 0)),
                  pl.BlockSpec((1, CP), lambda i: (0, 0))],
        out_specs=pl.BlockSpec((tm, CP), lambda i: (i, 0)),
        out_shape=jax.ShapeDtypeStruct((mp, CP), jnp.float32),
        compiler_params=pltpu.CompilerParams(
            dimension_semantics=("parallel",)),
    )(x, scale.reshape(1, CP), shift.reshape(1, CP))


def _residual_fuse(y2, scale2, shift2, resid, scale_s, shift_s, tm, resid_col):
    mp = y2.shape[0]
    g = mp // tm
    return pl.pallas_call(
        _residual_fuse_kernel,
        grid=(g,),
        in_specs=[pl.BlockSpec((tm, CP), lambda i: (i, 0)),
                  pl.BlockSpec((tm, CP), lambda i: (i, resid_col)),
                  pl.BlockSpec((1, CP), lambda i: (0, 0)),
                  pl.BlockSpec((1, CP), lambda i: (0, 0)),
                  pl.BlockSpec((1, CP), lambda i: (0, 0)),
                  pl.BlockSpec((1, CP), lambda i: (0, 0))],
        out_specs=pl.BlockSpec((tm, CP), lambda i: (i, 0)),
        out_shape=jax.ShapeDtypeStruct((mp, CP), jnp.float32),
        compiler_params=pltpu.CompilerParams(
            dimension_semantics=("parallel",)),
    )(y2, resid, scale2.reshape(1, CP), shift2.reshape(1, CP),
      scale_s.reshape(1, CP), shift_s.reshape(1, CP))


# ------------------------------ layout helpers --------------------------------

def _im2col_3x3x3(x):
    """(N,D,H,W,C) -> (N*D*H*W, 27*C); zero pad=1; tap order (kd, kh, kw)."""
    n, d, h, w, c = x.shape
    xp = jnp.pad(x, ((0, 0), (1, 1), (1, 1), (1, 1), (0, 0)))
    taps = [xp[:, kd:kd + d, kh:kh + h, kw:kw + w, :]
            for kd in range(3) for kh in range(3) for kw in range(3)]
    return jnp.concatenate(taps, axis=-1).reshape(n * d * h * w, 27 * c)


def _conv_weight_to_matrix(w_oidhw):
    """(Cout, Cin, 3,3,3) -> (27*Cin, Cout); row order = (kd, kh, kw, cin)."""
    cout, cin = w_oidhw.shape[:2]
    return jnp.transpose(w_oidhw, (2, 3, 4, 1, 0)).reshape(27 * cin, cout)


def _bn_scale_shift(col_sum, col_sq, count, gamma, beta):
    mean = col_sum / count
    var = jnp.maximum(col_sq / count - mean * mean, 0.0)
    scale = gamma * jax.lax.rsqrt(var + EPS)
    return scale, beta - mean * scale


def _pad_c(v, cout):
    return jnp.pad(v.astype(jnp.float32), (0, CP - cout))


# ------------------------------- forward pass ---------------------------------

def resblock3d_forward(x_ncdhw, params, tm=256):
    """ResBlock3d forward (stride=1, projection shortcut). x: [N,Cin,D,H,W]."""
    x_ncdhw = x_ncdhw.astype(jnp.float32)
    n, cin, d, h, w = x_ncdhw.shape
    cout = params["w1"].shape[0]
    assert cin <= CP and cout <= CP

    m = n * d * h * w
    tm = min(tm, _round_up(m, 8))
    mp = _round_up(m, tm)

    x = jnp.transpose(x_ncdhw, (0, 2, 3, 4, 1))                 # NDHWC

    # ---- pass 1: conv1 (3x3x3) + 1x1x1 projection shortcut in ONE matmul ----
    k1 = 27 * cin
    k1p = _round_up(k1, 128)
    patches1 = jnp.pad(_im2col_3x3x3(x), ((0, mp - m), (0, k1p - k1)))

    w1 = jnp.pad(_conv_weight_to_matrix(params["w1"]),
                 ((0, k1p - k1), (0, CP - cout)))
    # The center tap (kd=kh=kw=1 -> tap index 13) of the im2col patch is x
    # itself, so the 1x1x1 shortcut is the same patch matrix times a weight
    # that is zero outside rows [13*cin, 14*cin).
    ws = params["ws"].reshape(cout, cin).T                      # (cin, cout)
    w_sc = jnp.zeros((k1p, CP), jnp.float32).at[
        13 * cin:13 * cin + cin, :cout].set(ws)
    w_comb = jnp.concatenate([w1, w_sc], axis=1)                # (k1p, 2*CP)

    # conv biases dropped on purpose: cancelled exactly by batch-stat BN.
    y1s_raw, sum1s, sq1s = _matmul_stats(patches1, w_comb, tm)

    scale1, shift1 = _bn_scale_shift(sum1s[:CP], sq1s[:CP], m,
                                     _pad_c(params["g1"], cout),
                                     _pad_c(params["beta1"], cout))
    scale_s, shift_s = _bn_scale_shift(sum1s[CP:], sq1s[CP:], m,
                                       _pad_c(params["gs"], cout),
                                       _pad_c(params["betas"], cout))

    # relu(bn1(conv1(x))) -- reads columns [0:128] of the fused matmul output.
    y1 = _affine_relu(y1s_raw, scale1, shift1, tm, col_block=0)

    # ---- pass 2: conv2 (3x3x3) ----
    y1_vol = y1[:m, :cout].reshape(n, d, h, w, cout)
    k2 = 27 * cout
    k2p = _round_up(k2, 128)
    patches2 = jnp.pad(_im2col_3x3x3(y1_vol), ((0, mp - m), (0, k2p - k2)))
    w2 = jnp.pad(_conv_weight_to_matrix(params["w2"]),
                 ((0, k2p - k2), (0, CP - cout)))

    y2_raw, sum2, sq2 = _matmul_stats(patches2, w2, tm)
    scale2, shift2 = _bn_scale_shift(sum2, sq2, m,
                                     _pad_c(params["g2"], cout),
                                     _pad_c(params["beta2"], cout))

    # ---- final: relu( bn2(conv2) + bn_s(shortcut) ) ----
    out_flat = _residual_fuse(y2_raw, scale2, shift2,
                              y1s_raw, scale_s, shift_s, tm, resid_col=1)

    out = out_flat[:m, :cout].reshape(n, d, h, w, cout)
    return jnp.transpose(out, (0, 4, 1, 2, 3))                  # back to NCDHW


# ---------------- pure-JAX reference (NCDHW, PyTorch weight layout) -----------
def _ref_forward(x, w1, b1, g1, be1, w2, b2, g2, be2, ws, bs, gs, bes):
    def conv(x, w, b):
        y = jax.lax.conv_general_dilated(
            x, w, window_strides=(1, 1, 1), padding="SAME",
            dimension_numbers=("NCDHW", "OIDHW", "NCDHW"))
        return y + b[None, :, None, None, None]

    def bn(x, g, be):
        mean = x.mean(axis=(0, 2, 3, 4), keepdims=True)
        var = ((x - mean) ** 2).mean(axis=(0, 2, 3, 4), keepdims=True)
        return ((x - mean) * jax.lax.rsqrt(var + EPS)
                * g[None, :, None, None, None] + be[None, :, None, None, None])

    residual = bn(conv(x, ws, bs), gs, bes)
    out = jnp.maximum(bn(conv(x, w1, b1), g1, be1), 0.0)
    out = bn(conv(out, w2, b2), g2, be2)
    return jnp.maximum(out + residual, 0.0)


if __name__ == "__main__":
    N, Cin, Cout, D, H, W = 2, 4, 8, 8, 8, 8
    key = jax.random.PRNGKey(0)
    ks = jax.random.split(key, 4)

    x = jax.random.normal(ks[0], (N, Cin, D, H, W), jnp.float32)

    w1 = 0.1 * jax.random.normal(ks[1], (Cout, Cin, 3, 3, 3), jnp.float32)
    w2 = 0.1 * jax.random.normal(ks[2], (Cout, Cout, 3, 3, 3), jnp.float32)
    ws = 0.1 * jax.random.normal(ks[3], (Cout, Cin, 1, 1, 1), jnp.float32)
    b1 = 0.01 * jnp.arange(Cout, dtype=jnp.float32)
    b2 = -0.01 * jnp.arange(Cout, dtype=jnp.float32)
    bs = 0.02 * jnp.arange(Cout, dtype=jnp.float32)
    g1 = 1.0 + 0.05 * jnp.arange(Cout, dtype=jnp.float32)
    g2 = 1.0 - 0.03 * jnp.arange(Cout, dtype=jnp.float32)
    gs = 1.0 + 0.02 * jnp.arange(Cout, dtype=jnp.float32)
    be1 = 0.03 * jnp.arange(Cout, dtype=jnp.float32)
    be2 = 0.01 * jnp.arange(Cout, dtype=jnp.float32)
    bes = -0.02 * jnp.arange(Cout, dtype=jnp.float32)

    # conv biases (b1/b2/bs) are part of the module's state but are provably
    # cancelled by batch-stat BatchNorm, so the Pallas path never needs them.
    params = {"w1": w1, "g1": g1, "beta1": be1,
              "w2": w2, "g2": g2, "beta2": be2,
              "ws": ws, "gs": gs, "betas": bes}

    fwd = jax.jit(resblock3d_forward)
    out = jax.block_until_ready(fwd(x, params))
    assert out.shape == (N, Cout, D, H, W)

    ref = _ref_forward(x, w1, b1, g1, be1, w2, b2, g2, be2, ws, bs, gs, bes)
    max_err = float(jnp.max(jnp.abs(out - ref)))
    assert max_err < 5e-3, f"mismatch vs reference: {max_err}"

    print("KERNEL_OK")
</pallas_src>

<mosaic_0001>
module attributes {stable_mosaic.version = 11 : i64} {
  func.func @_matmul_stats_kernel(%arg0: i32, %arg1: memref<256x128xf32, #tpu.memory_space<vmem>>, %arg2: memref<128x256xf32, #tpu.memory_space<vmem>>, %arg3: memref<256x256xf32, #tpu.memory_space<vmem>>, %arg4: memref<1x1x256xf32, #tpu.memory_space<vmem>>, %arg5: memref<1x1x256xf32, #tpu.memory_space<vmem>>) attributes {dimension_semantics = [#tpu.dimension_semantics<parallel>], iteration_bounds = array<i64: 4>, scalar_prefetch = 0 : i64, scratch_operands = 0 : i64, tpu.core_type = #tpu.core_type<tc>, window_params = [{transform_indices = @transform_0, window_bounds = array<i64: 256, 128>}, {pipeline_mode = #tpu.pipeline_mode<synchronous>, transform_indices = @transform_1, window_bounds = array<i64: 128, 256>}, {transform_indices = @transform_2, window_bounds = array<i64: 256, 256>}, {transform_indices = @transform_3, window_bounds = array<i64: 1, 1, 256>}, {transform_indices = @transform_4, window_bounds = array<i64: 1, 1, 256>}]} {
    %c0 = arith.constant 0 : index
    %c0_0 = arith.constant 0 : index
    %0 = vector.load %arg1[%c0, %c0_0] : memref<256x128xf32, #tpu.memory_space<vmem>>, vector<256x128xf32>
    %c0_1 = arith.constant 0 : index
    %c0_2 = arith.constant 0 : index
    %1 = vector.load %arg2[%c0_1, %c0_2] : memref<128x256xf32, #tpu.memory_space<vmem>>, vector<128x256xf32>
    %cst = arith.constant dense<0.000000e+00> : vector<256x256xf32>
    %2 = tpu.matmul %0, %1, %cst {dimension_numbers = #tpu.dot_dimension_numbers<[1], [0], [0], [1], [0, 0, 1, 1], [], []>} : vector<256x128xf32>, vector<128x256xf32>, vector<256x256xf32> -> vector<256x256xf32>
    %c0_3 = arith.constant 0 : index
    %c0_4 = arith.constant 0 : index
    %3 = vector.load %arg3[%c0_3, %c0_4] : memref<256x256xf32, #tpu.memory_space<vmem>>, vector<256x256xf32>
    tpu.vector_store %arg3[%c0_3, %c0_4], %2 {strides = array<i32>} : memref<256x256xf32, #tpu.memory_space<vmem>>, vector<256x256xf32>,
    %cst_5 = arith.constant dense<0.000000e+00> : vector<256xf32>
    %4 = vector.multi_reduction <add>, %2, %cst_5 [0] : vector<256x256xf32> to vector<256xf32>
    %5 = vector.shape_cast %4 : vector<256xf32> to vector<1x256xf32>
    %6 = vector.shape_cast %5 : vector<1x256xf32> to vector<1x1x256xf32>
    %c0_6 = arith.constant 0 : index
    %c0_7 = arith.constant 0 : index
    %c0_8 = arith.constant 0 : index
    %7 = vector.load %arg4[%c0_6, %c0_7, %c0_8] : memref<1x1x256xf32, #tpu.memory_space<vmem>>, vector<1x1x256xf32>
    tpu.vector_store %arg4[%c0_6, %c0_7, %c0_8], %6 {strides = array<i32>} : memref<1x1x256xf32, #tpu.memory_space<vmem>>, vector<1x1x256xf32>,
    %8 = arith.mulf %2, %2 : vector<256x256xf32>
    %cst_9 = arith.constant dense<0.000000e+00> : vector<256xf32>
    %9 = vector.multi_reduction <add>, %8, %cst_9 [0] : vector<256x256xf32> to vector<256xf32>
    %10 = vector.shape_cast %9 : vector<256xf32> to vector<1x256xf32>
    %11 = vector.shape_cast %10 : vector<1x256xf32> to vector<1x1x256xf32>
    %c0_10 = arith.constant 0 : index
    %c0_11 = arith.constant 0 : index
    %c0_12 = arith.constant 0 : index
    %12 = vector.load %arg5[%c0_10, %c0_11, %c0_12] : memref<1x1x256xf32, #tpu.memory_space<vmem>>, vector<1x1x256xf32>
    tpu.vector_store %arg5[%c0_10, %c0_11, %c0_12], %11 {strides = array<i32>} : memref<1x1x256xf32, #tpu.memory_space<vmem>>, vector<1x1x256xf32>,
    return
  }
  func.func @transform_0(%arg0: i32) -> (i32, i32) {
    %c0_i32 = arith.constant 0 : i32
    %c0_i32_0 = arith.constant 0 : i32
    return %arg0, %c0_i32 : i32, i32
  }
  func.func @transform_1(%arg0: i32) -> (i32, i32) {
    %c0_i32 = arith.constant 0 : i32
    %c0_i32_0 = arith.constant 0 : i32
    %c0_i32_1 = arith.constant 0 : i32
    return %c0_i32, %c0_i32_0 : i32, i32
  }
  func.func @transform_2(%arg0: i32) -> (i32, i32) {
    %c0_i32 = arith.constant 0 : i32
    %c0_i32_0 = arith.constant 0 : i32
    return %arg0, %c0_i32 : i32, i32
  }
  func.func @transform_3(%arg0: i32) -> (i32, i32, i32) {
    %c0_i32 = arith.constant 0 : i32
    %c0_i32_0 = arith.constant 0 : i32
    %c0_i32_1 = arith.constant 0 : i32
    return %arg0, %c0_i32, %c0_i32_0 : i32, i32, i32
  }
  func.func @transform_4(%arg0: i32) -> (i32, i32, i32) {
    %c0_i32 = arith.constant 0 : i32
    %c0_i32_0 = arith.constant 0 : i32
    %c0_i32_1 = arith.constant 0 : i32
    return %arg0, %c0_i32, %c0_i32_0 : i32, i32, i32
  }
}

module attributes {stable_mosaic.version = 11 : i64} {
  func.func @_affine_relu_kernel(%arg0: i32, %arg1: memref<256x128xf32, #tpu.memory_space<vmem>>, %arg2: memref<1x128xf32, #tpu.memory_space<vmem>>, %arg3: memref<1x128xf32, #tpu.memory_space<vmem>>, %arg4: memref<256x128xf32, #tpu.memory_space<vmem>>) attributes {dimension_semantics = [#tpu.dimension_semantics<parallel>], iteration_bounds = array<i64: 4>, scalar_prefetch = 0 : i64, scratch_operands = 0 : i64, tpu.core_type = #tpu.core_type<tc>, window_params = [{transform_indices = @transform_0, window_bounds = array<i64: 256, 128>}, {pipeline_mode = #tpu.pipeline_mode<synchronous>, transform_indices = @transform_1, window_bounds = array<i64: 1, 128>}, {pipeline_mode = #tpu.pipeline_mode<synchronous>, transform_indices = @transform_2, window_bounds = array<i64: 1, 128>}, {transform_indices = @transform_3, window_bounds = array<i64: 256, 128>}]} {
    %c0 = arith.constant 0 : index
    %c0_0 = arith.constant 0 : index
    %0 = vector.load %arg1[%c0, %c0_0] : memref<256x128xf32, #tpu.memory_space<vmem>>, vector<256x128xf32>
    %c0_1 = arith.constant 0 : index
    %c0_2 = arith.constant 0 : index
    %1 = vector.load %arg2[%c0_1, %c0_2] : memref<1x128xf32, #tpu.memory_space<vmem>>, vector<1x128xf32>
    %2 = vector.broadcast %1 : vector<1x128xf32> to vector<256x128xf32>
    %3 = arith.mulf %0, %2 : vector<256x128xf32>
    %c0_3 = arith.constant 0 : index
    %c0_4 = arith.constant 0 : index
    %4 = vector.load %arg3[%c0_3, %c0_4] : memref<1x128xf32, #tpu.memory_space<vmem>>, vector<1x128xf32>
    %5 = vector.broadcast %4 : vector<1x128xf32> to vector<256x128xf32>
    %6 = arith.addf %3, %5 : vector<256x128xf32>
    %cst = arith.constant 0.000000e+00 : f32
    %7 = vector.broadcast %cst : f32 to vector<256x128xf32>
    %8 = arith.maximumf %6, %7 : vector<256x128xf32>
    %c0_5 = arith.constant 0 : index
    %c0_6 = arith.constant 0 : index
    %9 = vector.load %arg4[%c0_5, %c0_6] : memref<256x128xf32, #tpu.memory_space<vmem>>, vector<256x128xf32>
    tpu.vector_store %arg4[%c0_5, %c0_6], %8 {strides = array<i32>} : memref<256x128xf32, #tpu.memory_space<vmem>>, vector<256x128xf32>,
    return
  }
  func.func @transform_0(%arg0: i32) -> (i32, i32) {
    %c0_i32 = arith.constant 0 : i32
    %c0_i32_0 = arith.constant 0 : i32
    return %arg0, %c0_i32 : i32, i32
  }
  func.func @transform_1(%arg0: i32) -> (i32, i32) {
    %c0_i32 = arith.constant 0 : i32
    %c0_i32_0 = arith.constant 0 : i32
    %c0_i32_1 = arith.constant 0 : i32
    return %c0_i32, %c0_i32_0 : i32, i32
  }
  func.func @transform_2(%arg0: i32) -> (i32, i32) {
    %c0_i32 = arith.constant 0 : i32
    %c0_i32_0 = arith.constant 0 : i32
    %c0_i32_1 = arith.constant 0 : i32
    return %c0_i32, %c0_i32_0 : i32, i32
  }
  func.func @transform_3(%arg0: i32) -> (i32, i32) {
    %c0_i32 = arith.constant 0 : i32
    %c0_i32_0 = arith.constant 0 : i32
    return %arg0, %c0_i32 : i32, i32
  }
}

module attributes {stable_mosaic.version = 11 : i64} {
  func.func @_matmul_stats_kernel(%arg0: i32, %arg1: memref<256x256xf32, #tpu.memory_space<vmem>>, %arg2: memref<256x128xf32, #tpu.memory_space<vmem>>, %arg3: memref<256x128xf32, #tpu.memory_space<vmem>>, %arg4: memref<1x1x128xf32, #tpu.memory_space<vmem>>, %arg5: memref<1x1x128xf32, #tpu.memory_space<vmem>>) attributes {dimension_semantics = [#tpu.dimension_semantics<parallel>], iteration_bounds = array<i64: 4>, scalar_prefetch = 0 : i64, scratch_operands = 0 : i64, tpu.core_type = #tpu.core_type<tc>, window_params = [{transform_indices = @transform_0, window_bounds = array<i64: 256, 256>}, {pipeline_mode = #tpu.pipeline_mode<synchronous>, transform_indices = @transform_1, window_bounds = array<i64: 256, 128>}, {transform_indices = @transform_2, window_bounds = array<i64: 256, 128>}, {transform_indices = @transform_3, window_bounds = array<i64: 1, 1, 128>}, {transform_indices = @transform_4, window_bounds = array<i64: 1, 1, 128>}]} {
    %c0 = arith.constant 0 : index
    %c0_0 = arith.constant 0 : index
    %0 = vector.load %arg1[%c0, %c0_0] : memref<256x256xf32, #tpu.memory_space<vmem>>, vector<256x256xf32>
    %c0_1 = arith.constant 0 : index
    %c0_2 = arith.constant 0 : index
    %1 = vector.load %arg2[%c0_1, %c0_2] : memref<256x128xf32, #tpu.memory_space<vmem>>, vector<256x128xf32>
    %cst = arith.constant dense<0.000000e+00> : vector<256x128xf32>
    %2 = tpu.matmul %0, %1, %cst {dimension_numbers = #tpu.dot_dimension_numbers<[1], [0], [0], [1], [0, 0, 1, 1], [], []>} : vector<256x256xf32>, vector<256x128xf32>, vector<256x128xf32> -> vector<256x128xf32>
    %c0_3 = arith.constant 0 : index
    %c0_4 = arith.constant 0 : index
    %3 = vector.load %arg3[%c0_3, %c0_4] : memref<256x128xf32, #tpu.memory_space<vmem>>, vector<256x128xf32>
    tpu.vector_store %arg3[%c0_3, %c0_4], %2 {strides = array<i32>} : memref<256x128xf32, #tpu.memory_space<vmem>>, vector<256x128xf32>,
    %cst_5 = arith.constant dense<0.000000e+00> : vector<128xf32>
    %4 = vector.multi_reduction <add>, %2, %cst_5 [0] : vector<256x128xf32> to vector<128xf32>
    %5 = vector.shape_cast %4 : vector<128xf32> to vector<1x128xf32>
    %6 = vector.shape_cast %5 : vector<1x128xf32> to vector<1x1x128xf32>
    %c0_6 = arith.constant 0 : index
    %c0_7 = arith.constant 0 : index
    %c0_8 = arith.constant 0 : index
    %7 = vector.load %arg4[%c0_6, %c0_7, %c0_8] : memref<1x1x128xf32, #tpu.memory_space<vmem>>, vector<1x1x128xf32>
    tpu.vector_store %arg4[%c0_6, %c0_7, %c0_8], %6 {strides = array<i32>} : memref<1x1x128xf32, #tpu.memory_space<vmem>>, vector<1x1x128xf32>,
    %8 = arith.mulf %2, %2 : vector<256x128xf32>
    %cst_9 = arith.constant dense<0.000000e+00> : vector<128xf32>
    %9 = vector.multi_reduction <add>, %8, %cst_9 [0] : vector<256x128xf32> to vector<128xf32>
    %10 = vector.shape_cast %9 : vector<128xf32> to vector<1x128xf32>
    %11 = vector.shape_cast %10 : vector<1x128xf32> to vector<1x1x128xf32>
    %c0_10 = arith.constant 0 : index
    %c0_11 = arith.constant 0 : index
    %c0_12 = arith.constant 0 : index
    %12 = vector.load %arg5[%c0_10, %c0_11, %c0_12] : memref<1x1x128xf32, #tpu.memory_space<vmem>>, vector<1x1x128xf32>
    tpu.vector_store %arg5[%c0_10, %c0_11, %c0_12], %11 {strides = array<i32>} : memref<1x1x128xf32, #tpu.memory_space<vmem>>, vector<1x1x128xf32>,
    return
  }
  func.func @transform_0(%arg0: i32) -> (i32, i32) {
    %c0_i32 = arith.constant 0 : i32
    %c0_i32_0 = arith.constant 0 : i32
    return %arg0, %c0_i32 : i32, i32
  }
  func.func @transform_1(%arg0: i32) -> (i32, i32) {
    %c0_i32 = arith.constant 0 : i32
    %c0_i32_0 = arith.constant 0 : i32
    %c0_i32_1 = arith.constant 0 : i32
    return %c0_i32, %c0_i32_0 : i32, i32
  }
  func.func @transform_2(%arg0: i32) -> (i32, i32) {
    %c0_i32 = arith.constant 0 : i32
    %c0_i32_0 = arith.constant 0 : i32
    return %arg0, %c0_i32 : i32, i32
  }
  func.func @transform_3(%arg0: i32) -> (i32, i32, i32) {
    %c0_i32 = arith.constant 0 : i32
    %c0_i32_0 = arith.constant 0 : i32
    %c0_i32_1 = arith.constant 0 : i32
    return %arg0, %c0_i32, %c0_i32_0 : i32, i32, i32
  }
  func.func @transform_4(%arg0: i32) -> (i32, i32, i32) {
    %c0_i32 = arith.constant 0 : i32
    %c0_i32_0 = arith.constant 0 : i32
    %c0_i32_1 = arith.constant 0 : i32
    return %arg0, %c0_i32, %c0_i32_0 : i32, i32, i32
  }
}

module attributes {stable_mosaic.version = 11 : i64} {
  func.func @_residual_fuse_kernel(%arg0: i32, %arg1: memref<256x128xf32, #tpu.memory_space<vmem>>, %arg2: memref<256x128xf32, #tpu.memory_space<vmem>>, %arg3: memref<1x128xf32, #tpu.memory_space<vmem>>, %arg4: memref<1x128xf32, #tpu.memory_space<vmem>>, %arg5: memref<1x128xf32, #tpu.memory_space<vmem>>, %arg6: memref<1x128xf32, #tpu.memory_space<vmem>>, %arg7: memref<256x128xf32, #tpu.memory_space<vmem>>) attributes {dimension_semantics = [#tpu.dimension_semantics<parallel>], iteration_bounds = array<i64: 4>, scalar_prefetch = 0 : i64, scratch_operands = 0 : i64, tpu.core_type = #tpu.core_type<tc>, window_params = [{transform_indices = @transform_0, window_bounds = array<i64: 256, 128>}, {transform_indices = @transform_1, window_bounds = array<i64: 256, 128>}, {pipeline_mode = #tpu.pipeline_mode<synchronous>, transform_indices = @transform_2, window_bounds = array<i64: 1, 128>}, {pipeline_mode = #tpu.pipeline_mode<synchronous>, transform_indices = @transform_3, window_bounds = array<i64: 1, 128>}, {pipeline_mode = #tpu.pipeline_mode<synchronous>, transform_indices = @transform_4, window_bounds = array<i64: 1, 128>}, {pipeline_mode = #tpu.pipeline_mode<synchronous>, transform_indices = @transform_5, window_bounds = array<i64: 1, 128>}, {transform_indices = @transform_6, window_bounds = array<i64: 256, 128>}]} {
    %c0 = arith.constant 0 : index
    %c0_0 = arith.constant 0 : index
    %0 = vector.load %arg1[%c0, %c0_0] : memref<256x128xf32, #tpu.memory_space<vmem>>, vector<256x128xf32>
    %c0_1 = arith.constant 0 : index
    %c0_2 = arith.constant 0 : index
    %1 = vector.load %arg3[%c0_1, %c0_2] : memref<1x128xf32, #tpu.memory_space<vmem>>, vector<1x128xf32>
    %2 = vector.broadcast %1 : vector<1x128xf32> to vector<256x128xf32>
    %3 = arith.mulf %0, %2 : vector<256x128xf32>
    %c0_3 = arith.constant 0 : index
    %c0_4 = arith.constant 0 : index
    %4 = vector.load %arg4[%c0_3, %c0_4] : memref<1x128xf32, #tpu.memory_space<vmem>>, vector<1x128xf32>
    %5 = vector.broadcast %4 : vector<1x128xf32> to vector<256x128xf32>
    %6 = arith.addf %3, %5 : vector<256x128xf32>
    %c0_5 = arith.constant 0 : index
    %c0_6 = arith.constant 0 : index
    %7 = vector.load %arg2[%c0_5, %c0_6] : memref<256x128xf32, #tpu.memory_space<vmem>>, vector<256x128xf32>
    %c0_7 = arith.constant 0 : index
    %c0_8 = arith.constant 0 : index
    %8 = vector.load %arg5[%c0_7, %c0_8] : memref<1x128xf32, #tpu.memory_space<vmem>>, vector<1x128xf32>
    %9 = vector.broadcast %8 : vector<1x128xf32> to vector<256x128xf32>
    %10 = arith.mulf %7, %9 : vector<256x128xf32>
    %c0_9 = arith.constant 0 : index
    %c0_10 = arith.constant 0 : index
    %11 = vector.load %arg6[%c0_9, %c0_10] : memref<1x128xf32, #tpu.memory_space<vmem>>, vector<1x128xf32>
    %12 = vector.broadcast %11 : vector<1x128xf32> to vector<256x128xf32>
    %13 = arith.addf %10, %12 : vector<256x128xf32>
    %14 = arith.addf %6, %13 : vector<256x128xf32>
    %cst = arith.constant 0.000000e+00 : f32
    %15 = vector.broadcast %cst : f32 to vector<256x128xf32>
    %16 = arith.maximumf %14, %15 : vector<256x128xf32>
    %c0_11 = arith.constant 0 : index
    %c0_12 = arith.constant 0 : index
    %17 = vector.load %arg7[%c0_11, %c0_12] : memref<256x128xf32, #tpu.memory_space<vmem>>, vector<256x128xf32>
    tpu.vector_store %arg7[%c0_11, %c0_12], %16 {strides = array<i32>} : memref<256x128xf32, #tpu.memory_space<vmem>>, vector<256x128xf32>,
    return
  }
  func.func @transform_0(%arg0: i32) -> (i32, i32) {
    %c0_i32 = arith.constant 0 : i32
    %c0_i32_0 = arith.constant 0 : i32
    return %arg0, %c0_i32 : i32, i32
  }
  func.func @transform_1(%arg0: i32) -> (i32, i32) {
    %c1_i32 = arith.constant 1 : i32
    %c0_i32 = arith.constant 0 : i32
    return %arg0, %c1_i32 : i32, i32
  }
  func.func @transform_2(%arg0: i32) -> (i32, i32) {
    %c0_i32 = arith.constant 0 : i32
    %c0_i32_0 = arith.constant 0 : i32
    %c0_i32_1 = arith.constant 0 : i32
    return %c0_i32, %c0_i32_0 : i32, i32
  }
  func.func @transform_3(%arg0: i32) -> (i32, i32) {
    %c0_i32 = arith.constant 0 : i32
    %c0_i32_0 = arith.constant 0 : i32
    %c0_i32_1 = arith.constant 0 : i32
    return %c0_i32, %c0_i32_0 : i32, i32
  }
  func.func @transform_4(%arg0: i32) -> (i32, i32) {
    %c0_i32 = arith.constant 0 : i32
    %c0_i32_0 = arith.constant 0 : i32
    %c0_i32_1 = arith.constant 0 : i32
    return %c0_i32, %c0_i32_0 : i32, i32
  }
  func.func @transform_5(%arg0: i32) -> (i32, i32) {
    %c0_i32 = arith.constant 0 : i32
    %c0_i32_0 = arith.constant 0 : i32
    %c0_i32_1 = arith.constant 0 : i32
    return %c0_i32, %c0_i32_0 : i32, i32
  }
  func.func @transform_6(%arg0: i32) -> (i32, i32) {
    %c0_i32 = arith.constant 0 : i32
    %c0_i32_0 = arith.constant 0 : i32
    return %arg0, %c0_i32 : i32, i32
  }
}

</mosaic_0001>

<llo_original>
// kernel: resblock3d_forward.5
$region0: #{resblock3d_forward.5}
  #allocation0 [shape = 'u32[]', space=smem, size = 0x4, offset = 0x4, fixed_abs, tag = 'smem constant byte address 0x4 - core index']
  #allocation1 [shape = 'u32[144,128]{1,0:T(1,128)}', space=vmem, size = 0x12000, scoped, tag = 'internal scratch']
  %s0 = inlined_call_operand.vmem [shape: f32[1024,256], index: 0, kind: input, shape index: {}]
  %s1 = inlined_call_operand.vmem [shape: f32[1,128], index: 1, kind: input, shape index: {}]
  %s2 = inlined_call_operand.vmem [shape: f32[1,128], index: 2, kind: input, shape index: {}]
  %s3 = inlined_call_operand.vmem [shape: f32[1024,128], index: 3, kind: output, shape index: {}]
  %s4 = sld [smem:[#allocation0]]
  $region83: #{resblock3d_forward.5} parent=0
    _
  %s6 = ssub.s32 1, %s4
  %s7 = scalar_select 0, %s6, %s4
  $region1: #{resblock3d_forward.5} parent=0
    #allocation2 [shape = 'u8[262144]{0}', space=vmem, size = 0x40000, scoped, tag = 'input window, operand 0']
    loop: start=0, step=1, limit=6
    $region2: #{resblock3d_forward.5} parent=1 // loop_pre_header
      _
    $region3: #{resblock3d_forward.5} parent=1 // loop_header
      %s9 = sphi 0, %s13
      %p10 = scmp.ge.s32.totalorder %s9, 6
      %s19 = sphi 0, %s21
      %s22 = sphi 0, %s19
      %s23 = sphi 0, %s22
      %s39 = sphi 0, %s23
      %s43 = sphi 0, %s43
      %s45 = sphi 0, %s43
      %s46 = sphi 0, %s45
      %s60 = sphi 0, %s46
      %s64 = sphi 0, %s64
      %s66 = sphi 0, %s64
      %s67 = sphi 0, %s66
      %s81 = sphi 0, %s67
      %s87 = sphi 0, %s89
      %s90 = sphi 0, %s87
      %s91 = sphi 0, %s90
      %s107 = sphi 0, %s91
    $region4: #{resblock3d_forward.5} parent=1 // loop_header_branch
      %12 = sbr.rel (%p10) target = $region8
    $region5: #{resblock3d_forward.5} parent=1 // loop_body
      %s14 = ssub.s32 %s9, 1
      %s15 = ssub.s32 %s9, 2
      %s16 = sadd.s32 %s9, 1
      %s17 = ssub.s32 %s9, %s16
      %p18 = scmp.eq.s32.totalorder %s17, 0
      %s20 = sadd.s32 %s19, 1
      %s21 = scalar_select %p18, %s19, %s20
      %p24 = pneg %p18
      %p25 = scmp.eq.s32.totalorder %s9, 3
      %p26 = por %p24, %p25
      %p27 = scmp.ne.s32.totalorder %s19, %s22
      %p28 = scmp.eq.s32.totalorder %s9, 0
      %p29 = por %p27, %p28
      %p30 = scmp.ne.s32.totalorder %s19, %s22
      %p31 = scmp.eq.s32.totalorder %s14, 3
      %p32 = por %p30, %p31
      %p33 = scmp.ne.s32.totalorder %s22, %s23
      %p34 = scmp.eq.s32.totalorder %s14, 0
      %p35 = por %p33, %p34
      %p36 = scmp.ne.s32.totalorder %s22, %s23
      %p37 = scmp.eq.s32.totalorder %s15, 3
      %p38 = por %p36, %p37
      %p40 = scmp.ne.s32.totalorder %s23, %s39
      %p41 = scmp.eq.s32.totalorder %s15, 0
      %p42 = por %p40, %p41
      %s44 = sadd.s32 %s43, 1
      %p47 = scmp.eq.s32.totalorder %s9, 3
      %p48 = scmp.ne.s32.totalorder %s43, %s45
      %p49 = scmp.eq.s32.totalorder %s9, 0
      %p50 = por %p48, %p49
      %p51 = scmp.ne.s32.totalorder %s43, %s45
      %p52 = scmp.eq.s32.totalorder %s14, 3
      %p53 = por %p51, %p52
      %p54 = scmp.ne.s32.totalorder %s45, %s46
      %p55 = scmp.eq.s32.totalorder %s14, 0
      %p56 = por %p54, %p55
      %p57 = scmp.ne.s32.totalorder %s45, %s46
      %p58 = scmp.eq.s32.totalorder %s15, 3
      %p59 = por %p57, %p58
      %p61 = scmp.ne.s32.totalorder %s46, %s60
      %p62 = scmp.eq.s32.totalorder %s15, 0
      %p63 = por %p61, %p62
      %s65 = sadd.s32 %s64, 1
      %p68 = scmp.eq.s32.totalorder %s9, 3
      %p69 = scmp.ne.s32.totalorder %s64, %s66
      %p70 = scmp.eq.s32.totalorder %s9, 0
      %p71 = por %p69, %p70
      %p72 = scmp.ne.s32.totalorder %s64, %s66
      %p73 = scmp.eq.s32.totalorder %s14, 3
      %p74 = por %p72, %p73
      %p75 = scmp.ne.s32.totalorder %s66, %s67
      %p76 = scmp.eq.s32.totalorder %s14, 0
      %p77 = por %p75, %p76
      %p78 = scmp.ne.s32.totalorder %s66, %s67
      %p79 = scmp.eq.s32.totalorder %s15, 3
      %p80 = por %p78, %p79
      %p82 = scmp.ne.s32.totalorder %s67, %s81
      %p83 = scmp.eq.s32.totalorder %s15, 0
      %p84 = por %p82, %p83
      %s85 = ssub.s32 %s9, %s16
      %p86 = scmp.eq.s32.totalorder %s85, 0
      %s88 = sadd.s32 %s87, 1
      %s89 = scalar_select %p86, %s87, %s88
      %p92 = pneg %p86
      %p93 = scmp.eq.s32.totalorder %s9, 3
      %p94 = por %p92, %p93
      %p95 = scmp.ne.s32.totalorder %s87, %s90
      %p96 = scmp.eq.s32.totalorder %s9, 0
      %p97 = por %p95, %p96
      %p98 = scmp.ne.s32.totalorder %s87, %s90
      %p99 = scmp.eq.s32.totalorder %s14, 3
      %p100 = por %p98, %p99
      %p101 = scmp.ne.s32.totalorder %s90, %s91
      %p102 = scmp.eq.s32.totalorder %s14, 0
      %p103 = por %p101, %p102
      %p104 = scmp.ne.s32.totalorder %s90, %s91
      %p105 = scmp.eq.s32.totalorder %s15, 3
      %p106 = por %p104, %p105
      %p108 = scmp.ne.s32.totalorder %s91, %s107
      %p109 = scmp.eq.s32.totalorder %s15, 0
      %p110 = por %p108, %p109
      %p111 = scmp.le.s32.totalorder 1, %s9
      %p112 = scmp.lt.s32.totalorder %s9, 5
      %p113 = pnand %p111, %p112
      %p114 = pneg %p113
      // Predicated region
      $region9: #{resblock3d_forward.5} parent=5 // pred_check
        _
      $region10: #{resblock3d_forward.5} parent=5 // pred_check_branch
        %116 = sbr.rel (%p113) target = $region12
      $region11: #{resblock3d_forward.5} parent=5 // pred_region
        %s117 = ssub.s32 %s9, 1
        // Predicated region
        $region13: #{resblock3d_forward.5} parent=11 // pred_check
          %p118 = pneg %p56
        $region14: #{resblock3d_forward.5} parent=11 // pred_check_branch
          %120 = sbr.rel (%p118) target = $region16
        $region15: #{resblock3d_forward.5} parent=11 // pred_region
          _
        $region16: #{resblock3d_forward.5} parent=11 // pred_fallthru
          _
        // Predicated region
        $region17: #{resblock3d_forward.5} parent=11 // pred_check
          %p121 = pneg %p77
        $region18: #{resblock3d_forward.5} parent=11 // pred_check_branch
          %123 = sbr.rel (%p121) target = $region20
        $region19: #{resblock3d_forward.5} parent=11 // pred_region
          _
        $region20: #{resblock3d_forward.5} parent=11 // pred_fallthru
          _
      $region12: #{resblock3d_forward.5} parent=5 // pred_fallthru
        _
      %p124 = scmp.lt.s32.totalorder %s9, 4
      // Predicated region
      $region21: #{resblock3d_forward.5} parent=5 // pred_check
        %p125 = pneg %p124
      $region22: #{resblock3d_forward.5} parent=5 // pred_check_branch
        %127 = sbr.rel (%p125) target = $region24
      $region23: #{resblock3d_forward.5} parent=5 // pred_region
        // Predicated region
        $region25: #{resblock3d_forward.5} parent=23 // pred_check
          %p128 = pneg %p29
        $region26: #{resblock3d_forward.5} parent=23 // pred_check_branch
          %130 = sbr.rel (%p128) target = $region28
        $region27: #{resblock3d_forward.5} parent=23 // pred_region
          %s131 = sand.u32 %s19, 1
          %s132 = sand.u32 %s19, 1
          %s133 = smul.addr %s132, 256
          %s134 = scalar_lea.vmem [#allocation2], %s133
          %s135 = smul.u32 32, %s9
          %s136 = smul.addr %s135, 2
          %s137 = smul.addr %s136, 8
          %s138 = scalar_lea.vmem %s0, %s137
          // Predicated region
          $region29: #{resblock3d_forward.5} parent=27 // pred_check
            _
          $region30: #{resblock3d_forward.5} parent=27 // pred_check_branch
            %140 = sbr.rel (0) target = $region32
          $region31: #{resblock3d_forward.5} parent=27 // pred_region
            // Predicated region
            $region33: #{resblock3d_forward.5} parent=31 // pred_check
              _
            $region34: #{resblock3d_forward.5} parent=31 // pred_check_branch
              %142 = sbr.rel (0) target = $region36
            $region35: #{resblock3d_forward.5} parent=31 // pred_region
              // Predicated region
              $region48: #{resblock3d_forward.5} parent=35 // pred_check
                _
              $region49: #{resblock3d_forward.5} parent=35 // pred_check_branch
                %219 = sbr.rel (0) target = $region51
              $region50: #{resblock3d_forward.5} parent=35 // pred_region
                loop: start=0, step=1, limit=1
                $region52: #{resblock3d_forward.5} parent=50 // loop_pre_header
                  _
                $region53: #{resblock3d_forward.5} parent=50 // loop_header
                  %s221 = sphi 0, %s225
                  %p222 = scmp.ge.s32.totalorder %s221, 1
                  %s226 = sphi %s138, %s138
                  %s227 = sphi %s134, %s134
                $region54: #{resblock3d_forward.5} parent=50 // loop_header_branch
                  %224 = sbr.rel (%p222) target = $region58
                $region55: #{resblock3d_forward.5} parent=50 // loop_body
                  %v228 = vld [vmem:[%s226] sm:$0xff]
                  %229 = vst [vmem:[%s227] sm:$0xff] %v228
                  %v230 = vld [vmem:[%s226 + $0x10] sm:$0xff]
                  %231 = vst [vmem:[%s227 + $0x8] sm:$0xff] %v230
                  %v232 = vld [vmem:[%s226 + $0x20] sm:$0xff]
                  %233 = vst [vmem:[%s227 + $0x10] sm:$0xff] %v232
                  %v234 = vld [vmem:[%s226 + $0x30] sm:$0xff]
                  %235 = vst [vmem:[%s227 + $0x18] sm:$0xff] %v234
                  %v236 = vld [vmem:[%s226 + $0x40] sm:$0xff]
                  %237 = vst [vmem:[%s227 + $0x20] sm:$0xff] %v236
                  %v238 = vld [vmem:[%s226 + $0x50] sm:$0xff]
                  %239 = vst [vmem:[%s227 + $0x28] sm:$0xff] %v238
                  %v240 = vld [vmem:[%s226 + $0x60] sm:$0xff]
                  %241 = vst [vmem:[%s227 + $0x30] sm:$0xff] %v240
                  %v242 = vld [vmem:[%s226 + $0x70] sm:$0xff]
                  %243 = vst [vmem:[%s227 + $0x38] sm:$0xff] %v242
                  %v244 = vld [vmem:[%s226 + $0x80] sm:$0xff]
                  %245 = vst [vmem:[%s227 + $0x40] sm:$0xff] %v244
                  %v246 = vld [vmem:[%s226 + $0x90] sm:$0xff]
                  %247 = vst [vmem:[%s227 + $0x48] sm:$0xff] %v246
                  %v248 = vld [vmem:[%s226 + $0xa0] sm:$0xff]
                  %249 = vst [vmem:[%s227 + $0x50] sm:$0xff] %v248
                  %v250 = vld [vmem:[%s226 + $0xb0] sm:$0xff]
                  %251 = vst [vmem:[%s227 + $0x58] sm:$0xff] %v250
                  %v252 = vld [vmem:[%s226 + $0xc0] sm:$0xff]
                  %253 = vst [vmem:[%s227 + $0x60] sm:$0xff] %v252
                  %v254 = vld [vmem:[%s226 + $0xd0] sm:$0xff]
                  %255 = vst [vmem:[%s227 + $0x68] sm:$0xff] %v254
                  %v256 = vld [vmem:[%s226 + $0xe0] sm:$0xff]
                  %257 = vst [vmem:[%s227 + $0x70] sm:$0xff] %v256
                  %v258 = vld [vmem:[%s226 + $0xf0] sm:$0xff]
                  %259 = vst [vmem:[%s227 + $0x78] sm:$0xff] %v258
                  %v260 = vld [vmem:[%s226 + $0x100] sm:$0xff]
                  %261 = vst [vmem:[%s227 + $0x80] sm:$0xff] %v260
                  %v262 = vld [vmem:[%s226 + $0x110] sm:$0xff]
                  %263 = vst [vmem:[%s227 + $0x88] sm:$0xff] %v262
                  %v264 = vld [vmem:[%s226 + $0x120] sm:$0xff]
                  %265 = vst [vmem:[%s227 + $0x90] sm:$0xff] %v264
                  %v266 = vld [vmem:[%s226 + $0x130] sm:$0xff]
                  %267 = vst [vmem:[%s227 + $0x98] sm:$0xff] %v266
                  %v268 = vld [vmem:[%s226 + $0x140] sm:$0xff]
                  %269 = vst [vmem:[%s227 + $0xa0] sm:$0xff] %v268
                  %v270 = vld [vmem:[%s226 + $0x150] sm:$0xff]
                  %271 = vst [vmem:[%s227 + $0xa8] sm:$0xff] %v270
                  %v272 = vld [vmem:[%s226 + $0x160] sm:$0xff]
                  %273 = vst [vmem:[%s227 + $0xb0] sm:$0xff] %v272
                  %v274 = vld [vmem:[%s226 + $0x170] sm:$0xff]
                  %275 = vst [vmem:[%s227 + $0xb8] sm:$0xff] %v274
                  %v276 = vld [vmem:[%s226 + $0x180] sm:$0xff]
                  %277 = vst [vmem:[%s227 + $0xc0] sm:$0xff] %v276
                  %v278 = vld [vmem:[%s226 + $0x190] sm:$0xff]
                  %279 = vst [vmem:[%s227 + $0xc8] sm:$0xff] %v278
                  %v280 = vld [vmem:[%s226 + $0x1a0] sm:$0xff]
                  %281 = vst [vmem:[%s227 + $0xd0] sm:$0xff] %v280
                  %v282 = vld [vmem:[%s226 + $0x1b0] sm:$0xff]
                  %283 = vst [vmem:[%s227 + $0xd8] sm:$0xff] %v282
                  %v284 = vld [vmem:[%s226 + $0x1c0] sm:$0xff]
                  %285 = vst [vmem:[%s227 + $0xe0] sm:$0xff] %v284
                  %v286 = vld [vmem:[%s226 + $0x1d0] sm:$0xff]
                  %287 = vst [vmem:[%s227 + $0xe8] sm:$0xff] %v286
                  %v288 = vld [vmem:[%s226 + $0x1e0] sm:$0xff]
                  %289 = vst [vmem:[%s227 + $0xf0] sm:$0xff] %v288
                  %v290 = vld [vmem:[%s226 + $0x1f0] sm:$0xff]
                  %291 = vst [vmem:[%s227 + $0xf8] sm:$0xff] %v290
                $region56: #{resblock3d_forward.5} parent=50 // loop_footer
                  %s225 = sadd.s32 1, %s221
                $region57: #{resblock3d_forward.5} parent=50 // loop_footer_branch
                  %220 = sbr.rel target = $region53
                $region58: #{resblock3d_forward.5} parent=50 // loop_exit
                  _
              $region51: #{resblock3d_forward.5} parent=35 // pred_fallthru
                _
              // Predicated region
              $region59: #{resblock3d_forward.5} parent=35 // pred_check
                _
              $region60: #{resblock3d_forward.5} parent=35 // pred_check_branch
                %293 = sbr.rel target = $region62
              $region61: #{resblock3d_forward.5} parent=35 // pred_region
                _
              $region62: #{resblock3d_forward.5} parent=35 // pred_fallthru
                _
            $region36: #{resblock3d_forward.5} parent=31 // pred_fallthru
              _
            // Predicated region
            $region37: #{resblock3d_forward.5} parent=31 // pred_check
              _
            $region38: #{resblock3d_forward.5} parent=31 // pred_check_branch
              %144 = sbr.rel target = $region40
            $region39: #{resblock3d_forward.5} parent=31 // pred_region
              loop: start=0, step=1, limit=1
              $region41: #{resblock3d_forward.5} parent=39 // loop_pre_header
                _
              $region42: #{resblock3d_forward.5} parent=39 // loop_header
                %s147 = sphi 0, %s151
                %p148 = scmp.ge.s32.totalorder %s147, 1
                %s152 = sphi %s138, %s138
                %s153 = sphi %s134, %s134
              $region43: #{resblock3d_forward.5} parent=39 // loop_header_branch
                %150 = sbr.rel (%p148) target = $region47
              $region44: #{resblock3d_forward.5} parent=39 // loop_body
                %v154 = vld [vmem:[%s152] sm:$0xff]
                %155 = vst [vmem:[%s153] sm:$0xff] %v154
                %v156 = vld [vmem:[%s152 + $0x10] sm:$0xff]
                %157 = vst [vmem:[%s153 + $0x8] sm:$0xff] %v156
                %v158 = vld [vmem:[%s152 + $0x20] sm:$0xff]
                %159 = vst [vmem:[%s153 + $0x10] sm:$0xff] %v158
                %v160 = vld [vmem:[%s152 + $0x30] sm:$0xff]
                %161 = vst [vmem:[%s153 + $0x18] sm:$0xff] %v160
                %v162 = vld [vmem:[%s152 + $0x40] sm:$0xff]
                %163 = vst [vmem:[%s153 + $0x20] sm:$0xff] %v162
                %v164 = vld [vmem:[%s152 + $0x50] sm:$0xff]
                %165 = vst [vmem:[%s153 + $0x28] sm:$0xff] %v164
                %v166 = vld [vmem:[%s152 + $0x60] sm:$0xff]
                %167 = vst [vmem:[%s153 + $0x30] sm:$0xff] %v166
                %v168 = vld [vmem:[%s152 + $0x70] sm:$0xff]
                %169 = vst [vmem:[%s153 + $0x38] sm:$0xff] %v168
                %v170 = vld [vmem:[%s152 + $0x80] sm:$0xff]
                %171 = vst [vmem:[%s153 + $0x40] sm:$0xff] %v170
                %v172 = vld [vmem:[%s152 + $0x90] sm:$0xff]
                %173 = vst [vmem:[%s153 + $0x48] sm:$0xff] %v172
                %v174 = vld [vmem:[%s152 + $0xa0] sm:$0xff]
                %175 = vst [vmem:[%s153 + $0x50] sm:$0xff] %v174
                %v176 = vld [vmem:[%s152 + $0xb0] sm:$0xff]
                %177 = vst [vmem:[%s153 + $0x58] sm:$0xff] %v176
                %v178 = vld [vmem:[%s152 + $0xc0] sm:$0xff]
                %179 = vst [vmem:[%s153 + $0x60] sm:$0xff] %v178
                %v180 = vld [vmem:[%s152 + $0xd0] sm:$0xff]
                %181 = vst [vmem:[%s153 + $0x68] sm:$0xff] %v180
                %v182 = vld [vmem:[%s152 + $0xe0] sm:$0xff]
                %183 = vst [vmem:[%s153 + $0x70] sm:$0xff] %v182
                %v184 = vld [vmem:[%s152 + $0xf0] sm:$0xff]
                %185 = vst [vmem:[%s153 + $0x78] sm:$0xff] %v184
                %v186 = vld [vmem:[%s152 + $0x100] sm:$0xff]
                %187 = vst [vmem:[%s153 + $0x80] sm:$0xff] %v186
                %v188 = vld [vmem:[%s152 + $0x110] sm:$0xff]
                %189 = vst [vmem:[%s153 + $0x88] sm:$0xff] %v188
                %v190 = vld [vmem:[%s152 + $0x120] sm:$0xff]
                %191 = vst [vmem:[%s153 + $0x90] sm:$0xff] %v190
                %v192 = vld [vmem:[%s152 + $0x130] sm:$0xff]
                %193 = vst [vmem:[%s153 + $0x98] sm:$0xff] %v192
                %v194 = vld [vmem:[%s152 + $0x140] sm:$0xff]
                %195 = vst [vmem:[%s153 + $0xa0] sm:$0xff] %v194
                %v196 = vld [vmem:[%s152 + $0x150] sm:$0xff]
                %197 = vst [vmem:[%s153 + $0xa8] sm:$0xff] %v196
                %v198 = vld [vmem:[%s152 + $0x160] sm:$0xff]
                %199 = vst [vmem:[%s153 + $0xb0] sm:$0xff] %v198
                %v200 = vld [vmem:[%s152 + $0x170] sm:$0xff]
                %201 = vst [vmem:[%s153 + $0xb8] sm:$0xff] %v200
                %v202 = vld [vmem:[%s152 + $0x180] sm:$0xff]
                %203 = vst [vmem:[%s153 + $0xc0] sm:$0xff] %v202
                %v204 = vld [vmem:[%s152 + $0x190] sm:$0xff]
                %205 = vst [vmem:[%s153 + $0xc8] sm:$0xff] %v204
                %v206 = vld [vmem:[%s152 + $0x1a0] sm:$0xff]
                %207 = vst [vmem:[%s153 + $0xd0] sm:$0xff] %v206
                %v208 = vld [vmem:[%s152 + $0x1b0] sm:$0xff]
                %209 = vst [vmem:[%s153 + $0xd8] sm:$0xff] %v208
                %v210 = vld [vmem:[%s152 + $0x1c0] sm:$0xff]
                %211 = vst [vmem:[%s153 + $0xe0] sm:$0xff] %v210
                %v212 = vld [vmem:[%s152 + $0x1d0] sm:$0xff]
                %213 = vst [vmem:[%s153 + $0xe8] sm:$0xff] %v212
                %v214 = vld [vmem:[%s152 + $0x1e0] sm:$0xff]
                %215 = vst [vmem:[%s153 + $0xf0] sm:$0xff] %v214
                %v216 = vld [vmem:[%s152 + $0x1f0] sm:$0xff]
                %217 = vst [vmem:[%s153 + $0xf8] sm:$0xff] %v216
              $region45: #{resblock3d_forward.5} parent=39 // loop_footer
                %s151 = sadd.s32 1, %s147
              $region46: #{resblock3d_forward.5} parent=39 // loop_footer_branch
                %146 = sbr.rel target = $region42
              $region47: #{resblock3d_forward.5} parent=39 // loop_exit
                _
            $region40: #{resblock3d_forward.5} parent=31 // pred_fallthru
              _
          $region32: #{resblock3d_forward.5} parent=27 // pred_fallthru
            _
          %294 = vnop
        $region28: #{resblock3d_forward.5} parent=23 // pred_fallthru
          _
      $region24: #{resblock3d_forward.5} parent=5 // pred_fallthru
        _
      %p295 = scmp.le.s32.totalorder 1, %s9
      %p296 = scmp.lt.s32.totalorder %s9, 5
      %p297 = pnand %p295, %p296
      %p298 = pneg %p297
      // Predicated region
      $region63: #{resblock3d_forward.5} parent=5 // pred_check
        _
      $region64: #{resblock3d_forward.5} parent=5 // pred_check_branch
        %300 = sbr.rel (%p297) target = $region66
      $region65: #{resblock3d_forward.5} parent=5 // pred_region
        %s301 = ssub.s32 %s9, 1
        %s302 = sand.u32 %s22, 1
        %s303 = sand.u32 %s22, 1
        %s304 = smul.addr %s303, 256
        %s305 = scalar_lea.vmem [#allocation2], %s304
        // Predicated region
        $region67: #{resblock3d_forward.5} parent=65 // pred_check
          %p306 = pneg %p35
        $region68: #{resblock3d_forward.5} parent=65 // pred_check_branch
          %308 = sbr.rel (%p306) target = $region70
        $region69: #{resblock3d_forward.5} parent=65 // pred_region
          _
        $region70: #{resblock3d_forward.5} parent=65 // pred_fallthru
          _
        %s309 = sand.u32 %s22, 1
        %s310 = sand.u32 %s22, 1
        %s311 = smul.addr %s310, 256
        %s312 = scalar_lea.vmem [#allocation2], %s311
        %p313 = pneg %p35
        %p314 = pneg %p32
        %p315 = pneg %p56
        %p316 = pneg %p53
        %p317 = pneg %p77
        %p318 = pneg %p74
        %p319 = pneg %p103
        %p320 = pneg %p100
        %s321 = smul.u32 32, %s14
        %p322 = scmp.lt.s32.totalorder %s321, 127
        %s323 = scalar_select %p322, %s321, 127
        %s324 = smul.addr %s323, 8
        %s325 = scalar_lea.vmem %s3, %s324
        %s326 = smul.u32 32, %s14
        %s327 = smul.u32 32, %s14
        %p328 = scmp.lt.s32.totalorder %s327, 127
        %s329 = scalar_select %p328, %s327, 127
        %s330 = smul.addr %s329, 8
        %s331 = scalar_lea.vmem %s3, %s330
        %s332 = smul.u32 32, %s14
        %v333 = vld [vmem:[%s305] sm:$0xff]
        %v334 = vld [vmem:[%s305 + $0x8] sm:$0xff]
        %v335 = vld [vmem:[%s305 + $0x10] sm:$0xff]
        %v336 = vld [vmem:[%s305 + $0x18] sm:$0xff]
        %v337 = vld [vmem:[%s305 + $0x20] sm:$0xff]
        %v338 = vld [vmem:[%s305 + $0x28] sm:$0xff]
        %v339 = vld [vmem:[%s305 + $0x30] sm:$0xff]
        %v340 = vld [vmem:[%s305 + $0x38] sm:$0xff]
        %v341 = vld [vmem:[%s305 + $0x40] sm:$0xff]
        %v342 = vld [vmem:[%s305 + $0x48] sm:$0xff]
        %v343 = vld [vmem:[%s305 + $0x50] sm:$0xff]
        %v344 = vld [vmem:[%s305 + $0x58] sm:$0xff]
        %v345 = vld [vmem:[%s305 + $0x60] sm:$0xff]
        %v346 = vld [vmem:[%s305 + $0x68] sm:$0xff]
        %v347 = vld [vmem:[%s305 + $0x70] sm:$0xff]
        %v348 = vld [vmem:[%s305 + $0x78] sm:$0xff]
        %v349 = vld [vmem:[%s305 + $0x80] sm:$0xff]
        %v350 = vld [vmem:[%s305 + $0x88] sm:$0xff]
        %v351 = vld [vmem:[%s305 + $0x90] sm:$0xff]
        %v352 = vld [vmem:[%s305 + $0x98] sm:$0xff]
        %v353 = vld [vmem:[%s305 + $0xa0] sm:$0xff]
        %v354 = vld [vmem:[%s305 + $0xa8] sm:$0xff]
        %v355 = vld [vmem:[%s305 + $0xb0] sm:$0xff]
        %v356 = vld [vmem:[%s305 + $0xb8] sm:$0xff]
        %v357 = vld [vmem:[%s305 + $0xc0] sm:$0xff]
        %v358 = vld [vmem:[%s305 + $0xc8] sm:$0xff]
        %v359 = vld [vmem:[%s305 + $0xd0] sm:$0xff]
        %v360 = vld [vmem:[%s305 + $0xd8] sm:$0xff]
        %v361 = vld [vmem:[%s305 + $0xe0] sm:$0xff]
        %v362 = vld [vmem:[%s305 + $0xe8] sm:$0xff]
        %v363 = vld [vmem:[%s305 + $0xf0] sm:$0xff]
        %v364 = vld [vmem:[%s305 + $0xf8] sm:$0xff]
        %v365 = vld [vmem:[%s1] sm:$0x1]
        %v367 = vlaneseq
        %v368 = vshrl.u32 %v367, 7
        %v369 = vsub.s32 0, %v368
        %v370 = vrot.slane %v365, %v369
        %v372 = vmul.f32 %v333, %v370
        %v373 = vmul.f32 %v334, %v370
        %v374 = vmul.f32 %v335, %v370
        %v375 = vmul.f32 %v336, %v370
        %v376 = vmul.f32 %v337, %v370
        %v377 = vmul.f32 %v338, %v370
        %v378 = vmul.f32 %v339, %v370
        %v379 = vmul.f32 %v340, %v370
        %v380 = vmul.f32 %v341, %v370
        %v381 = vmul.f32 %v342, %v370
        %v382 = vmul.f32 %v343, %v370
        %v383 = vmul.f32 %v344, %v370
        %v384 = vmul.f32 %v345, %v370
        %v385 = vmul.f32 %v346, %v370
        %v386 = vmul.f32 %v347, %v370
        %v387 = vmul.f32 %v348, %v370
        %v388 = vmul.f32 %v349, %v370
        %v389 = vmul.f32 %v350, %v370
        %v390 = vmul.f32 %v351, %v370
        %v391 = vmul.f32 %v352, %v370
        %v392 = vmul.f32 %v353, %v370
        %v393 = vmul.f32 %v354, %v370
        %v394 = vmul.f32 %v355, %v370
        %v395 = vmul.f32 %v356, %v370
        %v396 = vmul.f32 %v357, %v370
        %v397 = vmul.f32 %v358, %v370
        %v398 = vmul.f32 %v359, %v370
        %v399 = vmul.f32 %v360, %v370
        %v400 = vmul.f32 %v361, %v370
        %v401 = vmul.f32 %v362, %v370
        %v402 = vmul.f32 %v363, %v370
        %v403 = vmul.f32 %v364, %v370
        %v404 = vld [vmem:[%s2] sm:$0x1]
        %v406 = vlaneseq
        %v407 = vshrl.u32 %v406, 7
        %v408 = vsub.s32 0, %v407
        %v409 = vrot.slane %v404, %v408
        %v411 = vadd.f32 %v372, %v409
        %v412 = vadd.f32 %v373, %v409
        %v413 = vadd.f32 %v374, %v409
        %v414 = vadd.f32 %v375, %v409
        %v415 = vadd.f32 %v376, %v409
        %v416 = vadd.f32 %v377, %v409
        %v417 = vadd.f32 %v378, %v409
        %v418 = vadd.f32 %v379, %v409
        %v419 = vadd.f32 %v380, %v409
        %v420 = vadd.f32 %v381, %v409
        %v421 = vadd.f32 %v382, %v409
        %v422 = vadd.f32 %v383, %v409
        %v423 = vadd.f32 %v384, %v409
        %v424 = vadd.f32 %v385, %v409
        %v425 = vadd.f32 %v386, %v409
        %v426 = vadd.f32 %v387, %v409
        %v427 = vadd.f32 %v388, %v409
        %v428 = vadd.f32 %v389, %v409
        %v429 = vadd.f32 %v390, %v409
        %v430 = vadd.f32 %v391, %v409
        %v431 = vadd.f32 %v392, %v409
        %v432 = vadd.f32 %v393, %v409
        %v433 = vadd.f32 %v394, %v409
        %v434 = vadd.f32 %v395, %v409
        %v435 = vadd.f32 %v396, %v409
        %v436 = vadd.f32 %v397, %v409
        %v437 = vadd.f32 %v398, %v409
        %v438 = vadd.f32 %v399, %v409
        %v439 = vadd.f32 %v400, %v409
        %v440 = vadd.f32 %v401, %v409
        %v441 = vadd.f32 %v402, %v409
        %v442 = vadd.f32 %v403, %v409
        %v443 = vmax.f32 %v411, 0.0
        %v444 = vmax.f32 %v412, 0.0
        %v445 = vmax.f32 %v413, 0.0
        %v446 = vmax.f32 %v414, 0.0
        %v447 = vmax.f32 %v415, 0.0
        %v448 = vmax.f32 %v416, 0.0
        %v449 = vmax.f32 %v417, 0.0
        %v450 = vmax.f32 %v418, 0.0
        %v451 = vmax.f32 %v419, 0.0
        %v452 = vmax.f32 %v420, 0.0
        %v453 = vmax.f32 %v421, 0.0
        %v454 = vmax.f32 %v422, 0.0
        %v455 = vmax.f32 %v423, 0.0
        %v456 = vmax.f32 %v424, 0.0
        %v457 = vmax.f32 %v425, 0.0
        %v458 = vmax.f32 %v426, 0.0
        %v459 = vmax.f32 %v427, 0.0
        %v460 = vmax.f32 %v428, 0.0
        %v461 = vmax.f32 %v429, 0.0
        %v462 = vmax.f32 %v430, 0.0
        %v463 = vmax.f32 %v431, 0.0
        %v464 = vmax.f32 %v432, 0.0
        %v465 = vmax.f32 %v433, 0.0
        %v466 = vmax.f32 %v434, 0.0
        %v467 = vmax.f32 %v435, 0.0
        %v468 = vmax.f32 %v436, 0.0
        %v469 = vmax.f32 %v437, 0.0
        %v470 = vmax.f32 %v438, 0.0
        %v471 = vmax.f32 %v439, 0.0
        %v472 = vmax.f32 %v440, 0.0
        %v473 = vmax.f32 %v441, 0.0
        %v474 = vmax.f32 %v442, 0.0
        %475 = vst [vmem:[%s331] sm:$0xff] %v443
        %476 = vst [vmem:[%s331 + $0x8] sm:$0xff] %v444
        %477 = vst [vmem:[%s331 + $0x10] sm:$0xff] %v445
        %478 = vst [vmem:[%s331 + $0x18] sm:$0xff] %v446
        %479 = vst [vmem:[%s331 + $0x20] sm:$0xff] %v447
        %480 = vst [vmem:[%s331 + $0x28] sm:$0xff] %v448
        %481 = vst [vmem:[%s331 + $0x30] sm:$0xff] %v449
        %482 = vst [vmem:[%s331 + $0x38] sm:$0xff] %v450
        %483 = vst [vmem:[%s331 + $0x40] sm:$0xff] %v451
        %484 = vst [vmem:[%s331 + $0x48] sm:$0xff] %v452
        %485 = vst [vmem:[%s331 + $0x50] sm:$0xff] %v453
        %486 = vst [vmem:[%s331 + $0x58] sm:$0xff] %v454
        %487 = vst [vmem:[%s331 + $0x60] sm:$0xff] %v455
        %488 = vst [vmem:[%s331 + $0x68] sm:$0xff] %v456
        %489 = vst [vmem:[%s331 + $0x70] sm:$0xff] %v457
        %490 = vst [vmem:[%s331 + $0x78] sm:$0xff] %v458
        %491 = vst [vmem:[%s331 + $0x80] sm:$0xff] %v459
        %492 = vst [vmem:[%s331 + $0x88] sm:$0xff] %v460
        %493 = vst [vmem:[%s331 + $0x90] sm:$0xff] %v461
        %494 = vst [vmem:[%s331 + $0x98] sm:$0xff] %v462
        %495 = vst [vmem:[%s331 + $0xa0] sm:$0xff] %v463
        %496 = vst [vmem:[%s331 + $0xa8] sm:$0xff] %v464
        %497 = vst [vmem:[%s331 + $0xb0] sm:$0xff] %v465
        %498 = vst [vmem:[%s331 + $0xb8] sm:$0xff] %v466
        %499 = vst [vmem:[%s331 + $0xc0] sm:$0xff] %v467
        %500 = vst [vmem:[%s331 + $0xc8] sm:$0xff] %v468
        %501 = vst [vmem:[%s331 + $0xd0] sm:$0xff] %v469
        %502 = vst [vmem:[%s331 + $0xd8] sm:$0xff] %v470
        %503 = vst [vmem:[%s331 + $0xe0] sm:$0xff] %v471
        %504 = vst [vmem:[%s331 + $0xe8] sm:$0xff] %v472
        %505 = vst [vmem:[%s331 + $0xf0] sm:$0xff] %v473
        %506 = vst [vmem:[%s331 + $0xf8] sm:$0xff] %v474
        %s507 = smul.u32 32, %s14
        %p508 = scmp.lt.s32.totalorder %s507, 127
        %s509 = scalar_select %p508, %s507, 127
        %s510 = smul.addr %s509, 8
        %s511 = scalar_lea.vmem %s3, %s510
        // Predicated region
        $region71: #{resblock3d_forward.5} parent=65 // pred_check
          %p512 = pneg %p100
        $region72: #{resblock3d_forward.5} parent=65 // pred_check_branch
          %514 = sbr.rel (%p512) target = $region74
        $region73: #{resblock3d_forward.5} parent=65 // pred_region
          %s515 = smul.u32 32, %s14
        $region74: #{resblock3d_forward.5} parent=65 // pred_fallthru
          _
      $region66: #{resblock3d_forward.5} parent=5 // pred_fallthru
        _
      %p516 = scmp.le.s32.totalorder 2, %s9
      // Predicated region
      $region75: #{resblock3d_forward.5} parent=5 // pred_check
        %p517 = pneg %p516
      $region76: #{resblock3d_forward.5} parent=5 // pred_check_branch
        %519 = sbr.rel (%p517) target = $region78
      $region77: #{resblock3d_forward.5} parent=5 // pred_region
        %s520 = ssub.s32 %s9, 2
        // Predicated region
        $region79: #{resblock3d_forward.5} parent=77 // pred_check
          %p521 = pneg %p106
        $region80: #{resblock3d_forward.5} parent=77 // pred_check_branch
          %523 = sbr.rel (%p521) target = $region82
        $region81: #{resblock3d_forward.5} parent=77 // pred_region
          %s524 = smul.u32 32, %s15
          %p525 = scmp.lt.s32.totalorder %s524, 127
          %s526 = scalar_select %p525, %s524, 127
          %s527 = smul.addr %s526, 8
          %s528 = scalar_lea.vmem %s3, %s527
        $region82: #{resblock3d_forward.5} parent=77 // pred_fallthru
          _
      $region78: #{resblock3d_forward.5} parent=5 // pred_fallthru
        _
    $region6: #{resblock3d_forward.5} parent=1 // loop_footer
      %s13 = sadd.s32 1, %s9
    $region7: #{resblock3d_forward.5} parent=1 // loop_footer_branch
      %8 = sbr.rel target = $region3
    $region8: #{resblock3d_forward.5} parent=1 // loop_exit
      _

// kernel: resblock3d_forward.4
$region0: #{resblock3d_forward.4}
  #allocation0 [shape = 'u32[]', space=smem, size = 0x4, offset = 0x4, fixed_abs, tag = 'smem constant byte address 0x4 - core index']
  #allocation1 [shape = 'u32[144,128]{1,0:T(1,128)}', space=vmem, size = 0x12000, scoped, tag = 'internal scratch']
  %s0 = inlined_call_operand.vmem [shape: f32[1024,128], index: 0, kind: input, shape index: {}]
  %s1 = inlined_call_operand.vmem [shape: f32[128,256], index: 1, kind: input, shape index: {}]
  %s2 = inlined_call_operand.vmem [shape: f32[1024,256], index: 2, kind: output, shape index: {0}]
  %s3 = inlined_call_operand.vmem [shape: f32[4,1,256], index: 3, kind: output, shape index: {1}]
  %s4 = inlined_call_operand.vmem [shape: f32[4,1,256], index: 4, kind: output, shape index: {2}]
  %5 = xla_tuple %s2, %s3, %s4
  %s6 = sld [smem:[#allocation0]]
  $region57: #{resblock3d_forward.4} parent=0
    _
  %s8 = ssub.s32 1, %s6
  %s9 = scalar_select 0, %s8, %s6
  loop: start=0, step=1, limit=6
  $region2: #{resblock3d_forward.4} parent=0 // loop_pre_header
    _
  $region3: #{resblock3d_forward.4} parent=0 // loop_header
    %s11 = sphi 0, %s15
    %p12 = scmp.ge.s32.totalorder %s11, 6
    %s21 = sphi 0, %s23
    %s24 = sphi 0, %s21
    %s25 = sphi 0, %s24
    %s41 = sphi 0, %s25
    %s45 = sphi 0, %s45
    %s47 = sphi 0, %s45
    %s48 = sphi 0, %s47
    %s62 = sphi 0, %s48
    %s68 = sphi 0, %s70
    %s71 = sphi 0, %s68
    %s72 = sphi 0, %s71
    %s88 = sphi 0, %s72
    %s94 = sphi 0, %s96
    %s97 = sphi 0, %s94
    %s98 = sphi 0, %s97
    %s114 = sphi 0, %s98
    %s120 = sphi 0, %s122
    %s123 = sphi 0, %s120
    %s124 = sphi 0, %s123
    %s140 = sphi 0, %s124
  $region4: #{resblock3d_forward.4} parent=0 // loop_header_branch
    %14 = sbr.rel (%p12) target = $region8
  $region5: #{resblock3d_forward.4} parent=0 // loop_body
    %s16 = ssub.s32 %s11, 1
    %s17 = ssub.s32 %s11, 2
    %s18 = sadd.s32 %s11, 1
    %s19 = ssub.s32 %s11, %s18
    %p20 = scmp.eq.s32.totalorder %s19, 0
    %s22 = sadd.s32 %s21, 1
    %s23 = scalar_select %p20, %s21, %s22
    %p26 = pneg %p20
    %p27 = scmp.eq.s32.totalorder %s11, 3
    %p28 = por %p26, %p27
    %p29 = scmp.ne.s32.totalorder %s21, %s24
    %p30 = scmp.eq.s32.totalorder %s11, 0
    %p31 = por %p29, %p30
    %p32 = scmp.ne.s32.totalorder %s21, %s24
    %p33 = scmp.eq.s32.totalorder %s16, 3
    %p34 = por %p32, %p33
    %p35 = scmp.ne.s32.totalorder %s24, %s25
    %p36 = scmp.eq.s32.totalorder %s16, 0
    %p37 = por %p35, %p36
    %p38 = scmp.ne.s32.totalorder %s24, %s25
    %p39 = scmp.eq.s32.totalorder %s17, 3
    %p40 = por %p38, %p39
    %p42 = scmp.ne.s32.totalorder %s25, %s41
    %p43 = scmp.eq.s32.totalorder %s17, 0
    %p44 = por %p42, %p43
    %s46 = sadd.s32 %s45, 1
    %p49 = scmp.eq.s32.totalorder %s11, 3
    %p50 = scmp.ne.s32.totalorder %s45, %s47
    %p51 = scmp.eq.s32.totalorder %s11, 0
    %p52 = por %p50, %p51
    %p53 = scmp.ne.s32.totalorder %s45, %s47
    %p54 = scmp.eq.s32.totalorder %s16, 3
    %p55 = por %p53, %p54
    %p56 = scmp.ne.s32.totalorder %s47, %s48
    %p57 = scmp.eq.s32.totalorder %s16, 0
    %p58 = por %p56, %p57
    %p59 = scmp.ne.s32.totalorder %s47, %s48
    %p60 = scmp.eq.s32.totalorder %s17, 3
    %p61 = por %p59, %p60
    %p63 = scmp.ne.s32.totalorder %s48, %s62
    %p64 = scmp.eq.s32.totalorder %s17, 0
    %p65 = por %p63, %p64
    %s66 = ssub.s32 %s11, %s18
    %p67 = scmp.eq.s32.totalorder %s66, 0
    %s69 = sadd.s32 %s68, 1
    %s70 = scalar_select %p67, %s68, %s69
    %p73 = pneg %p67
    %p74 = scmp.eq.s32.totalorder %s11, 3
    %p75 = por %p73, %p74
    %p76 = scmp.ne.s32.totalorder %s68, %s71
    %p77 = scmp.eq.s32.totalorder %s11, 0
    %p78 = por %p76, %p77
    %p79 = scmp.ne.s32.totalorder %s68, %s71
    %p80 = scmp.eq.s32.totalorder %s16, 3
    %p81 = por %p79, %p80
    %p82 = scmp.ne.s32.totalorder %s71, %s72
    %p83 = scmp.eq.s32.totalorder %s16, 0
    %p84 = por %p82, %p83
    %p85 = scmp.ne.s32.totalorder %s71, %s72
    %p86 = scmp.eq.s32.totalorder %s17, 3
    %p87 = por %p85, %p86
    %p89 = scmp.ne.s32.totalorder %s72, %s88
    %p90 = scmp.eq.s32.totalorder %s17, 0
    %p91 = por %p89, %p90
    %s92 = ssub.s32 %s11, %s18
    %p93 = scmp.eq.s32.totalorder %s92, 0
    %s95 = sadd.s32 %s94, 1
    %s96 = scalar_select %p93, %s94, %s95
    %p99 = pneg %p93
    %p100 = scmp.eq.s32.totalorder %s11, 3
    %p101 = por %p99, %p100
    %p102 = scmp.ne.s32.totalorder %s94, %s97
    %p103 = scmp.eq.s32.totalorder %s11, 0
    %p104 = por %p102, %p103
    %p105 = scmp.ne.s32.totalorder %s94, %s97
    %p106 = scmp.eq.s32.totalorder %s16, 3
    %p107 = por %p105, %p106
    %p108 = scmp.ne.s32.totalorder %s97, %s98
    %p109 = scmp.eq.s32.totalorder %s16, 0
    %p110 = por %p108, %p109
    %p111 = scmp.ne.s32.totalorder %s97, %s98
    %p112 = scmp.eq.s32.totalorder %s17, 3
    %p113 = por %p111, %p112
    %p115 = scmp.ne.s32.totalorder %s98, %s114
    %p116 = scmp.eq.s32.totalorder %s17, 0
    %p117 = por %p115, %p116
    %s118 = ssub.s32 %s11, %s18
    %p119 = scmp.eq.s32.totalorder %s118, 0
    %s121 = sadd.s32 %s120, 1
    %s122 = scalar_select %p119, %s120, %s121
    %p125 = pneg %p119
    %p126 = scmp.eq.s32.totalorder %s11, 3
    %p127 = por %p125, %p126
    %p128 = scmp.ne.s32.totalorder %s120, %s123
    %p129 = scmp.eq.s32.totalorder %s11, 0
    %p130 = por %p128, %p129
    %p131 = scmp.ne.s32.totalorder %s120, %s123
    %p132 = scmp.eq.s32.totalorder %s16, 3
    %p133 = por %p131, %p132
    %p134 = scmp.ne.s32.totalorder %s123, %s124
    %p135 = scmp.eq.s32.totalorder %s16, 0
    %p136 = por %p134, %p135
    %p137 = scmp.ne.s32.totalorder %s123, %s124
    %p138 = scmp.eq.s32.totalorder %s17, 3
    %p139 = por %p137, %p138
    %p141 = scmp.ne.s32.totalorder %s124, %s140
    %p142 = scmp.eq.s32.totalorder %s17, 0
    %p143 = por %p141, %p142
    %p144 = scmp.le.s32.totalorder 1, %s11
    %p145 = scmp.lt.s32.totalorder %s11, 5
    %p146 = pnand %p144, %p145
    %p147 = pneg %p146
    // Predicated region
    $region9: #{resblock3d_forward.4} parent=5 // pred_check
      _
    $region10: #{resblock3d_forward.4} parent=5 // pred_check_branch
      %149 = sbr.rel (%p146) target = $region12
    $region11: #{resblock3d_forward.4} parent=5 // pred_region
      %s150 = ssub.s32 %s11, 1
      // Predicated region
      $region13: #{resblock3d_forward.4} parent=11 // pred_check
        %p151 = pneg %p58
      $region14: #{resblock3d_forward.4} parent=11 // pred_check_branch
        %153 = sbr.rel (%p151) target = $region16
      $region15: #{resblock3d_forward.4} parent=11 // pred_region
        _
      $region16: #{resblock3d_forward.4} parent=11 // pred_fallthru
        _
    $region12: #{resblock3d_forward.4} parent=5 // pred_fallthru
      _
    %p154 = scmp.lt.s32.totalorder %s11, 4
    // Predicated region
    $region17: #{resblock3d_forward.4} parent=5 // pred_check
      %p155 = pneg %p154
    $region18: #{resblock3d_forward.4} parent=5 // pred_check_branch
      %157 = sbr.rel (%p155) target = $region20
    $region19: #{resblock3d_forward.4} parent=5 // pred_region
      // Predicated region
      $region21: #{resblock3d_forward.4} parent=19 // pred_check
        %p158 = pneg %p31
      $region22: #{resblock3d_forward.4} parent=19 // pred_check_branch
        %160 = sbr.rel (%p158) target = $region24
      $region23: #{resblock3d_forward.4} parent=19 // pred_region
        %s161 = smul.u32 32, %s11
        %p162 = scmp.lt.s32.totalorder %s161, 127
        %s163 = scalar_select %p162, %s161, 127
        %s164 = smul.addr %s163, 8
        %s165 = scalar_lea.vmem %s0, %s164
        %s166 = smul.u32 32, %s11
      $region24: #{resblock3d_forward.4} parent=19 // pred_fallthru
        _
    $region20: #{resblock3d_forward.4} parent=5 // pred_fallthru
      _
    %p167 = scmp.le.s32.totalorder 1, %s11
    %p168 = scmp.lt.s32.totalorder %s11, 5
    %p169 = pnand %p167, %p168
    %p170 = pneg %p169
    // Predicated region
    $region25: #{resblock3d_forward.4} parent=5 // pred_check
      _
    $region26: #{resblock3d_forward.4} parent=5 // pred_check_branch
      %172 = sbr.rel (%p169) target = $region28
    $region27: #{resblock3d_forward.4} parent=5 // pred_region
      %s173 = ssub.s32 %s11, 1
      %s174 = smul.u32 32, %s16
      %p175 = scmp.lt.s32.totalorder %s174, 127
      %s176 = scalar_select %p175, %s174, 127
      %s177 = smul.addr %s176, 8
      %s178 = scalar_lea.vmem %s0, %s177
      %p179 = pneg %p37
      %p180 = pneg %p34
      %p181 = pneg %p58
      %p182 = pneg %p55
      %p183 = pneg %p84
      %p184 = pneg %p81
      %s185 = smul.u32 32, %s16
      %p186 = scmp.lt.s32.totalorder %s185, 127
      %s187 = scalar_select %p186, %s185, 127
      %s188 = smul.addr %s187, 2
      %s189 = smul.addr %s188, 8
      %s190 = scalar_lea.vmem %s2, %s189
      %p191 = pneg %p110
      %p192 = pneg %p107
      %p193 = scmp.lt.s32.totalorder %s16, 3
      %s194 = scalar_select %p193, %s16, 3
      %s195 = smul.addr %s194, 2
      %s196 = scalar_lea.vmem %s3, %s195
      %p197 = pneg %p136
      %p198 = pneg %p133
      %p199 = scmp.lt.s32.totalorder %s16, 3
      %s200 = scalar_select %p199, %s16, 3
      %s201 = smul.addr %s200, 2
      %s202 = scalar_lea.vmem %s4, %s201
      %s203 = smul.u32 32, %s16
      %p204 = scmp.lt.s32.totalorder %s203, 127
      %s205 = scalar_select %p204, %s203, 127
      %s206 = smul.addr %s205, 8
      %s207 = scalar_lea.vmem %s0, %s206
      %s208 = smul.u32 32, %s16
      %s209 = smul.u32 32, %s16
      %p210 = scmp.lt.s32.totalorder %s209, 127
      %s211 = scalar_select %p210, %s209, 127
      %s212 = smul.addr %s211, 2
      %s213 = smul.addr %s212, 8
      %s214 = scalar_lea.vmem %s2, %s213
      %s215 = smul.u32 32, %s16
      %p216 = scmp.lt.s32.totalorder %s16, 3
      %s217 = scalar_select %p216, %s16, 3
      %s218 = smul.addr %s217, 2
      %s219 = scalar_lea.vmem %s3, %s218
      %p220 = scmp.lt.s32.totalorder %s16, 3
      %s221 = scalar_select %p220, %s16, 3
      %s222 = smul.addr %s221, 2
      %s223 = scalar_lea.vmem %s4, %s222
      %v224 = vld [vmem:[%s207] sm:$0xff]
      %v225 = vld [vmem:[%s207 + $0x8] sm:$0xff]
      %v226 = vld [vmem:[%s207 + $0x10] sm:$0xff]
      %v227 = vld [vmem:[%s207 + $0x18] sm:$0xff]
      %v228 = vld [vmem:[%s207 + $0x20] sm:$0xff]
      %v229 = vld [vmem:[%s207 + $0x28] sm:$0xff]
      %v230 = vld [vmem:[%s207 + $0x30] sm:$0xff]
      %v231 = vld [vmem:[%s207 + $0x38] sm:$0xff]
      %v232 = vld [vmem:[%s207 + $0x40] sm:$0xff]
      %v233 = vld [vmem:[%s207 + $0x48] sm:$0xff]
      %v234 = vld [vmem:[%s207 + $0x50] sm:$0xff]
      %v235 = vld [vmem:[%s207 + $0x58] sm:$0xff]
      %v236 = vld [vmem:[%s207 + $0x60] sm:$0xff]
      %v237 = vld [vmem:[%s207 + $0x68] sm:$0xff]
      %v238 = vld [vmem:[%s207 + $0x70] sm:$0xff]
      %v239 = vld [vmem:[%s207 + $0x78] sm:$0xff]
      %v240 = vld [vmem:[%s207 + $0x80] sm:$0xff]
      %v241 = vld [vmem:[%s207 + $0x88] sm:$0xff]
      %v242 = vld [vmem:[%s207 + $0x90] sm:$0xff]
      %v243 = vld [vmem:[%s207 + $0x98] sm:$0xff]
      %v244 = vld [vmem:[%s207 + $0xa0] sm:$0xff]
      %v245 = vld [vmem:[%s207 + $0xa8] sm:$0xff]
      %v246 = vld [vmem:[%s207 + $0xb0] sm:$0xff]
      %v247 = vld [vmem:[%s207 + $0xb8] sm:$0xff]
      %v248 = vld [vmem:[%s207 + $0xc0] sm:$0xff]
      %v249 = vld [vmem:[%s207 + $0xc8] sm:$0xff]
      %v250 = vld [vmem:[%s207 + $0xd0] sm:$0xff]
      %v251 = vld [vmem:[%s207 + $0xd8] sm:$0xff]
      %v252 = vld [vmem:[%s207 + $0xe0] sm:$0xff]
      %v253 = vld [vmem:[%s207 + $0xe8] sm:$0xff]
      %v254 = vld [vmem:[%s207 + $0xf0] sm:$0xff]
      %v255 = vld [vmem:[%s207 + $0xf8] sm:$0xff]
      %v256 = vld [vmem:[%s1] sm:$0xff]
      %v257 = vld [vmem:[%s1 + $0x8] sm:$0xff]
      %v258 = vld [vmem:[%s1 + $0x10] sm:$0xff]
      %v259 = vld [vmem:[%s1 + $0x18] sm:$0xff]
      %v260 = vld [vmem:[%s1 + $0x20] sm:$0xff]
      %v261 = vld [vmem:[%s1 + $0x28] sm:$0xff]
      %v262 = vld [vmem:[%s1 + $0x30] sm:$0xff]
      %v263 = vld [vmem:[%s1 + $0x38] sm:$0xff]
      %v264 = vld [vmem:[%s1 + $0x40] sm:$0xff]
      %v265 = vld [vmem:[%s1 + $0x48] sm:$0xff]
      %v266 = vld [vmem:[%s1 + $0x50] sm:$0xff]
      %v267 = vld [vmem:[%s1 + $0x58] sm:$0xff]
      %v268 = vld [vmem:[%s1 + $0x60] sm:$0xff]
      %v269 = vld [vmem:[%s1 + $0x68] sm:$0xff]
      %v270 = vld [vmem:[%s1 + $0x70] sm:$0xff]
      %v271 = vld [vmem:[%s1 + $0x78] sm:$0xff]
      %v272 = vld [vmem:[%s1 + $0x80] sm:$0xff]
      %v273 = vld [vmem:[%s1 + $0x88] sm:$0xff]
      %v274 = vld [vmem:[%s1 + $0x90] sm:$0xff]
      %v275 = vld [vmem:[%s1 + $0x98] sm:$0xff]
      %v276 = vld [vmem:[%s1 + $0xa0] sm:$0xff]
      %v277 = vld [vmem:[%s1 + $0xa8] sm:$0xff]
      %v278 = vld [vmem:[%s1 + $0xb0] sm:$0xff]
      %v279 = vld [vmem:[%s1 + $0xb8] sm:$0xff]
      %v280 = vld [vmem:[%s1 + $0xc0] sm:$0xff]
      %v281 = vld [vmem:[%s1 + $0xc8] sm:$0xff]
      %v282 = vld [vmem:[%s1 + $0xd0] sm:$0xff]
      %v283 = vld [vmem:[%s1 + $0xd8] sm:$0xff]
      %v284 = vld [vmem:[%s1 + $0xe0] sm:$0xff]
      %v285 = vld [vmem:[%s1 + $0xe8] sm:$0xff]
      %v286 = vld [vmem:[%s1 + $0xf0] sm:$0xff]
      %v287 = vld [vmem:[%s1 + $0xf8] sm:$0xff]
      %288 = vmatprep.subr.mxu0 %v257
      %289 = vmatpush1.msra.mxu0 %v256
      %290 = vmatprep.subr.mxu0 %v259
      %291 = vmatpush1.msra.mxu0 %v258
      %292 = vmatprep.subr.mxu0 %v261
      %293 = vmatpush1.msra.mxu0 %v260
      %294 = vmatprep.subr.mxu0 %v263
      %295 = vmatpush1.msra.mxu0 %v262
      %296 = vmatprep.subr.mxu0 %v265
      %297 = vmatpush1.msra.mxu0 %v264
      %298 = vmatprep.subr.mxu0 %v267
      %299 = vmatpush1.msra.mxu0 %v266
      %300 = vmatprep.subr.mxu0 %v269
      %301 = vmatpush1.msra.mxu0 %v268
      %302 = vmatprep.subr.mxu0 %v271
      %303 = vmatpush1.msra.mxu0 %v270
      %304 = vmatprep.subr.mxu0 %v273
      %305 = vmatpush1.msra.mxu0 %v272
      %306 = vmatprep.subr.mxu0 %v275
      %307 = vmatpush1.msra.mxu0 %v274
      %308 = vmatprep.subr.mxu0 %v277
      %309 = vmatpush1.msra.mxu0 %v276
      %310 = vmatprep.subr.mxu0 %v279
      %311 = vmatpush1.msra.mxu0 %v278
      %312 = vmatprep.subr.mxu0 %v281
      %313 = vmatpush1.msra.mxu0 %v280
      %314 = vmatprep.subr.mxu0 %v283
      %315 = vmatpush1.msra.mxu0 %v282
      %316 = vmatprep.subr.mxu0 %v285
      %317 = vmatpush1.msra.mxu0 %v284
      %318 = vmatprep.subr.mxu0 %v287
      %319 = vmatpush1.msra.mxu0 %v286
      %320 = vmatprep.subr.mxu0 0.0
      %321 = vmatpush1.msra.mxu0 0.0
      %322 = vmatprep.subr.mxu0 0.0
      %323 = vmatpush1.msra.mxu0 0.0
      %324 = vmatprep.subr.mxu0 0.0
      %325 = vmatpush1.msra.mxu0 0.0
      %326 = vmatprep.subr.mxu0 0.0
      %327 = vmatpush1.msra.mxu0 0.0
      %328 = vmatprep.subr.mxu0 0.0
      %329 = vmatpush1.msra.mxu0 0.0
      %330 = vmatprep.subr.mxu0 0.0
      %331 = vmatpush1.msra.mxu0 0.0
      %332 = vmatprep.subr.mxu0 0.0
      %333 = vmatpush1.msra.mxu0 0.0
      %334 = vmatprep.subr.mxu0 0.0
      %335 = vmatpush1.msra.mxu0 0.0
      %336 = vmatprep.subr.mxu0 0.0
      %337 = vmatpush1.msra.mxu0 0.0
      %338 = vmatprep.subr.mxu0 0.0
      %339 = vmatpush1.msra.mxu0 0.0
      %340 = vmatprep.subr.mxu0 0.0
      %341 = vmatpush1.msra.mxu0 0.0
      %342 = vmatprep.subr.mxu0 0.0
      %343 = vmatpush1.msra.mxu0 0.0
      %344 = vmatprep.subr.mxu0 0.0
      %345 = vmatpush1.msra.mxu0 0.0
      %346 = vmatprep.subr.mxu0 0.0
      %347 = vmatpush1.msra.mxu0 0.0
      %348 = vmatprep.subr.mxu0 0.0
      %349 = vmatpush1.msra.mxu0 0.0
      %350 = vmatprep.subr.mxu0 0.0
      %351 = vmatpush1.msra.mxu0 0.0
      %352 = vmatprep.mubr.f32.mxu0 0.0
      %353 = vmatmul.mubr.f32.gmra.mrb[0].mxu0 %v224
      %v354 = vpop.f32.mrb[0].mxu0
      %v355 = vadd.f32 0.0, %v354
      %v356 = vpop.f32.mrb[0].mxu0
      %v357 = vadd.f32 0.0, %v356
      %358 = vmatprep.mubr.f32.mxu0 0.0
      %359 = vmatmul.mubr.f32.gmra.mrb[0].mxu0 %v225
      %v360 = vpop.f32.mrb[0].mxu0
      %v361 = vadd.f32 0.0, %v360
      %v362 = vpop.f32.mrb[0].mxu0
      %v363 = vadd.f32 0.0, %v362
      %364 = vmatprep.mubr.f32.mxu0 0.0
      %365 = vmatmul.mubr.f32.gmra.mrb[0].mxu0 %v226
      %v366 = vpop.f32.mrb[0].mxu0
      %v367 = vadd.f32 0.0, %v366
      %v368 = vpop.f32.mrb[0].mxu0
      %v369 = vadd.f32 0.0, %v368
      %370 = vmatprep.mubr.f32.mxu0 0.0
      %371 = vmatmul.mubr.f32.gmra.mrb[0].mxu0 %v227
      %v372 = vpop.f32.mrb[0].mxu0
      %v373 = vadd.f32 0.0, %v372
      %v374 = vpop.f32.mrb[0].mxu0
      %v375 = vadd.f32 0.0, %v374
      %376 = vmatprep.mubr.f32.mxu0 0.0
      %377 = vmatmul.mubr.f32.gmra.mrb[0].mxu0 %v228
      %v378 = vpop.f32.mrb[0].mxu0
      %v379 = vadd.f32 0.0, %v378
      %v380 = vpop.f32.mrb[0].mxu0
      %v381 = vadd.f32 0.0, %v380
      %382 = vmatprep.mubr.f32.mxu0 0.0
      %383 = vmatmul.mubr.f32.gmra.mrb[0].mxu0 %v229
      %v384 = vpop.f32.mrb[0].mxu0
      %v385 = vadd.f32 0.0, %v384
      %v386 = vpop.f32.mrb[0].mxu0
      %v387 = vadd.f32 0.0, %v386
      %388 = vmatprep.mubr.f32.mxu0 0.0
      %389 = vmatmul.mubr.f32.gmra.mrb[0].mxu0 %v230
      %v390 = vpop.f32.mrb[0].mxu0
      %v391 = vadd.f32 0.0, %v390
      %v392 = vpop.f32.mrb[0].mxu0
      %v393 = vadd.f32 0.0, %v392
      %394 = vmatprep.mubr.f32.mxu0 0.0
      %395 = vmatmul.mubr.f32.gmra.mrb[0].mxu0 %v231
      %v396 = vpop.f32.mrb[0].mxu0
      %v397 = vadd.f32 0.0, %v396
      %v398 = vpop.f32.mrb[0].mxu0
      %v399 = vadd.f32 0.0, %v398
      %400 = vmatprep.mubr.f32.mxu0 0.0
      %401 = vmatmul.mubr.f32.gmra.mrb[0].mxu0 %v232
      %v402 = vpop.f32.mrb[0].mxu0
      %v403 = vadd.f32 0.0, %v402
      %v404 = vpop.f32.mrb[0].mxu0
      %v405 = vadd.f32 0.0, %v404
      %406 = vmatprep.mubr.f32.mxu0 0.0
      %407 = vmatmul.mubr.f32.gmra.mrb[0].mxu0 %v233
      %v408 = vpop.f32.mrb[0].mxu0
      %v409 = vadd.f32 0.0, %v408
      %v410 = vpop.f32.mrb[0].mxu0
      %v411 = vadd.f32 0.0, %v410
      %412 = vmatprep.mubr.f32.mxu0 0.0
      %413 = vmatmul.mubr.f32.gmra.mrb[0].mxu0 %v234
      %v414 = vpop.f32.mrb[0].mxu0
      %v415 = vadd.f32 0.0, %v414
      %v416 = vpop.f32.mrb[0].mxu0
      %v417 = vadd.f32 0.0, %v416
      %418 = vmatprep.mubr.f32.mxu0 0.0
      %419 = vmatmul.mubr.f32.gmra.mrb[0].mxu0 %v235
      %v420 = vpop.f32.mrb[0].mxu0
      %v421 = vadd.f32 0.0, %v420
      %v422 = vpop.f32.mrb[0].mxu0
      %v423 = vadd.f32 0.0, %v422
      %424 = vmatprep.mubr.f32.mxu0 0.0
      %425 = vmatmul.mubr.f32.gmra.mrb[0].mxu0 %v236
      %v426 = vpop.f32.mrb[0].mxu0
      %v427 = vadd.f32 0.0, %v426
      %v428 = vpop.f32.mrb[0].mxu0
      %v429 = vadd.f32 0.0, %v428
      %430 = vmatprep.mubr.f32.mxu0 0.0
      %431 = vmatmul.mubr.f32.gmra.mrb[0].mxu0 %v237
      %v432 = vpop.f32.mrb[0].mxu0
      %v433 = vadd.f32 0.0, %v432
      %v434 = vpop.f32.mrb[0].mxu0
      %v435 = vadd.f32 0.0, %v434
      %436 = vmatprep.mubr.f32.mxu0 0.0
      %437 = vmatmul.mubr.f32.gmra.mrb[0].mxu0 %v238
      %v438 = vpop.f32.mrb[0].mxu0
      %v439 = vadd.f32 0.0, %v438
      %v440 = vpop.f32.mrb[0].mxu0
      %v441 = vadd.f32 0.0, %v440
      %442 = vmatprep.mubr.f32.mxu0 0.0
      %443 = vmatmul.mubr.f32.gmra.mrb[0].mxu0 %v239
      %v444 = vpop.f32.mrb[0].mxu0
      %v445 = vadd.f32 0.0, %v444
      %v446 = vpop.f32.mrb[0].mxu0
      %v447 = vadd.f32 0.0, %v446
      %448 = vmatprep.mubr.f32.mxu0 0.0
      %449 = vmatmul.mubr.f32.gmra.mrb[0].mxu0 %v240
      %v450 = vpop.f32.mrb[0].mxu0
      %v451 = vadd.f32 0.0, %v450
      %v452 = vpop.f32.mrb[0].mxu0
      %v453 = vadd.f32 0.0, %v452
      %454 = vmatprep.mubr.f32.mxu0 0.0
      %455 = vmatmul.mubr.f32.gmra.mrb[0].mxu0 %v241
      %v456 = vpop.f32.mrb[0].mxu0
      %v457 = vadd.f32 0.0, %v456
      %v458 = vpop.f32.mrb[0].mxu0
      %v459 = vadd.f32 0.0, %v458
      %460 = vmatprep.mubr.f32.mxu0 0.0
      %461 = vmatmul.mubr.f32.gmra.mrb[0].mxu0 %v242
      %v462 = vpop.f32.mrb[0].mxu0
      %v463 = vadd.f32 0.0, %v462
      %v464 = vpop.f32.mrb[0].mxu0
      %v465 = vadd.f32 0.0, %v464
      %466 = vmatprep.mubr.f32.mxu0 0.0
      %467 = vmatmul.mubr.f32.gmra.mrb[0].mxu0 %v243
      %v468 = vpop.f32.mrb[0].mxu0
      %v469 = vadd.f32 0.0, %v468
      %v470 = vpop.f32.mrb[0].mxu0
      %v471 = vadd.f32 0.0, %v470
      %472 = vmatprep.mubr.f32.mxu0 0.0
      %473 = vmatmul.mubr.f32.gmra.mrb[0].mxu0 %v244
      %v474 = vpop.f32.mrb[0].mxu0
      %v475 = vadd.f32 0.0, %v474
      %v476 = vpop.f32.mrb[0].mxu0
      %v477 = vadd.f32 0.0, %v476
      %478 = vmatprep.mubr.f32.mxu0 0.0
      %479 = vmatmul.mubr.f32.gmra.mrb[0].mxu0 %v245
      %v480 = vpop.f32.mrb[0].mxu0
      %v481 = vadd.f32 0.0, %v480
      %v482 = vpop.f32.mrb[0].mxu0
      %v483 = vadd.f32 0.0, %v482
      %484 = vmatprep.mubr.f32.mxu0 0.0
      %485 = vmatmul.mubr.f32.gmra.mrb[0].mxu0 %v246
      %v486 = vpop.f32.mrb[0].mxu0
      %v487 = vadd.f32 0.0, %v486
      %v488 = vpop.f32.mrb[0].mxu0
      %v489 = vadd.f32 0.0, %v488
      %490 = vmatprep.mubr.f32.mxu0 0.0
      %491 = vmatmul.mubr.f32.gmra.mrb[0].mxu0 %v247
      %v492 = vpop.f32.mrb[0].mxu0
      %v493 = vadd.f32 0.0, %v492
      %v494 = vpop.f32.mrb[0].mxu0
      %v495 = vadd.f32 0.0, %v494
      %496 = vmatprep.mubr.f32.mxu0 0.0
      %497 = vmatmul.mubr.f32.gmra.mrb[0].mxu0 %v248
      %v498 = vpop.f32.mrb[0].mxu0
      %v499 = vadd.f32 0.0, %v498
      %v500 = vpop.f32.mrb[0].mxu0
      %v501 = vadd.f32 0.0, %v500
      %502 = vmatprep.mubr.f32.mxu0 0.0
      %503 = vmatmul.mubr.f32.gmra.mrb[0].mxu0 %v249
      %v504 = vpop.f32.mrb[0].mxu0
      %v505 = vadd.f32 0.0, %v504
      %v506 = vpop.f32.mrb[0].mxu0
      %v507 = vadd.f32 0.0, %v506
      %508 = vmatprep.mubr.f32.mxu0 0.0
      %509 = vmatmul.mubr.f32.gmra.mrb[0].mxu0 %v250
      %v510 = vpop.f32.mrb[0].mxu0
      %v511 = vadd.f32 0.0, %v510
      %v512 = vpop.f32.mrb[0].mxu0
      %v513 = vadd.f32 0.0, %v512
      %514 = vmatprep.mubr.f32.mxu0 0.0
      %515 = vmatmul.mubr.f32.gmra.mrb[0].mxu0 %v251
      %v516 = vpop.f32.mrb[0].mxu0
      %v517 = vadd.f32 0.0, %v516
      %v518 = vpop.f32.mrb[0].mxu0
      %v519 = vadd.f32 0.0, %v518
      %520 = vmatprep.mubr.f32.mxu0 0.0
      %521 = vmatmul.mubr.f32.gmra.mrb[0].mxu0 %v252
      %v522 = vpop.f32.mrb[0].mxu0
      %v523 = vadd.f32 0.0, %v522
      %v524 = vpop.f32.mrb[0].mxu0
      %v525 = vadd.f32 0.0, %v524
      %526 = vmatprep.mubr.f32.mxu0 0.0
      %527 = vmatmul.mubr.f32.gmra.mrb[0].mxu0 %v253
      %v528 = vpop.f32.mrb[0].mxu0
      %v529 = vadd.f32 0.0, %v528
      %v530 = vpop.f32.mrb[0].mxu0
      %v531 = vadd.f32 0.0, %v530
      %532 = vmatprep.mubr.f32.mxu0 0.0
      %533 = vmatmul.mubr.f32.gmra.mrb[0].mxu0 %v254
      %v534 = vpop.f32.mrb[0].mxu0
      %v535 = vadd.f32 0.0, %v534
      %v536 = vpop.f32.mrb[0].mxu0
      %v537 = vadd.f32 0.0, %v536
      %538 = vmatprep.mubr.f32.mxu0 0.0
      %539 = vmatmul.mubr.f32.gmra.mrb[0].mxu0 %v255
      %v540 = vpop.f32.mrb[0].mxu0
      %v541 = vadd.f32 0.0, %v540
      %v542 = vpop.f32.mrb[0].mxu0
      %v543 = vadd.f32 0.0, %v542
      %544 = vdwg.mxu0
      %545 = vst [vmem:[%s214] sm:$0xff] %v355
      %546 = vst [vmem:[%s214 + $0x8] sm:$0xff] %v357
      %547 = vst [vmem:[%s214 + $0x10] sm:$0xff] %v361
      %548 = vst [vmem:[%s214 + $0x18] sm:$0xff] %v363
      %549 = vst [vmem:[%s214 + $0x20] sm:$0xff] %v367
      %550 = vst [vmem:[%s214 + $0x28] sm:$0xff] %v369
      %551 = vst [vmem:[%s214 + $0x30] sm:$0xff] %v373
      %552 = vst [vmem:[%s214 + $0x38] sm:$0xff] %v375
      %553 = vst [vmem:[%s214 + $0x40] sm:$0xff] %v379
      %554 = vst [vmem:[%s214 + $0x48] sm:$0xff] %v381
      %555 = vst [vmem:[%s214 + $0x50] sm:$0xff] %v385
      %556 = vst [vmem:[%s214 + $0x58] sm:$0xff] %v387
      %557 = vst [vmem:[%s214 + $0x60] sm:$0xff] %v391
      %558 = vst [vmem:[%s214 + $0x68] sm:$0xff] %v393
      %559 = vst [vmem:[%s214 + $0x70] sm:$0xff] %v397
      %560 = vst [vmem:[%s214 + $0x78] sm:$0xff] %v399
      %561 = vst [vmem:[%s214 + $0x80] sm:$0xff] %v403
      %562 = vst [vmem:[%s214 + $0x88] sm:$0xff] %v405
      %563 = vst [vmem:[%s214 + $0x90] sm:$0xff] %v409
      %564 = vst [vmem:[%s214 + $0x98] sm:$0xff] %v411
      %565 = vst [vmem:[%s214 + $0xa0] sm:$0xff] %v415
      %566 = vst [vmem:[%s214 + $0xa8] sm:$0xff] %v417
      %567 = vst [vmem:[%s214 + $0xb0] sm:$0xff] %v421
      %568 = vst [vmem:[%s214 + $0xb8] sm:$0xff] %v423
      %569 = vst [vmem:[%s214 + $0xc0] sm:$0xff] %v427
      %570 = vst [vmem:[%s214 + $0xc8] sm:$0xff] %v429
      %571 = vst [vmem:[%s214 + $0xd0] sm:$0xff] %v433
      %572 = vst [vmem:[%s214 + $0xd8] sm:$0xff] %v435
      %573 = vst [vmem:[%s214 + $0xe0] sm:$0xff] %v439
      %574 = vst [vmem:[%s214 + $0xe8] sm:$0xff] %v441
      %575 = vst [vmem:[%s214 + $0xf0] sm:$0xff] %v445
      %576 = vst [vmem:[%s214 + $0xf8] sm:$0xff] %v447
      %577 = vst [vmem:[%s214 + $0x100] sm:$0xff] %v451
      %578 = vst [vmem:[%s214 + $0x108] sm:$0xff] %v453
      %579 = vst [vmem:[%s214 + $0x110] sm:$0xff] %v457
      %580 = vst [vmem:[%s214 + $0x118] sm:$0xff] %v459
      %581 = vst [vmem:[%s214 + $0x120] sm:$0xff] %v463
      %582 = vst [vmem:[%s214 + $0x128] sm:$0xff] %v465
      %583 = vst [vmem:[%s214 + $0x130] sm:$0xff] %v469
      %584 = vst [vmem:[%s214 + $0x138] sm:$0xff] %v471
      %585 = vst [vmem:[%s214 + $0x140] sm:$0xff] %v475
      %586 = vst [vmem:[%s214 + $0x148] sm:$0xff] %v477
      %587 = vst [vmem:[%s214 + $0x150] sm:$0xff] %v481
      %588 = vst [vmem:[%s214 + $0x158] sm:$0xff] %v483
      %589 = vst [vmem:[%s214 + $0x160] sm:$0xff] %v487
      %590 = vst [vmem:[%s214 + $0x168] sm:$0xff] %v489
      %591 = vst [vmem:[%s214 + $0x170] sm:$0xff] %v493
      %592 = vst [vmem:[%s214 + $0x178] sm:$0xff] %v495
      %593 = vst [vmem:[%s214 + $0x180] sm:$0xff] %v499
      %594 = vst [vmem:[%s214 + $0x188] sm:$0xff] %v501
      %595 = vst [vmem:[%s214 + $0x190] sm:$0xff] %v505
      %596 = vst [vmem:[%s214 + $0x198] sm:$0xff] %v507
      %597 = vst [vmem:[%s214 + $0x1a0] sm:$0xff] %v511
      %598 = vst [vmem:[%s214 + $0x1a8] sm:$0xff] %v513
      %599 = vst [vmem:[%s214 + $0x1b0] sm:$0xff] %v517
      %600 = vst [vmem:[%s214 + $0x1b8] sm:$0xff] %v519
      %601 = vst [vmem:[%s214 + $0x1c0] sm:$0xff] %v523
      %602 = vst [vmem:[%s214 + $0x1c8] sm:$0xff] %v525
      %603 = vst [vmem:[%s214 + $0x1d0] sm:$0xff] %v529
      %604 = vst [vmem:[%s214 + $0x1d8] sm:$0xff] %v531
      %605 = vst [vmem:[%s214 + $0x1e0] sm:$0xff] %v535
      %606 = vst [vmem:[%s214 + $0x1e8] sm:$0xff] %v537
      %607 = vst [vmem:[%s214 + $0x1f0] sm:$0xff] %v541
      %608 = vst [vmem:[%s214 + $0x1f8] sm:$0xff] %v543
      %v609 = vadd.f32 %v355, %v361
      %v610 = vadd.f32 %v609, %v367
      %v611 = vadd.f32 %v610, %v373
      %v612 = vadd.f32 %v611, %v379
      %v613 = vadd.f32 %v612, %v385
      %v614 = vadd.f32 %v613, %v391
      %v615 = vadd.f32 %v614, %v397
      %v616 = vadd.f32 %v615, %v403
      %v617 = vadd.f32 %v616, %v409
      %v618 = vadd.f32 %v617, %v415
      %v619 = vadd.f32 %v618, %v421
      %v620 = vadd.f32 %v619, %v427
      %v621 = vadd.f32 %v620, %v433
      %v622 = vadd.f32 %v621, %v439
      %v623 = vadd.f32 %v622, %v445
      %v624 = vadd.f32 %v623, %v451
      %v625 = vadd.f32 %v624, %v457
      %v626 = vadd.f32 %v625, %v463
      %v627 = vadd.f32 %v626, %v469
      %v628 = vadd.f32 %v627, %v475
      %v629 = vadd.f32 %v628, %v481
      %v630 = vadd.f32 %v629, %v487
      %v631 = vadd.f32 %v630, %v493
      %v632 = vadd.f32 %v631, %v499
      %v633 = vadd.f32 %v632, %v505
      %v634 = vadd.f32 %v633, %v511
      %v635 = vadd.f32 %v634, %v517
      %v636 = vadd.f32 %v635, %v523
      %v637 = vadd.f32 %v636, %v529
      %v638 = vadd.f32 %v637, %v535
      %v639 = vadd.f32 %v638, %v541
      %v640 = vrot.slane %v639, 4
      %v641 = vadd.f32 %v639, %v640
      %v642 = vrot.slane %v641, 2
      %v643 = vadd.f32 %v641, %v642
      %v644 = vrot.slane %v643, 1
      %v645 = vadd.f32 %v643, %v644
      %v646 = vadd.f32 %v357, %v363
      %v647 = vadd.f32 %v646, %v369
      %v648 = vadd.f32 %v647, %v375
      %v649 = vadd.f32 %v648, %v381
      %v650 = vadd.f32 %v649, %v387
      %v651 = vadd.f32 %v650, %v393
      %v652 = vadd.f32 %v651, %v399
      %v653 = vadd.f32 %v652, %v405
      %v654 = vadd.f32 %v653, %v411
      %v655 = vadd.f32 %v654, %v417
      %v656 = vadd.f32 %v655, %v423
      %v657 = vadd.f32 %v656, %v429
      %v658 = vadd.f32 %v657, %v435
      %v659 = vadd.f32 %v658, %v441
      %v660 = vadd.f32 %v659, %v447
      %v661 = vadd.f32 %v660, %v453
      %v662 = vadd.f32 %v661, %v459
      %v663 = vadd.f32 %v662, %v465
      %v664 = vadd.f32 %v663, %v471
      %v665 = vadd.f32 %v664, %v477
      %v666 = vadd.f32 %v665, %v483
      %v667 = vadd.f32 %v666, %v489
      %v668 = vadd.f32 %v667, %v495
      %v669 = vadd.f32 %v668, %v501
      %v670 = vadd.f32 %v669, %v507
      %v671 = vadd.f32 %v670, %v513
      %v672 = vadd.f32 %v671, %v519
      %v673 = vadd.f32 %v672, %v525
      %v674 = vadd.f32 %v673, %v531
      %v675 = vadd.f32 %v674, %v537
      %v676 = vadd.f32 %v675, %v543
      %v677 = vrot.slane %v676, 4
      %v678 = vadd.f32 %v676, %v677
      %v679 = vrot.slane %v678, 2
      %v680 = vadd.f32 %v678, %v679
      %v681 = vrot.slane %v680, 1
      %v682 = vadd.f32 %v680, %v681
      %v685 = vcombine.low %v645, %v682
      %v687 = vunpack.c.l.s4 1966171168
      %v688 = vunpack.c.0.s8 %v687
      %v689 = vlaneseq
      %v690 = vshrl.u32 %v689, 7
      %v691 = vsub.s32 %v688, %v690
      %v692 = vrot.slane %v685, %v691
      %v694 = vunpack.c.l.s4 1966171168
      %v695 = vunpack.c.0.s8 %v694
      %v696 = vlaneseq
      %v697 = vshrl.u32 %v696, 7
      %v698 = vsub.s32 %v695, %v697
      %v699 = vrot.slane %v692, %v698
      %v701 = vlaneseq
      %vm702 = vcmp.ge.s32.totalorder %v701, 0
      %vm703 = vcmp.lt.s32.totalorder %v701, 256
      %vm704 = vmand %vm702, %vm703
      %705 = vst.msk [vmem:[%s219] sm:$0x3] %vm704, %v699
      %v706 = vmul.f32 %v355, %v355
      %v707 = vmul.f32 %v357, %v357
      %v708 = vmul.f32 %v361, %v361
      %v709 = vmul.f32 %v363, %v363
      %v710 = vmul.f32 %v367, %v367
      %v711 = vmul.f32 %v369, %v369
      %v712 = vmul.f32 %v373, %v373
      %v713 = vmul.f32 %v375, %v375
      %v714 = vmul.f32 %v379, %v379
      %v715 = vmul.f32 %v381, %v381
      %v716 = vmul.f32 %v385, %v385
      %v717 = vmul.f32 %v387, %v387
      %v718 = vmul.f32 %v391, %v391
      %v719 = vmul.f32 %v393, %v393
      %v720 = vmul.f32 %v397, %v397
      %v721 = vmul.f32 %v399, %v399
      %v722 = vmul.f32 %v403, %v403
      %v723 = vmul.f32 %v405, %v405
      %v724 = vmul.f32 %v409, %v409
      %v725 = vmul.f32 %v411, %v411
      %v726 = vmul.f32 %v415, %v415
      %v727 = vmul.f32 %v417, %v417
      %v728 = vmul.f32 %v421, %v421
      %v729 = vmul.f32 %v423, %v423
      %v730 = vmul.f32 %v427, %v427
      %v731 = vmul.f32 %v429, %v429
      %v732 = vmul.f32 %v433, %v433
      %v733 = vmul.f32 %v435, %v435
      %v734 = vmul.f32 %v439, %v439
      %v735 = vmul.f32 %v441, %v441
      %v736 = vmul.f32 %v445, %v445
      %v737 = vmul.f32 %v447, %v447
      %v738 = vmul.f32 %v451, %v451
      %v739 = vmul.f32 %v453, %v453
      %v740 = vmul.f32 %v457, %v457
      %v741 = vmul.f32 %v459, %v459
      %v742 = vmul.f32 %v463, %v463
      %v743 = vmul.f32 %v465, %v465
      %v744 = vmul.f32 %v469, %v469
      %v745 = vmul.f32 %v471, %v471
      %v746 = vmul.f32 %v475, %v475
      %v747 = vmul.f32 %v477, %v477
      %v748 = vmul.f32 %v481, %v481
      %v749 = vmul.f32 %v483, %v483
      %v750 = vmul.f32 %v487, %v487
      %v751 = vmul.f32 %v489, %v489
      %v752 = vmul.f32 %v493, %v493
      %v753 = vmul.f32 %v495, %v495
      %v754 = vmul.f32 %v499, %v499
      %v755 = vmul.f32 %v501, %v501
      %v756 = vmul.f32 %v505, %v505
      %v757 = vmul.f32 %v507, %v507
      %v758 = vmul.f32 %v511, %v511
      %v759 = vmul.f32 %v513, %v513
      %v760 = vmul.f32 %v517, %v517
      %v761 = vmul.f32 %v519, %v519
      %v762 = vmul.f32 %v523, %v523
      %v763 = vmul.f32 %v525, %v525
      %v764 = vmul.f32 %v529, %v529
      %v765 = vmul.f32 %v531, %v531
      %v766 = vmul.f32 %v535, %v535
      %v767 = vmul.f32 %v537, %v537
      %v768 = vmul.f32 %v541, %v541
      %v769 = vmul.f32 %v543, %v543
      %v770 = vadd.f32 %v706, %v708
      %v771 = vadd.f32 %v770, %v710
      %v772 = vadd.f32 %v771, %v712
      %v773 = vadd.f32 %v772, %v714
      %v774 = vadd.f32 %v773, %v716
      %v775 = vadd.f32 %v774, %v718
      %v776 = vadd.f32 %v775, %v720
      %v777 = vadd.f32 %v776, %v722
      %v778 = vadd.f32 %v777, %v724
      %v779 = vadd.f32 %v778, %v726
      %v780 = vadd.f32 %v779, %v728
      %v781 = vadd.f32 %v780, %v730
      %v782 = vadd.f32 %v781, %v732
      %v783 = vadd.f32 %v782, %v734
      %v784 = vadd.f32 %v783, %v736
      %v785 = vadd.f32 %v784, %v738
      %v786 = vadd.f32 %v785, %v740
      %v787 = vadd.f32 %v786, %v742
      %v788 = vadd.f32 %v787, %v744
      %v789 = vadd.f32 %v788, %v746
      %v790 = vadd.f32 %v789, %v748
      %v791 = vadd.f32 %v790, %v750
      %v792 = vadd.f32 %v791, %v752
      %v793 = vadd.f32 %v792, %v754
      %v794 = vadd.f32 %v793, %v756
      %v795 = vadd.f32 %v794, %v758
      %v796 = vadd.f32 %v795, %v760
      %v797 = vadd.f32 %v796, %v762
      %v798 = vadd.f32 %v797, %v764
      %v799 = vadd.f32 %v798, %v766
      %v800 = vadd.f32 %v799, %v768
      %v801 = vrot.slane %v800, 4
      %v802 = vadd.f32 %v800, %v801
      %v803 = vrot.slane %v802, 2
      %v804 = vadd.f32 %v802, %v803
      %v805 = vrot.slane %v804, 1
      %v806 = vadd.f32 %v804, %v805
      %v807 = vadd.f32 %v707, %v709
      %v808 = vadd.f32 %v807, %v711
      %v809 = vadd.f32 %v808, %v713
      %v810 = vadd.f32 %v809, %v715
      %v811 = vadd.f32 %v810, %v717
      %v812 = vadd.f32 %v811, %v719
      %v813 = vadd.f32 %v812, %v721
      %v814 = vadd.f32 %v813, %v723
      %v815 = vadd.f32 %v814, %v725
      %v816 = vadd.f32 %v815, %v727
      %v817 = vadd.f32 %v816, %v729
      %v818 = vadd.f32 %v817, %v731
      %v819 = vadd.f32 %v818, %v733
      %v820 = vadd.f32 %v819, %v735
      %v821 = vadd.f32 %v820, %v737
      %v822 = vadd.f32 %v821, %v739
      %v823 = vadd.f32 %v822, %v741
      %v824 = vadd.f32 %v823, %v743
      %v825 = vadd.f32 %v824, %v745
      %v826 = vadd.f32 %v825, %v747
      %v827 = vadd.f32 %v826, %v749
      %v828 = vadd.f32 %v827, %v751
      %v829 = vadd.f32 %v828, %v753
      %v830 = vadd.f32 %v829, %v755
      %v831 = vadd.f32 %v830, %v757
      %v832 = vadd.f32 %v831, %v759
      %v833 = vadd.f32 %v832, %v761
      %v834 = vadd.f32 %v833, %v763
      %v835 = vadd.f32 %v834, %v765
      %v836 = vadd.f32 %v835, %v767
      %v837 = vadd.f32 %v836, %v769
      %v838 = vrot.slane %v837, 4
      %v839 = vadd.f32 %v837, %v838
      %v840 = vrot.slane %v839, 2
      %v841 = vadd.f32 %v839, %v840
      %v842 = vrot.slane %v841, 1
      %v843 = vadd.f32 %v841, %v842
      %v846 = vcombine.low %v806, %v843
      %v848 = vunpack.c.l.s4 1966171168
      %v849 = vunpack.c.0.s8 %v848
      %v850 = vlaneseq
      %v851 = vshrl.u32 %v850, 7
      %v852 = vsub.s32 %v849, %v851
      %v853 = vrot.slane %v846, %v852
      %v855 = vunpack.c.l.s4 1966171168
      %v856 = vunpack.c.0.s8 %v855
      %v857 = vlaneseq
      %v858 = vshrl.u32 %v857, 7
      %v859 = vsub.s32 %v856, %v858
      %v860 = vrot.slane %v853, %v859
      %862 = vst.msk [vmem:[%s223] sm:$0x3] %vm704, %v860
      %s863 = smul.u32 32, %s16
      %p864 = scmp.lt.s32.totalorder %s863, 127
      %s865 = scalar_select %p864, %s863, 127
      %s866 = smul.addr %s865, 2
      %s867 = smul.addr %s866, 8
      %s868 = scalar_lea.vmem %s2, %s867
      %p869 = scmp.lt.s32.totalorder %s16, 3
      %s870 = scalar_select %p869, %s16, 3
      %s871 = smul.addr %s870, 2
      %s872 = scalar_lea.vmem %s3, %s871
      %p873 = scmp.lt.s32.totalorder %s16, 3
      %s874 = scalar_select %p873, %s16, 3
      %s875 = smul.addr %s874, 2
      %s876 = scalar_lea.vmem %s4, %s875
      // Predicated region
      $region29: #{resblock3d_forward.4} parent=27 // pred_check
        %p877 = pneg %p81
      $region30: #{resblock3d_forward.4} parent=27 // pred_check_branch
        %879 = sbr.rel (%p877) target = $region32
      $region31: #{resblock3d_forward.4} parent=27 // pred_region
        %s880 = smul.u32 32, %s16
      $region32: #{resblock3d_forward.4} parent=27 // pred_fallthru
        _
      // Predicated region
      $region33: #{resblock3d_forward.4} parent=27 // pred_check
        %p881 = pneg %p107
      $region34: #{resblock3d_forward.4} parent=27 // pred_check_branch
        %883 = sbr.rel (%p881) target = $region36
      $region35: #{resblock3d_forward.4} parent=27 // pred_region
        _
      $region36: #{resblock3d_forward.4} parent=27 // pred_fallthru
        _
      // Predicated region
      $region37: #{resblock3d_forward.4} parent=27 // pred_check
        %p884 = pneg %p133
      $region38: #{resblock3d_forward.4} parent=27 // pred_check_branch
        %886 = sbr.rel (%p884) target = $region40
      $region39: #{resblock3d_forward.4} parent=27 // pred_region
        _
      $region40: #{resblock3d_forward.4} parent=27 // pred_fallthru
        _
    $region28: #{resblock3d_forward.4} parent=5 // pred_fallthru
      _
    %p887 = scmp.le.s32.totalorder 2, %s11
    // Predicated region
    $region41: #{resblock3d_forward.4} parent=5 // pred_check
      %p888 = pneg %p887
    $region42: #{resblock3d_forward.4} parent=5 // pred_check_branch
      %890 = sbr.rel (%p888) target = $region44
    $region43: #{resblock3d_forward.4} parent=5 // pred_region
      %s891 = ssub.s32 %s11, 2
      // Predicated region
      $region45: #{resblock3d_forward.4} parent=43 // pred_check
        %p892 = pneg %p87
      $region46: #{resblock3d_forward.4} parent=43 // pred_check_branch
        %894 = sbr.rel (%p892) target = $region48
      $region47: #{resblock3d_forward.4} parent=43 // pred_region
        %s895 = smul.u32 32, %s17
        %p896 = scmp.lt.s32.totalorder %s895, 127
        %s897 = scalar_select %p896, %s895, 127
        %s898 = smul.addr %s897, 2
        %s899 = smul.addr %s898, 8
        %s900 = scalar_lea.vmem %s2, %s899
      $region48: #{resblock3d_forward.4} parent=43 // pred_fallthru
        _
      // Predicated region
      $region49: #{resblock3d_forward.4} parent=43 // pred_check
        %p901 = pneg %p113
      $region50: #{resblock3d_forward.4} parent=43 // pred_check_branch
        %903 = sbr.rel (%p901) target = $region52
      $region51: #{resblock3d_forward.4} parent=43 // pred_region
        %p904 = scmp.lt.s32.totalorder %s17, 3
        %s905 = scalar_select %p904, %s17, 3
        %s906 = smul.addr %s905, 2
        %s907 = scalar_lea.vmem %s3, %s906
      $region52: #{resblock3d_forward.4} parent=43 // pred_fallthru
        _
      // Predicated region
      $region53: #{resblock3d_forward.4} parent=43 // pred_check
        %p908 = pneg %p139
      $region54: #{resblock3d_forward.4} parent=43 // pred_check_branch
        %910 = sbr.rel (%p908) target = $region56
      $region55: #{resblock3d_forward.4} parent=43 // pred_region
        %p911 = scmp.lt.s32.totalorder %s17, 3
        %s912 = scalar_select %p911, %s17, 3
        %s913 = smul.addr %s912, 2
        %s914 = scalar_lea.vmem %s4, %s913
      $region56: #{resblock3d_forward.4} parent=43 // pred_fallthru
        _
    $region44: #{resblock3d_forward.4} parent=5 // pred_fallthru
      _
  $region6: #{resblock3d_forward.4} parent=0 // loop_footer
    %s15 = sadd.s32 1, %s11
  $region7: #{resblock3d_forward.4} parent=0 // loop_footer_branch
    %10 = sbr.rel target = $region3
  $region8: #{resblock3d_forward.4} parent=0 // loop_exit
    _

// kernel: resblock3d_forward.6
$region0: #{resblock3d_forward.6}
  #allocation0 [shape = 'u32[]', space=smem, size = 0x4, offset = 0x4, fixed_abs, tag = 'smem constant byte address 0x4 - core index']
  #allocation1 [shape = 'u32[144,128]{1,0:T(1,128)}', space=vmem, size = 0x12000, scoped, tag = 'internal scratch']
  %s0 = inlined_call_operand.vmem [shape: f32[1024,256], index: 0, kind: input, shape index: {}]
  %s1 = inlined_call_operand.vmem [shape: f32[256,128], index: 1, kind: input, shape index: {}]
  %s2 = inlined_call_operand.vmem [shape: f32[1024,128], index: 2, kind: output, shape index: {0}]
  %s3 = inlined_call_operand.vmem [shape: f32[4,1,128], index: 3, kind: output, shape index: {1}]
  %s4 = inlined_call_operand.vmem [shape: f32[4,1,128], index: 4, kind: output, shape index: {2}]
  %5 = xla_tuple %s2, %s3, %s4
  %s6 = sld [smem:[#allocation0]]
  $region57: #{resblock3d_forward.6} parent=0
    _
  %s8 = ssub.s32 1, %s6
  %s9 = scalar_select 0, %s8, %s6
  loop: start=0, step=1, limit=6
  $region2: #{resblock3d_forward.6} parent=0 // loop_pre_header
    _
  $region3: #{resblock3d_forward.6} parent=0 // loop_header
    %s11 = sphi 0, %s15
    %p12 = scmp.ge.s32.totalorder %s11, 6
    %s21 = sphi 0, %s23
    %s24 = sphi 0, %s21
    %s25 = sphi 0, %s24
    %s41 = sphi 0, %s25
    %s45 = sphi 0, %s45
    %s47 = sphi 0, %s45
    %s48 = sphi 0, %s47
    %s62 = sphi 0, %s48
    %s68 = sphi 0, %s70
    %s71 = sphi 0, %s68
    %s72 = sphi 0, %s71
    %s88 = sphi 0, %s72
    %s94 = sphi 0, %s96
    %s97 = sphi 0, %s94
    %s98 = sphi 0, %s97
    %s114 = sphi 0, %s98
    %s120 = sphi 0, %s122
    %s123 = sphi 0, %s120
    %s124 = sphi 0, %s123
    %s140 = sphi 0, %s124
  $region4: #{resblock3d_forward.6} parent=0 // loop_header_branch
    %14 = sbr.rel (%p12) target = $region8
  $region5: #{resblock3d_forward.6} parent=0 // loop_body
    %s16 = ssub.s32 %s11, 1
    %s17 = ssub.s32 %s11, 2
    %s18 = sadd.s32 %s11, 1
    %s19 = ssub.s32 %s11, %s18
    %p20 = scmp.eq.s32.totalorder %s19, 0
    %s22 = sadd.s32 %s21, 1
    %s23 = scalar_select %p20, %s21, %s22
    %p26 = pneg %p20
    %p27 = scmp.eq.s32.totalorder %s11, 3
    %p28 = por %p26, %p27
    %p29 = scmp.ne.s32.totalorder %s21, %s24
    %p30 = scmp.eq.s32.totalorder %s11, 0
    %p31 = por %p29, %p30
    %p32 = scmp.ne.s32.totalorder %s21, %s24
    %p33 = scmp.eq.s32.totalorder %s16, 3
    %p34 = por %p32, %p33
    %p35 = scmp.ne.s32.totalorder %s24, %s25
    %p36 = scmp.eq.s32.totalorder %s16, 0
    %p37 = por %p35, %p36
    %p38 = scmp.ne.s32.totalorder %s24, %s25
    %p39 = scmp.eq.s32.totalorder %s17, 3
    %p40 = por %p38, %p39
    %p42 = scmp.ne.s32.totalorder %s25, %s41
    %p43 = scmp.eq.s32.totalorder %s17, 0
    %p44 = por %p42, %p43
    %s46 = sadd.s32 %s45, 1
    %p49 = scmp.eq.s32.totalorder %s11, 3
    %p50 = scmp.ne.s32.totalorder %s45, %s47
    %p51 = scmp.eq.s32.totalorder %s11, 0
    %p52 = por %p50, %p51
    %p53 = scmp.ne.s32.totalorder %s45, %s47
    %p54 = scmp.eq.s32.totalorder %s16, 3
    %p55 = por %p53, %p54
    %p56 = scmp.ne.s32.totalorder %s47, %s48
    %p57 = scmp.eq.s32.totalorder %s16, 0
    %p58 = por %p56, %p57
    %p59 = scmp.ne.s32.totalorder %s47, %s48
    %p60 = scmp.eq.s32.totalorder %s17, 3
    %p61 = por %p59, %p60
    %p63 = scmp.ne.s32.totalorder %s48, %s62
    %p64 = scmp.eq.s32.totalorder %s17, 0
    %p65 = por %p63, %p64
    %s66 = ssub.s32 %s11, %s18
    %p67 = scmp.eq.s32.totalorder %s66, 0
    %s69 = sadd.s32 %s68, 1
    %s70 = scalar_select %p67, %s68, %s69
    %p73 = pneg %p67
    %p74 = scmp.eq.s32.totalorder %s11, 3
    %p75 = por %p73, %p74
    %p76 = scmp.ne.s32.totalorder %s68, %s71
    %p77 = scmp.eq.s32.totalorder %s11, 0
    %p78 = por %p76, %p77
    %p79 = scmp.ne.s32.totalorder %s68, %s71
    %p80 = scmp.eq.s32.totalorder %s16, 3
    %p81 = por %p79, %p80
    %p82 = scmp.ne.s32.totalorder %s71, %s72
    %p83 = scmp.eq.s32.totalorder %s16, 0
    %p84 = por %p82, %p83
    %p85 = scmp.ne.s32.totalorder %s71, %s72
    %p86 = scmp.eq.s32.totalorder %s17, 3
    %p87 = por %p85, %p86
    %p89 = scmp.ne.s32.totalorder %s72, %s88
    %p90 = scmp.eq.s32.totalorder %s17, 0
    %p91 = por %p89, %p90
    %s92 = ssub.s32 %s11, %s18
    %p93 = scmp.eq.s32.totalorder %s92, 0
    %s95 = sadd.s32 %s94, 1
    %s96 = scalar_select %p93, %s94, %s95
    %p99 = pneg %p93
    %p100 = scmp.eq.s32.totalorder %s11, 3
    %p101 = por %p99, %p100
    %p102 = scmp.ne.s32.totalorder %s94, %s97
    %p103 = scmp.eq.s32.totalorder %s11, 0
    %p104 = por %p102, %p103
    %p105 = scmp.ne.s32.totalorder %s94, %s97
    %p106 = scmp.eq.s32.totalorder %s16, 3
    %p107 = por %p105, %p106
    %p108 = scmp.ne.s32.totalorder %s97, %s98
    %p109 = scmp.eq.s32.totalorder %s16, 0
    %p110 = por %p108, %p109
    %p111 = scmp.ne.s32.totalorder %s97, %s98
    %p112 = scmp.eq.s32.totalorder %s17, 3
    %p113 = por %p111, %p112
    %p115 = scmp.ne.s32.totalorder %s98, %s114
    %p116 = scmp.eq.s32.totalorder %s17, 0
    %p117 = por %p115, %p116
    %s118 = ssub.s32 %s11, %s18
    %p119 = scmp.eq.s32.totalorder %s118, 0
    %s121 = sadd.s32 %s120, 1
    %s122 = scalar_select %p119, %s120, %s121
    %p125 = pneg %p119
    %p126 = scmp.eq.s32.totalorder %s11, 3
    %p127 = por %p125, %p126
    %p128 = scmp.ne.s32.totalorder %s120, %s123
    %p129 = scmp.eq.s32.totalorder %s11, 0
    %p130 = por %p128, %p129
    %p131 = scmp.ne.s32.totalorder %s120, %s123
    %p132 = scmp.eq.s32.totalorder %s16, 3
    %p133 = por %p131, %p132
    %p134 = scmp.ne.s32.totalorder %s123, %s124
    %p135 = scmp.eq.s32.totalorder %s16, 0
    %p136 = por %p134, %p135
    %p137 = scmp.ne.s32.totalorder %s123, %s124
    %p138 = scmp.eq.s32.totalorder %s17, 3
    %p139 = por %p137, %p138
    %p141 = scmp.ne.s32.totalorder %s124, %s140
    %p142 = scmp.eq.s32.totalorder %s17, 0
    %p143 = por %p141, %p142
    %p144 = scmp.le.s32.totalorder 1, %s11
    %p145 = scmp.lt.s32.totalorder %s11, 5
    %p146 = pnand %p144, %p145
    %p147 = pneg %p146
    // Predicated region
    $region9: #{resblock3d_forward.6} parent=5 // pred_check
      _
    $region10: #{resblock3d_forward.6} parent=5 // pred_check_branch
      %149 = sbr.rel (%p146) target = $region12
    $region11: #{resblock3d_forward.6} parent=5 // pred_region
      %s150 = ssub.s32 %s11, 1
      // Predicated region
      $region13: #{resblock3d_forward.6} parent=11 // pred_check
        %p151 = pneg %p58
      $region14: #{resblock3d_forward.6} parent=11 // pred_check_branch
        %153 = sbr.rel (%p151) target = $region16
      $region15: #{resblock3d_forward.6} parent=11 // pred_region
        _
      $region16: #{resblock3d_forward.6} parent=11 // pred_fallthru
        _
    $region12: #{resblock3d_forward.6} parent=5 // pred_fallthru
      _
    %p154 = scmp.lt.s32.totalorder %s11, 4
    // Predicated region
    $region17: #{resblock3d_forward.6} parent=5 // pred_check
      %p155 = pneg %p154
    $region18: #{resblock3d_forward.6} parent=5 // pred_check_branch
      %157 = sbr.rel (%p155) target = $region20
    $region19: #{resblock3d_forward.6} parent=5 // pred_region
      // Predicated region
      $region21: #{resblock3d_forward.6} parent=19 // pred_check
        %p158 = pneg %p31
      $region22: #{resblock3d_forward.6} parent=19 // pred_check_branch
        %160 = sbr.rel (%p158) target = $region24
      $region23: #{resblock3d_forward.6} parent=19 // pred_region
        %s161 = smul.u32 32, %s11
        %p162 = scmp.lt.s32.totalorder %s161, 127
        %s163 = scalar_select %p162, %s161, 127
        %s164 = smul.addr %s163, 2
        %s165 = smul.addr %s164, 8
        %s166 = scalar_lea.vmem %s0, %s165
        %s167 = smul.u32 32, %s11
      $region24: #{resblock3d_forward.6} parent=19 // pred_fallthru
        _
    $region20: #{resblock3d_forward.6} parent=5 // pred_fallthru
      _
    %p168 = scmp.le.s32.totalorder 1, %s11
    %p169 = scmp.lt.s32.totalorder %s11, 5
    %p170 = pnand %p168, %p169
    %p171 = pneg %p170
    // Predicated region
    $region25: #{resblock3d_forward.6} parent=5 // pred_check
      _
    $region26: #{resblock3d_forward.6} parent=5 // pred_check_branch
      %173 = sbr.rel (%p170) target = $region28
    $region27: #{resblock3d_forward.6} parent=5 // pred_region
      %s174 = ssub.s32 %s11, 1
      %s175 = smul.u32 32, %s16
      %p176 = scmp.lt.s32.totalorder %s175, 127
      %s177 = scalar_select %p176, %s175, 127
      %s178 = smul.addr %s177, 2
      %s179 = smul.addr %s178, 8
      %s180 = scalar_lea.vmem %s0, %s179
      %p181 = pneg %p37
      %p182 = pneg %p34
      %p183 = pneg %p58
      %p184 = pneg %p55
      %p185 = pneg %p84
      %p186 = pneg %p81
      %s187 = smul.u32 32, %s16
      %p188 = scmp.lt.s32.totalorder %s187, 127
      %s189 = scalar_select %p188, %s187, 127
      %s190 = smul.addr %s189, 8
      %s191 = scalar_lea.vmem %s2, %s190
      %p192 = pneg %p110
      %p193 = pneg %p107
      %p194 = scmp.lt.s32.totalorder %s16, 3
      %s195 = scalar_select %p194, %s16, 3
      %s196 = scalar_lea.vmem %s3, %s195
      %p197 = pneg %p136
      %p198 = pneg %p133
      %p199 = scmp.lt.s32.totalorder %s16, 3
      %s200 = scalar_select %p199, %s16, 3
      %s201 = scalar_lea.vmem %s4, %s200
      %s202 = smul.u32 32, %s16
      %p203 = scmp.lt.s32.totalorder %s202, 127
      %s204 = scalar_select %p203, %s202, 127
      %s205 = smul.addr %s204, 2
      %s206 = smul.addr %s205, 8
      %s207 = scalar_lea.vmem %s0, %s206
      %s208 = smul.u32 32, %s16
      %s209 = smul.u32 32, %s16
      %p210 = scmp.lt.s32.totalorder %s209, 127
      %s211 = scalar_select %p210, %s209, 127
      %s212 = smul.addr %s211, 8
      %s213 = scalar_lea.vmem %s2, %s212
      %s214 = smul.u32 32, %s16
      %p215 = scmp.lt.s32.totalorder %s16, 3
      %s216 = scalar_select %p215, %s16, 3
      %s217 = scalar_lea.vmem %s3, %s216
      %p218 = scmp.lt.s32.totalorder %s16, 3
      %s219 = scalar_select %p218, %s16, 3
      %s220 = scalar_lea.vmem %s4, %s219
      %v221 = vld [vmem:[%s207] sm:$0xff]
      %v222 = vld [vmem:[%s207 + $0x8] sm:$0xff]
      %v223 = vld [vmem:[%s207 + $0x10] sm:$0xff]
      %v224 = vld [vmem:[%s207 + $0x18] sm:$0xff]
      %v225 = vld [vmem:[%s207 + $0x20] sm:$0xff]
      %v226 = vld [vmem:[%s207 + $0x28] sm:$0xff]
      %v227 = vld [vmem:[%s207 + $0x30] sm:$0xff]
      %v228 = vld [vmem:[%s207 + $0x38] sm:$0xff]
      %v229 = vld [vmem:[%s207 + $0x40] sm:$0xff]
      %v230 = vld [vmem:[%s207 + $0x48] sm:$0xff]
      %v231 = vld [vmem:[%s207 + $0x50] sm:$0xff]
      %v232 = vld [vmem:[%s207 + $0x58] sm:$0xff]
      %v233 = vld [vmem:[%s207 + $0x60] sm:$0xff]
      %v234 = vld [vmem:[%s207 + $0x68] sm:$0xff]
      %v235 = vld [vmem:[%s207 + $0x70] sm:$0xff]
      %v236 = vld [vmem:[%s207 + $0x78] sm:$0xff]
      %v237 = vld [vmem:[%s207 + $0x80] sm:$0xff]
      %v238 = vld [vmem:[%s207 + $0x88] sm:$0xff]
      %v239 = vld [vmem:[%s207 + $0x90] sm:$0xff]
      %v240 = vld [vmem:[%s207 + $0x98] sm:$0xff]
      %v241 = vld [vmem:[%s207 + $0xa0] sm:$0xff]
      %v242 = vld [vmem:[%s207 + $0xa8] sm:$0xff]
      %v243 = vld [vmem:[%s207 + $0xb0] sm:$0xff]
      %v244 = vld [vmem:[%s207 + $0xb8] sm:$0xff]
      %v245 = vld [vmem:[%s207 + $0xc0] sm:$0xff]
      %v246 = vld [vmem:[%s207 + $0xc8] sm:$0xff]
      %v247 = vld [vmem:[%s207 + $0xd0] sm:$0xff]
      %v248 = vld [vmem:[%s207 + $0xd8] sm:$0xff]
      %v249 = vld [vmem:[%s207 + $0xe0] sm:$0xff]
      %v250 = vld [vmem:[%s207 + $0xe8] sm:$0xff]
      %v251 = vld [vmem:[%s207 + $0xf0] sm:$0xff]
      %v252 = vld [vmem:[%s207 + $0xf8] sm:$0xff]
      %v253 = vld [vmem:[%s207 + $0x100] sm:$0xff]
      %v254 = vld [vmem:[%s207 + $0x108] sm:$0xff]
      %v255 = vld [vmem:[%s207 + $0x110] sm:$0xff]
      %v256 = vld [vmem:[%s207 + $0x118] sm:$0xff]
      %v257 = vld [vmem:[%s207 + $0x120] sm:$0xff]
      %v258 = vld [vmem:[%s207 + $0x128] sm:$0xff]
      %v259 = vld [vmem:[%s207 + $0x130] sm:$0xff]
      %v260 = vld [vmem:[%s207 + $0x138] sm:$0xff]
      %v261 = vld [vmem:[%s207 + $0x140] sm:$0xff]
      %v262 = vld [vmem:[%s207 + $0x148] sm:$0xff]
      %v263 = vld [vmem:[%s207 + $0x150] sm:$0xff]
      %v264 = vld [vmem:[%s207 + $0x158] sm:$0xff]
      %v265 = vld [vmem:[%s207 + $0x160] sm:$0xff]
      %v266 = vld [vmem:[%s207 + $0x168] sm:$0xff]
      %v267 = vld [vmem:[%s207 + $0x170] sm:$0xff]
      %v268 = vld [vmem:[%s207 + $0x178] sm:$0xff]
      %v269 = vld [vmem:[%s207 + $0x180] sm:$0xff]
      %v270 = vld [vmem:[%s207 + $0x188] sm:$0xff]
      %v271 = vld [vmem:[%s207 + $0x190] sm:$0xff]
      %v272 = vld [vmem:[%s207 + $0x198] sm:$0xff]
      %v273 = vld [vmem:[%s207 + $0x1a0] sm:$0xff]
      %v274 = vld [vmem:[%s207 + $0x1a8] sm:$0xff]
      %v275 = vld [vmem:[%s207 + $0x1b0] sm:$0xff]
      %v276 = vld [vmem:[%s207 + $0x1b8] sm:$0xff]
      %v277 = vld [vmem:[%s207 + $0x1c0] sm:$0xff]
      %v278 = vld [vmem:[%s207 + $0x1c8] sm:$0xff]
      %v279 = vld [vmem:[%s207 + $0x1d0] sm:$0xff]
      %v280 = vld [vmem:[%s207 + $0x1d8] sm:$0xff]
      %v281 = vld [vmem:[%s207 + $0x1e0] sm:$0xff]
      %v282 = vld [vmem:[%s207 + $0x1e8] sm:$0xff]
      %v283 = vld [vmem:[%s207 + $0x1f0] sm:$0xff]
      %v284 = vld [vmem:[%s207 + $0x1f8] sm:$0xff]
      %v285 = vld [vmem:[%s1] sm:$0xff]
      %v286 = vld [vmem:[%s1 + $0x8] sm:$0xff]
      %v287 = vld [vmem:[%s1 + $0x10] sm:$0xff]
      %v288 = vld [vmem:[%s1 + $0x18] sm:$0xff]
      %v289 = vld [vmem:[%s1 + $0x20] sm:$0xff]
      %v290 = vld [vmem:[%s1 + $0x28] sm:$0xff]
      %v291 = vld [vmem:[%s1 + $0x30] sm:$0xff]
      %v292 = vld [vmem:[%s1 + $0x38] sm:$0xff]
      %v293 = vld [vmem:[%s1 + $0x40] sm:$0xff]
      %v294 = vld [vmem:[%s1 + $0x48] sm:$0xff]
      %v295 = vld [vmem:[%s1 + $0x50] sm:$0xff]
      %v296 = vld [vmem:[%s1 + $0x58] sm:$0xff]
      %v297 = vld [vmem:[%s1 + $0x60] sm:$0xff]
      %v298 = vld [vmem:[%s1 + $0x68] sm:$0xff]
      %v299 = vld [vmem:[%s1 + $0x70] sm:$0xff]
      %v300 = vld [vmem:[%s1 + $0x78] sm:$0xff]
      %v301 = vld [vmem:[%s1 + $0x80] sm:$0xff]
      %v302 = vld [vmem:[%s1 + $0x88] sm:$0xff]
      %v303 = vld [vmem:[%s1 + $0x90] sm:$0xff]
      %v304 = vld [vmem:[%s1 + $0x98] sm:$0xff]
      %v305 = vld [vmem:[%s1 + $0xa0] sm:$0xff]
      %v306 = vld [vmem:[%s1 + $0xa8] sm:$0xff]
      %v307 = vld [vmem:[%s1 + $0xb0] sm:$0xff]
      %v308 = vld [vmem:[%s1 + $0xb8] sm:$0xff]
      %v309 = vld [vmem:[%s1 + $0xc0] sm:$0xff]
      %v310 = vld [vmem:[%s1 + $0xc8] sm:$0xff]
      %v311 = vld [vmem:[%s1 + $0xd0] sm:$0xff]
      %v312 = vld [vmem:[%s1 + $0xd8] sm:$0xff]
      %v313 = vld [vmem:[%s1 + $0xe0] sm:$0xff]
      %v314 = vld [vmem:[%s1 + $0xe8] sm:$0xff]
      %v315 = vld [vmem:[%s1 + $0xf0] sm:$0xff]
      %v316 = vld [vmem:[%s1 + $0xf8] sm:$0xff]
      %317 = vmatprep.subr.mxu0 0.0
      %318 = vmatpush1.msra.mxu0 %v285
      %319 = vmatprep.subr.mxu0 0.0
      %320 = vmatpush1.msra.mxu0 %v286
      %321 = vmatprep.subr.mxu0 0.0
      %322 = vmatpush1.msra.mxu0 %v287
      %323 = vmatprep.subr.mxu0 0.0
      %324 = vmatpush1.msra.mxu0 %v288
      %325 = vmatprep.subr.mxu0 0.0
      %326 = vmatpush1.msra.mxu0 %v289
      %327 = vmatprep.subr.mxu0 0.0
      %328 = vmatpush1.msra.mxu0 %v290
      %329 = vmatprep.subr.mxu0 0.0
      %330 = vmatpush1.msra.mxu0 %v291
      %331 = vmatprep.subr.mxu0 0.0
      %332 = vmatpush1.msra.mxu0 %v292
      %333 = vmatprep.subr.mxu0 0.0
      %334 = vmatpush1.msra.mxu0 %v293
      %335 = vmatprep.subr.mxu0 0.0
      %336 = vmatpush1.msra.mxu0 %v294
      %337 = vmatprep.subr.mxu0 0.0
      %338 = vmatpush1.msra.mxu0 %v295
      %339 = vmatprep.subr.mxu0 0.0
      %340 = vmatpush1.msra.mxu0 %v296
      %341 = vmatprep.subr.mxu0 0.0
      %342 = vmatpush1.msra.mxu0 %v297
      %343 = vmatprep.subr.mxu0 0.0
      %344 = vmatpush1.msra.mxu0 %v298
      %345 = vmatprep.subr.mxu0 0.0
      %346 = vmatpush1.msra.mxu0 %v299
      %347 = vmatprep.subr.mxu0 0.0
      %348 = vmatpush1.msra.mxu0 %v300
      %349 = vmatprep.subr.mxu0 0.0
      %350 = vmatpush1.msra.mxu0 %v301
      %351 = vmatprep.subr.mxu0 0.0
      %352 = vmatpush1.msra.mxu0 %v302
      %353 = vmatprep.subr.mxu0 0.0
      %354 = vmatpush1.msra.mxu0 %v303
      %355 = vmatprep.subr.mxu0 0.0
      %356 = vmatpush1.msra.mxu0 %v304
      %357 = vmatprep.subr.mxu0 0.0
      %358 = vmatpush1.msra.mxu0 %v305
      %359 = vmatprep.subr.mxu0 0.0
      %360 = vmatpush1.msra.mxu0 %v306
      %361 = vmatprep.subr.mxu0 0.0
      %362 = vmatpush1.msra.mxu0 %v307
      %363 = vmatprep.subr.mxu0 0.0
      %364 = vmatpush1.msra.mxu0 %v308
      %365 = vmatprep.subr.mxu0 0.0
      %366 = vmatpush1.msra.mxu0 %v309
      %367 = vmatprep.subr.mxu0 0.0
      %368 = vmatpush1.msra.mxu0 %v310
      %369 = vmatprep.subr.mxu0 0.0
      %370 = vmatpush1.msra.mxu0 %v311
      %371 = vmatprep.subr.mxu0 0.0
      %372 = vmatpush1.msra.mxu0 %v312
      %373 = vmatprep.subr.mxu0 0.0
      %374 = vmatpush1.msra.mxu0 %v313
      %375 = vmatprep.subr.mxu0 0.0
      %376 = vmatpush1.msra.mxu0 %v314
      %377 = vmatprep.subr.mxu0 0.0
      %378 = vmatpush1.msra.mxu0 %v315
      %379 = vmatprep.subr.mxu0 0.0
      %380 = vmatpush1.msra.mxu0 %v316
      %381 = vmatprep.mubr.f32.mxu0 %v222
      %382 = vmatmul.mubr.f32.gmra.mrb[0].mxu0 %v221
      %v383 = vpop.f32.mrb[0].mxu0
      %v384 = vadd.f32 0.0, %v383
      %v385 = vpop.f32.mrb[0].mxu0
      %386 = vmatprep.mubr.f32.mxu0 %v224
      %387 = vmatmul.mubr.f32.gmra.mrb[0].mxu0 %v223
      %v388 = vpop.f32.mrb[0].mxu0
      %v389 = vadd.f32 0.0, %v388
      %v390 = vpop.f32.mrb[0].mxu0
      %391 = vmatprep.mubr.f32.mxu0 %v226
      %392 = vmatmul.mubr.f32.gmra.mrb[0].mxu0 %v225
      %v393 = vpop.f32.mrb[0].mxu0
      %v394 = vadd.f32 0.0, %v393
      %v395 = vpop.f32.mrb[0].mxu0
      %396 = vmatprep.mubr.f32.mxu0 %v228
      %397 = vmatmul.mubr.f32.gmra.mrb[0].mxu0 %v227
      %v398 = vpop.f32.mrb[0].mxu0
      %v399 = vadd.f32 0.0, %v398
      %v400 = vpop.f32.mrb[0].mxu0
      %401 = vmatprep.mubr.f32.mxu0 %v230
      %402 = vmatmul.mubr.f32.gmra.mrb[0].mxu0 %v229
      %v403 = vpop.f32.mrb[0].mxu0
      %v404 = vadd.f32 0.0, %v403
      %v405 = vpop.f32.mrb[0].mxu0
      %406 = vmatprep.mubr.f32.mxu0 %v232
      %407 = vmatmul.mubr.f32.gmra.mrb[0].mxu0 %v231
      %v408 = vpop.f32.mrb[0].mxu0
      %v409 = vadd.f32 0.0, %v408
      %v410 = vpop.f32.mrb[0].mxu0
      %411 = vmatprep.mubr.f32.mxu0 %v234
      %412 = vmatmul.mubr.f32.gmra.mrb[0].mxu0 %v233
      %v413 = vpop.f32.mrb[0].mxu0
      %v414 = vadd.f32 0.0, %v413
      %v415 = vpop.f32.mrb[0].mxu0
      %416 = vmatprep.mubr.f32.mxu0 %v236
      %417 = vmatmul.mubr.f32.gmra.mrb[0].mxu0 %v235
      %v418 = vpop.f32.mrb[0].mxu0
      %v419 = vadd.f32 0.0, %v418
      %v420 = vpop.f32.mrb[0].mxu0
      %421 = vmatprep.mubr.f32.mxu0 %v238
      %422 = vmatmul.mubr.f32.gmra.mrb[0].mxu0 %v237
      %v423 = vpop.f32.mrb[0].mxu0
      %v424 = vadd.f32 0.0, %v423
      %v425 = vpop.f32.mrb[0].mxu0
      %426 = vmatprep.mubr.f32.mxu0 %v240
      %427 = vmatmul.mubr.f32.gmra.mrb[0].mxu0 %v239
      %v428 = vpop.f32.mrb[0].mxu0
      %v429 = vadd.f32 0.0, %v428
      %v430 = vpop.f32.mrb[0].mxu0
      %431 = vmatprep.mubr.f32.mxu0 %v242
      %432 = vmatmul.mubr.f32.gmra.mrb[0].mxu0 %v241
      %v433 = vpop.f32.mrb[0].mxu0
      %v434 = vadd.f32 0.0, %v433
      %v435 = vpop.f32.mrb[0].mxu0
      %436 = vmatprep.mubr.f32.mxu0 %v244
      %437 = vmatmul.mubr.f32.gmra.mrb[0].mxu0 %v243
      %v438 = vpop.f32.mrb[0].mxu0
      %v439 = vadd.f32 0.0, %v438
      %v440 = vpop.f32.mrb[0].mxu0
      %441 = vmatprep.mubr.f32.mxu0 %v246
      %442 = vmatmul.mubr.f32.gmra.mrb[0].mxu0 %v245
      %v443 = vpop.f32.mrb[0].mxu0
      %v444 = vadd.f32 0.0, %v443
      %v445 = vpop.f32.mrb[0].mxu0
      %446 = vmatprep.mubr.f32.mxu0 %v248
      %447 = vmatmul.mubr.f32.gmra.mrb[0].mxu0 %v247
      %v448 = vpop.f32.mrb[0].mxu0
      %v449 = vadd.f32 0.0, %v448
      %v450 = vpop.f32.mrb[0].mxu0
      %451 = vmatprep.mubr.f32.mxu0 %v250
      %452 = vmatmul.mubr.f32.gmra.mrb[0].mxu0 %v249
      %v453 = vpop.f32.mrb[0].mxu0
      %v454 = vadd.f32 0.0, %v453
      %v455 = vpop.f32.mrb[0].mxu0
      %456 = vmatprep.mubr.f32.mxu0 %v252
      %457 = vmatmul.mubr.f32.gmra.mrb[0].mxu0 %v251
      %v458 = vpop.f32.mrb[0].mxu0
      %v459 = vadd.f32 0.0, %v458
      %v460 = vpop.f32.mrb[0].mxu0
      %461 = vmatprep.mubr.f32.mxu0 %v254
      %462 = vmatmul.mubr.f32.gmra.mrb[0].mxu0 %v253
      %v463 = vpop.f32.mrb[0].mxu0
      %v464 = vadd.f32 0.0, %v463
      %v465 = vpop.f32.mrb[0].mxu0
      %466 = vmatprep.mubr.f32.mxu0 %v256
      %467 = vmatmul.mubr.f32.gmra.mrb[0].mxu0 %v255
      %v468 = vpop.f32.mrb[0].mxu0
      %v469 = vadd.f32 0.0, %v468
      %v470 = vpop.f32.mrb[0].mxu0
      %471 = vmatprep.mubr.f32.mxu0 %v258
      %472 = vmatmul.mubr.f32.gmra.mrb[0].mxu0 %v257
      %v473 = vpop.f32.mrb[0].mxu0
      %v474 = vadd.f32 0.0, %v473
      %v475 = vpop.f32.mrb[0].mxu0
      %476 = vmatprep.mubr.f32.mxu0 %v260
      %477 = vmatmul.mubr.f32.gmra.mrb[0].mxu0 %v259
      %v478 = vpop.f32.mrb[0].mxu0
      %v479 = vadd.f32 0.0, %v478
      %v480 = vpop.f32.mrb[0].mxu0
      %481 = vmatprep.mubr.f32.mxu0 %v262
      %482 = vmatmul.mubr.f32.gmra.mrb[0].mxu0 %v261
      %v483 = vpop.f32.mrb[0].mxu0
      %v484 = vadd.f32 0.0, %v483
      %v485 = vpop.f32.mrb[0].mxu0
      %486 = vmatprep.mubr.f32.mxu0 %v264
      %487 = vmatmul.mubr.f32.gmra.mrb[0].mxu0 %v263
      %v488 = vpop.f32.mrb[0].mxu0
      %v489 = vadd.f32 0.0, %v488
      %v490 = vpop.f32.mrb[0].mxu0
      %491 = vmatprep.mubr.f32.mxu0 %v266
      %492 = vmatmul.mubr.f32.gmra.mrb[0].mxu0 %v265
      %v493 = vpop.f32.mrb[0].mxu0
      %v494 = vadd.f32 0.0, %v493
      %v495 = vpop.f32.mrb[0].mxu0
      %496 = vmatprep.mubr.f32.mxu0 %v268
      %497 = vmatmul.mubr.f32.gmra.mrb[0].mxu0 %v267
      %v498 = vpop.f32.mrb[0].mxu0
      %v499 = vadd.f32 0.0, %v498
      %v500 = vpop.f32.mrb[0].mxu0
      %501 = vmatprep.mubr.f32.mxu0 %v270
      %502 = vmatmul.mubr.f32.gmra.mrb[0].mxu0 %v269
      %v503 = vpop.f32.mrb[0].mxu0
      %v504 = vadd.f32 0.0, %v503
      %v505 = vpop.f32.mrb[0].mxu0
      %506 = vmatprep.mubr.f32.mxu0 %v272
      %507 = vmatmul.mubr.f32.gmra.mrb[0].mxu0 %v271
      %v508 = vpop.f32.mrb[0].mxu0
      %v509 = vadd.f32 0.0, %v508
      %v510 = vpop.f32.mrb[0].mxu0
      %511 = vmatprep.mubr.f32.mxu0 %v274
      %512 = vmatmul.mubr.f32.gmra.mrb[0].mxu0 %v273
      %v513 = vpop.f32.mrb[0].mxu0
      %v514 = vadd.f32 0.0, %v513
      %v515 = vpop.f32.mrb[0].mxu0
      %516 = vmatprep.mubr.f32.mxu0 %v276
      %517 = vmatmul.mubr.f32.gmra.mrb[0].mxu0 %v275
      %v518 = vpop.f32.mrb[0].mxu0
      %v519 = vadd.f32 0.0, %v518
      %v520 = vpop.f32.mrb[0].mxu0
      %521 = vmatprep.mubr.f32.mxu0 %v278
      %522 = vmatmul.mubr.f32.gmra.mrb[0].mxu0 %v277
      %v523 = vpop.f32.mrb[0].mxu0
      %v524 = vadd.f32 0.0, %v523
      %v525 = vpop.f32.mrb[0].mxu0
      %526 = vmatprep.mubr.f32.mxu0 %v280
      %527 = vmatmul.mubr.f32.gmra.mrb[0].mxu0 %v279
      %v528 = vpop.f32.mrb[0].mxu0
      %v529 = vadd.f32 0.0, %v528
      %v530 = vpop.f32.mrb[0].mxu0
      %531 = vmatprep.mubr.f32.mxu0 %v282
      %532 = vmatmul.mubr.f32.gmra.mrb[0].mxu0 %v281
      %v533 = vpop.f32.mrb[0].mxu0
      %v534 = vadd.f32 0.0, %v533
      %v535 = vpop.f32.mrb[0].mxu0
      %536 = vmatprep.mubr.f32.mxu0 %v284
      %537 = vmatmul.mubr.f32.gmra.mrb[0].mxu0 %v283
      %v538 = vpop.f32.mrb[0].mxu0
      %v539 = vadd.f32 0.0, %v538
      %v540 = vpop.f32.mrb[0].mxu0
      %541 = vdwg.mxu0
      %542 = vst [vmem:[%s213] sm:$0xff] %v384
      %543 = vst [vmem:[%s213 + $0x8] sm:$0xff] %v389
      %544 = vst [vmem:[%s213 + $0x10] sm:$0xff] %v394
      %545 = vst [vmem:[%s213 + $0x18] sm:$0xff] %v399
      %546 = vst [vmem:[%s213 + $0x20] sm:$0xff] %v404
      %547 = vst [vmem:[%s213 + $0x28] sm:$0xff] %v409
      %548 = vst [vmem:[%s213 + $0x30] sm:$0xff] %v414
      %549 = vst [vmem:[%s213 + $0x38] sm:$0xff] %v419
      %550 = vst [vmem:[%s213 + $0x40] sm:$0xff] %v424
      %551 = vst [vmem:[%s213 + $0x48] sm:$0xff] %v429
      %552 = vst [vmem:[%s213 + $0x50] sm:$0xff] %v434
      %553 = vst [vmem:[%s213 + $0x58] sm:$0xff] %v439
      %554 = vst [vmem:[%s213 + $0x60] sm:$0xff] %v444
      %555 = vst [vmem:[%s213 + $0x68] sm:$0xff] %v449
      %556 = vst [vmem:[%s213 + $0x70] sm:$0xff] %v454
      %557 = vst [vmem:[%s213 + $0x78] sm:$0xff] %v459
      %558 = vst [vmem:[%s213 + $0x80] sm:$0xff] %v464
      %559 = vst [vmem:[%s213 + $0x88] sm:$0xff] %v469
      %560 = vst [vmem:[%s213 + $0x90] sm:$0xff] %v474
      %561 = vst [vmem:[%s213 + $0x98] sm:$0xff] %v479
      %562 = vst [vmem:[%s213 + $0xa0] sm:$0xff] %v484
      %563 = vst [vmem:[%s213 + $0xa8] sm:$0xff] %v489
      %564 = vst [vmem:[%s213 + $0xb0] sm:$0xff] %v494
      %565 = vst [vmem:[%s213 + $0xb8] sm:$0xff] %v499
      %566 = vst [vmem:[%s213 + $0xc0] sm:$0xff] %v504
      %567 = vst [vmem:[%s213 + $0xc8] sm:$0xff] %v509
      %568 = vst [vmem:[%s213 + $0xd0] sm:$0xff] %v514
      %569 = vst [vmem:[%s213 + $0xd8] sm:$0xff] %v519
      %570 = vst [vmem:[%s213 + $0xe0] sm:$0xff] %v524
      %571 = vst [vmem:[%s213 + $0xe8] sm:$0xff] %v529
      %572 = vst [vmem:[%s213 + $0xf0] sm:$0xff] %v534
      %573 = vst [vmem:[%s213 + $0xf8] sm:$0xff] %v539
      %v574 = vadd.f32 %v384, %v389
      %v575 = vadd.f32 %v574, %v394
      %v576 = vadd.f32 %v575, %v399
      %v577 = vadd.f32 %v576, %v404
      %v578 = vadd.f32 %v577, %v409
      %v579 = vadd.f32 %v578, %v414
      %v580 = vadd.f32 %v579, %v419
      %v581 = vadd.f32 %v580, %v424
      %v582 = vadd.f32 %v581, %v429
      %v583 = vadd.f32 %v582, %v434
      %v584 = vadd.f32 %v583, %v439
      %v585 = vadd.f32 %v584, %v444
      %v586 = vadd.f32 %v585, %v449
      %v587 = vadd.f32 %v586, %v454
      %v588 = vadd.f32 %v587, %v459
      %v589 = vadd.f32 %v588, %v464
      %v590 = vadd.f32 %v589, %v469
      %v591 = vadd.f32 %v590, %v474
      %v592 = vadd.f32 %v591, %v479
      %v593 = vadd.f32 %v592, %v484
      %v594 = vadd.f32 %v593, %v489
      %v595 = vadd.f32 %v594, %v494
      %v596 = vadd.f32 %v595, %v499
      %v597 = vadd.f32 %v596, %v504
      %v598 = vadd.f32 %v597, %v509
      %v599 = vadd.f32 %v598, %v514
      %v600 = vadd.f32 %v599, %v519
      %v601 = vadd.f32 %v600, %v524
      %v602 = vadd.f32 %v601, %v529
      %v603 = vadd.f32 %v602, %v534
      %v604 = vadd.f32 %v603, %v539
      %v605 = vrot.slane %v604, 4
      %v606 = vadd.f32 %v604, %v605
      %v607 = vrot.slane %v606, 2
      %v608 = vadd.f32 %v606, %v607
      %v609 = vrot.slane %v608, 1
      %v610 = vadd.f32 %v608, %v609
      %611 = vst [vmem:[%s217] sm:$0x1] %v610
      %v612 = vmul.f32 %v384, %v384
      %v613 = vmul.f32 %v389, %v389
      %v614 = vmul.f32 %v394, %v394
      %v615 = vmul.f32 %v399, %v399
      %v616 = vmul.f32 %v404, %v404
      %v617 = vmul.f32 %v409, %v409
      %v618 = vmul.f32 %v414, %v414
      %v619 = vmul.f32 %v419, %v419
      %v620 = vmul.f32 %v424, %v424
      %v621 = vmul.f32 %v429, %v429
      %v622 = vmul.f32 %v434, %v434
      %v623 = vmul.f32 %v439, %v439
      %v624 = vmul.f32 %v444, %v444
      %v625 = vmul.f32 %v449, %v449
      %v626 = vmul.f32 %v454, %v454
      %v627 = vmul.f32 %v459, %v459
      %v628 = vmul.f32 %v464, %v464
      %v629 = vmul.f32 %v469, %v469
      %v630 = vmul.f32 %v474, %v474
      %v631 = vmul.f32 %v479, %v479
      %v632 = vmul.f32 %v484, %v484
      %v633 = vmul.f32 %v489, %v489
      %v634 = vmul.f32 %v494, %v494
      %v635 = vmul.f32 %v499, %v499
      %v636 = vmul.f32 %v504, %v504
      %v637 = vmul.f32 %v509, %v509
      %v638 = vmul.f32 %v514, %v514
      %v639 = vmul.f32 %v519, %v519
      %v640 = vmul.f32 %v524, %v524
      %v641 = vmul.f32 %v529, %v529
      %v642 = vmul.f32 %v534, %v534
      %v643 = vmul.f32 %v539, %v539
      %v644 = vadd.f32 %v612, %v613
      %v645 = vadd.f32 %v644, %v614
      %v646 = vadd.f32 %v645, %v615
      %v647 = vadd.f32 %v646, %v616
      %v648 = vadd.f32 %v647, %v617
      %v649 = vadd.f32 %v648, %v618
      %v650 = vadd.f32 %v649, %v619
      %v651 = vadd.f32 %v650, %v620
      %v652 = vadd.f32 %v651, %v621
      %v653 = vadd.f32 %v652, %v622
      %v654 = vadd.f32 %v653, %v623
      %v655 = vadd.f32 %v654, %v624
      %v656 = vadd.f32 %v655, %v625
      %v657 = vadd.f32 %v656, %v626
      %v658 = vadd.f32 %v657, %v627
      %v659 = vadd.f32 %v658, %v628
      %v660 = vadd.f32 %v659, %v629
      %v661 = vadd.f32 %v660, %v630
      %v662 = vadd.f32 %v661, %v631
      %v663 = vadd.f32 %v662, %v632
      %v664 = vadd.f32 %v663, %v633
      %v665 = vadd.f32 %v664, %v634
      %v666 = vadd.f32 %v665, %v635
      %v667 = vadd.f32 %v666, %v636
      %v668 = vadd.f32 %v667, %v637
      %v669 = vadd.f32 %v668, %v638
      %v670 = vadd.f32 %v669, %v639
      %v671 = vadd.f32 %v670, %v640
      %v672 = vadd.f32 %v671, %v641
      %v673 = vadd.f32 %v672, %v642
      %v674 = vadd.f32 %v673, %v643
      %v675 = vrot.slane %v674, 4
      %v676 = vadd.f32 %v674, %v675
      %v677 = vrot.slane %v676, 2
      %v678 = vadd.f32 %v676, %v677
      %v679 = vrot.slane %v678, 1
      %v680 = vadd.f32 %v678, %v679
      %681 = vst [vmem:[%s220] sm:$0x1] %v680
      %s682 = smul.u32 32, %s16
      %p683 = scmp.lt.s32.totalorder %s682, 127
      %s684 = scalar_select %p683, %s682, 127
      %s685 = smul.addr %s684, 8
      %s686 = scalar_lea.vmem %s2, %s685
      %p687 = scmp.lt.s32.totalorder %s16, 3
      %s688 = scalar_select %p687, %s16, 3
      %s689 = scalar_lea.vmem %s3, %s688
      %p690 = scmp.lt.s32.totalorder %s16, 3
      %s691 = scalar_select %p690, %s16, 3
      %s692 = scalar_lea.vmem %s4, %s691
      // Predicated region
      $region29: #{resblock3d_forward.6} parent=27 // pred_check
        %p693 = pneg %p81
      $region30: #{resblock3d_forward.6} parent=27 // pred_check_branch
        %695 = sbr.rel (%p693) target = $region32
      $region31: #{resblock3d_forward.6} parent=27 // pred_region
        %s696 = smul.u32 32, %s16
      $region32: #{resblock3d_forward.6} parent=27 // pred_fallthru
        _
      // Predicated region
      $region33: #{resblock3d_forward.6} parent=27 // pred_check
        %p697 = pneg %p107
      $region34: #{resblock3d_forward.6} parent=27 // pred_check_branch
        %699 = sbr.rel (%p697) target = $region36
      $region35: #{resblock3d_forward.6} parent=27 // pred_region
        _
      $region36: #{resblock3d_forward.6} parent=27 // pred_fallthru
        _
      // Predicated region
      $region37: #{resblock3d_forward.6} parent=27 // pred_check
        %p700 = pneg %p133
      $region38: #{resblock3d_forward.6} parent=27 // pred_check_branch
        %702 = sbr.rel (%p700) target = $region40
      $region39: #{resblock3d_forward.6} parent=27 // pred_region
        _
      $region40: #{resblock3d_forward.6} parent=27 // pred_fallthru
        _
    $region28: #{resblock3d_forward.6} parent=5 // pred_fallthru
      _
    %p703 = scmp.le.s32.totalorder 2, %s11
    // Predicated region
    $region41: #{resblock3d_forward.6} parent=5 // pred_check
      %p704 = pneg %p703
    $region42: #{resblock3d_forward.6} parent=5 // pred_check_branch
      %706 = sbr.rel (%p704) target = $region44
    $region43: #{resblock3d_forward.6} parent=5 // pred_region
      %s707 = ssub.s32 %s11, 2
      // Predicated region
      $region45: #{resblock3d_forward.6} parent=43 // pred_check
        %p708 = pneg %p87
      $region46: #{resblock3d_forward.6} parent=43 // pred_check_branch
        %710 = sbr.rel (%p708) target = $region48
      $region47: #{resblock3d_forward.6} parent=43 // pred_region
        %s711 = smul.u32 32, %s17
        %p712 = scmp.lt.s32.totalorder %s711, 127
        %s713 = scalar_select %p712, %s711, 127
        %s714 = smul.addr %s713, 8
        %s715 = scalar_lea.vmem %s2, %s714
      $region48: #{resblock3d_forward.6} parent=43 // pred_fallthru
        _
      // Predicated region
      $region49: #{resblock3d_forward.6} parent=43 // pred_check
        %p716 = pneg %p113
      $region50: #{resblock3d_forward.6} parent=43 // pred_check_branch
        %718 = sbr.rel (%p716) target = $region52
      $region51: #{resblock3d_forward.6} parent=43 // pred_region
        %p719 = scmp.lt.s32.totalorder %s17, 3
        %s720 = scalar_select %p719, %s17, 3
        %s721 = scalar_lea.vmem %s3, %s720
      $region52: #{resblock3d_forward.6} parent=43 // pred_fallthru
        _
      // Predicated region
      $region53: #{resblock3d_forward.6} parent=43 // pred_check
        %p722 = pneg %p139
      $region54: #{resblock3d_forward.6} parent=43 // pred_check_branch
        %724 = sbr.rel (%p722) target = $region56
      $region55: #{resblock3d_forward.6} parent=43 // pred_region
        %p725 = scmp.lt.s32.totalorder %s17, 3
        %s726 = scalar_select %p725, %s17, 3
        %s727 = scalar_lea.vmem %s4, %s726
      $region56: #{resblock3d_forward.6} parent=43 // pred_fallthru
        _
    $region44: #{resblock3d_forward.6} parent=5 // pred_fallthru
      _
  $region6: #{resblock3d_forward.6} parent=0 // loop_footer
    %s15 = sadd.s32 1, %s11
  $region7: #{resblock3d_forward.6} parent=0 // loop_footer_branch
    %10 = sbr.rel target = $region3
  $region8: #{resblock3d_forward.6} parent=0 // loop_exit
    _

// kernel: resblock3d_forward.7
$region0: #{resblock3d_forward.7}
  #allocation0 [shape = 'u32[]', space=smem, size = 0x4, offset = 0x4, fixed_abs, tag = 'smem constant byte address 0x4 - core index']
  #allocation1 [shape = 'u32[144,128]{1,0:T(1,128)}', space=vmem, size = 0x12000, scoped, tag = 'internal scratch']
  %s0 = inlined_call_operand.vmem [shape: f32[1024,128], index: 0, kind: input, shape index: {}]
  %s1 = inlined_call_operand.vmem [shape: f32[1024,256], index: 1, kind: input, shape index: {}]
  %s2 = inlined_call_operand.vmem [shape: f32[1,128], index: 2, kind: input, shape index: {}]
  %s3 = inlined_call_operand.vmem [shape: f32[1,128], index: 3, kind: input, shape index: {}]
  %s4 = inlined_call_operand.vmem [shape: f32[1,128], index: 4, kind: input, shape index: {}]
  %s5 = inlined_call_operand.vmem [shape: f32[1,128], index: 5, kind: input, shape index: {}]
  %s6 = inlined_call_operand.vmem [shape: f32[1024,128], index: 6, kind: output, shape index: {}]
  %s7 = sld [smem:[#allocation0]]
  $region95: #{resblock3d_forward.7} parent=0
    _
  %s9 = ssub.s32 1, %s7
  %s10 = scalar_select 0, %s9, %s7
  $region1: #{resblock3d_forward.7} parent=0
    #allocation2 [shape = 'u8[262144]{0}', space=vmem, size = 0x40000, scoped, tag = 'input window, operand 1']
    loop: start=0, step=1, limit=6
    $region2: #{resblock3d_forward.7} parent=1 // loop_pre_header
      _
    $region3: #{resblock3d_forward.7} parent=1 // loop_header
      %s12 = sphi 0, %s16
      %p13 = scmp.ge.s32.totalorder %s12, 6
      %s22 = sphi 0, %s24
      %s25 = sphi 0, %s22
      %s26 = sphi 0, %s25
      %s42 = sphi 0, %s26
      %s48 = sphi 0, %s50
      %s51 = sphi 0, %s48
      %s52 = sphi 0, %s51
      %s68 = sphi 0, %s52
      %s72 = sphi 0, %s72
      %s74 = sphi 0, %s72
      %s75 = sphi 0, %s74
      %s89 = sphi 0, %s75
      %s93 = sphi 0, %s93
      %s95 = sphi 0, %s93
      %s96 = sphi 0, %s95
      %s110 = sphi 0, %s96
      %s114 = sphi 0, %s114
      %s116 = sphi 0, %s114
      %s117 = sphi 0, %s116
      %s131 = sphi 0, %s117
      %s135 = sphi 0, %s135
      %s137 = sphi 0, %s135
      %s138 = sphi 0, %s137
      %s152 = sphi 0, %s138
      %s158 = sphi 0, %s160
      %s161 = sphi 0, %s158
      %s162 = sphi 0, %s161
      %s178 = sphi 0, %s162
    $region4: #{resblock3d_forward.7} parent=1 // loop_header_branch
      %15 = sbr.rel (%p13) target = $region8
    $region5: #{resblock3d_forward.7} parent=1 // loop_body
      %s17 = ssub.s32 %s12, 1
      %s18 = ssub.s32 %s12, 2
      %s19 = sadd.s32 %s12, 1
      %s20 = ssub.s32 %s12, %s19
      %p21 = scmp.eq.s32.totalorder %s20, 0
      %s23 = sadd.s32 %s22, 1
      %s24 = scalar_select %p21, %s22, %s23
      %p27 = pneg %p21
      %p28 = scmp.eq.s32.totalorder %s12, 3
      %p29 = por %p27, %p28
      %p30 = scmp.ne.s32.totalorder %s22, %s25
      %p31 = scmp.eq.s32.totalorder %s12, 0
      %p32 = por %p30, %p31
      %p33 = scmp.ne.s32.totalorder %s22, %s25
      %p34 = scmp.eq.s32.totalorder %s17, 3
      %p35 = por %p33, %p34
      %p36 = scmp.ne.s32.totalorder %s25, %s26
      %p37 = scmp.eq.s32.totalorder %s17, 0
      %p38 = por %p36, %p37
      %p39 = scmp.ne.s32.totalorder %s25, %s26
      %p40 = scmp.eq.s32.totalorder %s18, 3
      %p41 = por %p39, %p40
      %p43 = scmp.ne.s32.totalorder %s26, %s42
      %p44 = scmp.eq.s32.totalorder %s18, 0
      %p45 = por %p43, %p44
      %s46 = ssub.s32 %s12, %s19
      %p47 = scmp.eq.s32.totalorder %s46, 0
      %s49 = sadd.s32 %s48, 1
      %s50 = scalar_select %p47, %s48, %s49
      %p53 = pneg %p47
      %p54 = scmp.eq.s32.totalorder %s12, 3
      %p55 = por %p53, %p54
      %p56 = scmp.ne.s32.totalorder %s48, %s51
      %p57 = scmp.eq.s32.totalorder %s12, 0
      %p58 = por %p56, %p57
      %p59 = scmp.ne.s32.totalorder %s48, %s51
      %p60 = scmp.eq.s32.totalorder %s17, 3
      %p61 = por %p59, %p60
      %p62 = scmp.ne.s32.totalorder %s51, %s52
      %p63 = scmp.eq.s32.totalorder %s17, 0
      %p64 = por %p62, %p63
      %p65 = scmp.ne.s32.totalorder %s51, %s52
      %p66 = scmp.eq.s32.totalorder %s18, 3
      %p67 = por %p65, %p66
      %p69 = scmp.ne.s32.totalorder %s52, %s68
      %p70 = scmp.eq.s32.totalorder %s18, 0
      %p71 = por %p69, %p70
      %s73 = sadd.s32 %s72, 1
      %p76 = scmp.eq.s32.totalorder %s12, 3
      %p77 = scmp.ne.s32.totalorder %s72, %s74
      %p78 = scmp.eq.s32.totalorder %s12, 0
      %p79 = por %p77, %p78
      %p80 = scmp.ne.s32.totalorder %s72, %s74
      %p81 = scmp.eq.s32.totalorder %s17, 3
      %p82 = por %p80, %p81
      %p83 = scmp.ne.s32.totalorder %s74, %s75
      %p84 = scmp.eq.s32.totalorder %s17, 0
      %p85 = por %p83, %p84
      %p86 = scmp.ne.s32.totalorder %s74, %s75
      %p87 = scmp.eq.s32.totalorder %s18, 3
      %p88 = por %p86, %p87
      %p90 = scmp.ne.s32.totalorder %s75, %s89
      %p91 = scmp.eq.s32.totalorder %s18, 0
      %p92 = por %p90, %p91
      %s94 = sadd.s32 %s93, 1
      %p97 = scmp.eq.s32.totalorder %s12, 3
      %p98 = scmp.ne.s32.totalorder %s93, %s95
      %p99 = scmp.eq.s32.totalorder %s12, 0
      %p100 = por %p98, %p99
      %p101 = scmp.ne.s32.totalorder %s93, %s95
      %p102 = scmp.eq.s32.totalorder %s17, 3
      %p103 = por %p101, %p102
      %p104 = scmp.ne.s32.totalorder %s95, %s96
      %p105 = scmp.eq.s32.totalorder %s17, 0
      %p106 = por %p104, %p105
      %p107 = scmp.ne.s32.totalorder %s95, %s96
      %p108 = scmp.eq.s32.totalorder %s18, 3
      %p109 = por %p107, %p108
      %p111 = scmp.ne.s32.totalorder %s96, %s110
      %p112 = scmp.eq.s32.totalorder %s18, 0
      %p113 = por %p111, %p112
      %s115 = sadd.s32 %s114, 1
      %p118 = scmp.eq.s32.totalorder %s12, 3
      %p119 = scmp.ne.s32.totalorder %s114, %s116
      %p120 = scmp.eq.s32.totalorder %s12, 0
      %p121 = por %p119, %p120
      %p122 = scmp.ne.s32.totalorder %s114, %s116
      %p123 = scmp.eq.s32.totalorder %s17, 3
      %p124 = por %p122, %p123
      %p125 = scmp.ne.s32.totalorder %s116, %s117
      %p126 = scmp.eq.s32.totalorder %s17, 0
      %p127 = por %p125, %p126
      %p128 = scmp.ne.s32.totalorder %s116, %s117
      %p129 = scmp.eq.s32.totalorder %s18, 3
      %p130 = por %p128, %p129
      %p132 = scmp.ne.s32.totalorder %s117, %s131
      %p133 = scmp.eq.s32.totalorder %s18, 0
      %p134 = por %p132, %p133
      %s136 = sadd.s32 %s135, 1
      %p139 = scmp.eq.s32.totalorder %s12, 3
      %p140 = scmp.ne.s32.totalorder %s135, %s137
      %p141 = scmp.eq.s32.totalorder %s12, 0
      %p142 = por %p140, %p141
      %p143 = scmp.ne.s32.totalorder %s135, %s137
      %p144 = scmp.eq.s32.totalorder %s17, 3
      %p145 = por %p143, %p144
      %p146 = scmp.ne.s32.totalorder %s137, %s138
      %p147 = scmp.eq.s32.totalorder %s17, 0
      %p148 = por %p146, %p147
      %p149 = scmp.ne.s32.totalorder %s137, %s138
      %p150 = scmp.eq.s32.totalorder %s18, 3
      %p151 = por %p149, %p150
      %p153 = scmp.ne.s32.totalorder %s138, %s152
      %p154 = scmp.eq.s32.totalorder %s18, 0
      %p155 = por %p153, %p154
      %s156 = ssub.s32 %s12, %s19
      %p157 = scmp.eq.s32.totalorder %s156, 0
      %s159 = sadd.s32 %s158, 1
      %s160 = scalar_select %p157, %s158, %s159
      %p163 = pneg %p157
      %p164 = scmp.eq.s32.totalorder %s12, 3
      %p165 = por %p163, %p164
      %p166 = scmp.ne.s32.totalorder %s158, %s161
      %p167 = scmp.eq.s32.totalorder %s12, 0
      %p168 = por %p166, %p167
      %p169 = scmp.ne.s32.totalorder %s158, %s161
      %p170 = scmp.eq.s32.totalorder %s17, 3
      %p171 = por %p169, %p170
      %p172 = scmp.ne.s32.totalorder %s161, %s162
      %p173 = scmp.eq.s32.totalorder %s17, 0
      %p174 = por %p172, %p173
      %p175 = scmp.ne.s32.totalorder %s161, %s162
      %p176 = scmp.eq.s32.totalorder %s18, 3
      %p177 = por %p175, %p176
      %p179 = scmp.ne.s32.totalorder %s162, %s178
      %p180 = scmp.eq.s32.totalorder %s18, 0
      %p181 = por %p179, %p180
      %p182 = scmp.le.s32.totalorder 1, %s12
      %p183 = scmp.lt.s32.totalorder %s12, 5
      %p184 = pnand %p182, %p183
      %p185 = pneg %p184
      // Predicated region
      $region9: #{resblock3d_forward.7} parent=5 // pred_check
        _
      $region10: #{resblock3d_forward.7} parent=5 // pred_check_branch
        %187 = sbr.rel (%p184) target = $region12
      $region11: #{resblock3d_forward.7} parent=5 // pred_region
        %s188 = ssub.s32 %s12, 1
        // Predicated region
        $region13: #{resblock3d_forward.7} parent=11 // pred_check
          %p189 = pneg %p85
        $region14: #{resblock3d_forward.7} parent=11 // pred_check_branch
          %191 = sbr.rel (%p189) target = $region16
        $region15: #{resblock3d_forward.7} parent=11 // pred_region
          _
        $region16: #{resblock3d_forward.7} parent=11 // pred_fallthru
          _
        // Predicated region
        $region17: #{resblock3d_forward.7} parent=11 // pred_check
          %p192 = pneg %p106
        $region18: #{resblock3d_forward.7} parent=11 // pred_check_branch
          %194 = sbr.rel (%p192) target = $region20
        $region19: #{resblock3d_forward.7} parent=11 // pred_region
          _
        $region20: #{resblock3d_forward.7} parent=11 // pred_fallthru
          _
        // Predicated region
        $region21: #{resblock3d_forward.7} parent=11 // pred_check
          %p195 = pneg %p127
        $region22: #{resblock3d_forward.7} parent=11 // pred_check_branch
          %197 = sbr.rel (%p195) target = $region24
        $region23: #{resblock3d_forward.7} parent=11 // pred_region
          _
        $region24: #{resblock3d_forward.7} parent=11 // pred_fallthru
          _
        // Predicated region
        $region25: #{resblock3d_forward.7} parent=11 // pred_check
          %p198 = pneg %p148
        $region26: #{resblock3d_forward.7} parent=11 // pred_check_branch
          %200 = sbr.rel (%p198) target = $region28
        $region27: #{resblock3d_forward.7} parent=11 // pred_region
          _
        $region28: #{resblock3d_forward.7} parent=11 // pred_fallthru
          _
      $region12: #{resblock3d_forward.7} parent=5 // pred_fallthru
        _
      %p201 = scmp.lt.s32.totalorder %s12, 4
      // Predicated region
      $region29: #{resblock3d_forward.7} parent=5 // pred_check
        %p202 = pneg %p201
      $region30: #{resblock3d_forward.7} parent=5 // pred_check_branch
        %204 = sbr.rel (%p202) target = $region32
      $region31: #{resblock3d_forward.7} parent=5 // pred_region
        // Predicated region
        $region33: #{resblock3d_forward.7} parent=31 // pred_check
          %p205 = pneg %p32
        $region34: #{resblock3d_forward.7} parent=31 // pred_check_branch
          %207 = sbr.rel (%p205) target = $region36
        $region35: #{resblock3d_forward.7} parent=31 // pred_region
          %s208 = smul.u32 32, %s12
          %p209 = scmp.lt.s32.totalorder %s208, 127
          %s210 = scalar_select %p209, %s208, 127
          %s211 = smul.addr %s210, 8
          %s212 = scalar_lea.vmem %s0, %s211
          %s213 = smul.u32 32, %s12
        $region36: #{resblock3d_forward.7} parent=31 // pred_fallthru
          _
        // Predicated region
        $region37: #{resblock3d_forward.7} parent=31 // pred_check
          %p214 = pneg %p58
        $region38: #{resblock3d_forward.7} parent=31 // pred_check_branch
          %216 = sbr.rel (%p214) target = $region40
        $region39: #{resblock3d_forward.7} parent=31 // pred_region
          %s217 = sand.u32 %s48, 1
          %s218 = sand.u32 %s48, 1
          %s219 = smul.addr %s218, 256
          %s220 = scalar_lea.vmem [#allocation2], %s219
          %s221 = smul.u32 32, %s12
          %s222 = smul.addr %s221, 2
          %s223 = sadd.s32 1, %s222
          %s224 = smul.addr %s223, 8
          %s225 = scalar_lea.vmem %s1, %s224
          // Predicated region
          $region41: #{resblock3d_forward.7} parent=39 // pred_check
            _
          $region42: #{resblock3d_forward.7} parent=39 // pred_check_branch
            %227 = sbr.rel (0) target = $region44
          $region43: #{resblock3d_forward.7} parent=39 // pred_region
            // Predicated region
            $region45: #{resblock3d_forward.7} parent=43 // pred_check
              _
            $region46: #{resblock3d_forward.7} parent=43 // pred_check_branch
              %229 = sbr.rel (0) target = $region48
            $region47: #{resblock3d_forward.7} parent=43 // pred_region
              // Predicated region
              $region60: #{resblock3d_forward.7} parent=47 // pred_check
                _
              $region61: #{resblock3d_forward.7} parent=47 // pred_check_branch
                %306 = sbr.rel (0) target = $region63
              $region62: #{resblock3d_forward.7} parent=47 // pred_region
                loop: start=0, step=1, limit=1
                $region64: #{resblock3d_forward.7} parent=62 // loop_pre_header
                  _
                $region65: #{resblock3d_forward.7} parent=62 // loop_header
                  %s308 = sphi 0, %s312
                  %p309 = scmp.ge.s32.totalorder %s308, 1
                  %s313 = sphi %s225, %s225
                  %s314 = sphi %s220, %s220
                $region66: #{resblock3d_forward.7} parent=62 // loop_header_branch
                  %311 = sbr.rel (%p309) target = $region70
                $region67: #{resblock3d_forward.7} parent=62 // loop_body
                  %v315 = vld [vmem:[%s313] sm:$0xff]
                  %316 = vst [vmem:[%s314] sm:$0xff] %v315
                  %v317 = vld [vmem:[%s313 + $0x10] sm:$0xff]
                  %318 = vst [vmem:[%s314 + $0x8] sm:$0xff] %v317
                  %v319 = vld [vmem:[%s313 + $0x20] sm:$0xff]
                  %320 = vst [vmem:[%s314 + $0x10] sm:$0xff] %v319
                  %v321 = vld [vmem:[%s313 + $0x30] sm:$0xff]
                  %322 = vst [vmem:[%s314 + $0x18] sm:$0xff] %v321
                  %v323 = vld [vmem:[%s313 + $0x40] sm:$0xff]
                  %324 = vst [vmem:[%s314 + $0x20] sm:$0xff] %v323
                  %v325 = vld [vmem:[%s313 + $0x50] sm:$0xff]
                  %326 = vst [vmem:[%s314 + $0x28] sm:$0xff] %v325
                  %v327 = vld [vmem:[%s313 + $0x60] sm:$0xff]
                  %328 = vst [vmem:[%s314 + $0x30] sm:$0xff] %v327
                  %v329 = vld [vmem:[%s313 + $0x70] sm:$0xff]
                  %330 = vst [vmem:[%s314 + $0x38] sm:$0xff] %v329
                  %v331 = vld [vmem:[%s313 + $0x80] sm:$0xff]
                  %332 = vst [vmem:[%s314 + $0x40] sm:$0xff] %v331
                  %v333 = vld [vmem:[%s313 + $0x90] sm:$0xff]
                  %334 = vst [vmem:[%s314 + $0x48] sm:$0xff] %v333
                  %v335 = vld [vmem:[%s313 + $0xa0] sm:$0xff]
                  %336 = vst [vmem:[%s314 + $0x50] sm:$0xff] %v335
                  %v337 = vld [vmem:[%s313 + $0xb0] sm:$0xff]
                  %338 = vst [vmem:[%s314 + $0x58] sm:$0xff] %v337
                  %v339 = vld [vmem:[%s313 + $0xc0] sm:$0xff]
                  %340 = vst [vmem:[%s314 + $0x60] sm:$0xff] %v339
                  %v341 = vld [vmem:[%s313 + $0xd0] sm:$0xff]
                  %342 = vst [vmem:[%s314 + $0x68] sm:$0xff] %v341
                  %v343 = vld [vmem:[%s313 + $0xe0] sm:$0xff]
                  %344 = vst [vmem:[%s314 + $0x70] sm:$0xff] %v343
                  %v345 = vld [vmem:[%s313 + $0xf0] sm:$0xff]
                  %346 = vst [vmem:[%s314 + $0x78] sm:$0xff] %v345
                  %v347 = vld [vmem:[%s313 + $0x100] sm:$0xff]
                  %348 = vst [vmem:[%s314 + $0x80] sm:$0xff] %v347
                  %v349 = vld [vmem:[%s313 + $0x110] sm:$0xff]
                  %350 = vst [vmem:[%s314 + $0x88] sm:$0xff] %v349
                  %v351 = vld [vmem:[%s313 + $0x120] sm:$0xff]
                  %352 = vst [vmem:[%s314 + $0x90] sm:$0xff] %v351
                  %v353 = vld [vmem:[%s313 + $0x130] sm:$0xff]
                  %354 = vst [vmem:[%s314 + $0x98] sm:$0xff] %v353
                  %v355 = vld [vmem:[%s313 + $0x140] sm:$0xff]
                  %356 = vst [vmem:[%s314 + $0xa0] sm:$0xff] %v355
                  %v357 = vld [vmem:[%s313 + $0x150] sm:$0xff]
                  %358 = vst [vmem:[%s314 + $0xa8] sm:$0xff] %v357
                  %v359 = vld [vmem:[%s313 + $0x160] sm:$0xff]
                  %360 = vst [vmem:[%s314 + $0xb0] sm:$0xff] %v359
                  %v361 = vld [vmem:[%s313 + $0x170] sm:$0xff]
                  %362 = vst [vmem:[%s314 + $0xb8] sm:$0xff] %v361
                  %v363 = vld [vmem:[%s313 + $0x180] sm:$0xff]
                  %364 = vst [vmem:[%s314 + $0xc0] sm:$0xff] %v363
                  %v365 = vld [vmem:[%s313 + $0x190] sm:$0xff]
                  %366 = vst [vmem:[%s314 + $0xc8] sm:$0xff] %v365
                  %v367 = vld [vmem:[%s313 + $0x1a0] sm:$0xff]
                  %368 = vst [vmem:[%s314 + $0xd0] sm:$0xff] %v367
                  %v369 = vld [vmem:[%s313 + $0x1b0] sm:$0xff]
                  %370 = vst [vmem:[%s314 + $0xd8] sm:$0xff] %v369
                  %v371 = vld [vmem:[%s313 + $0x1c0] sm:$0xff]
                  %372 = vst [vmem:[%s314 + $0xe0] sm:$0xff] %v371
                  %v373 = vld [vmem:[%s313 + $0x1d0] sm:$0xff]
                  %374 = vst [vmem:[%s314 + $0xe8] sm:$0xff] %v373
                  %v375 = vld [vmem:[%s313 + $0x1e0] sm:$0xff]
                  %376 = vst [vmem:[%s314 + $0xf0] sm:$0xff] %v375
                  %v377 = vld [vmem:[%s313 + $0x1f0] sm:$0xff]
                  %378 = vst [vmem:[%s314 + $0xf8] sm:$0xff] %v377
                $region68: #{resblock3d_forward.7} parent=62 // loop_footer
                  %s312 = sadd.s32 1, %s308
                $region69: #{resblock3d_forward.7} parent=62 // loop_footer_branch
                  %307 = sbr.rel target = $region65
                $region70: #{resblock3d_forward.7} parent=62 // loop_exit
                  _
              $region63: #{resblock3d_forward.7} parent=47 // pred_fallthru
                _
              // Predicated region
              $region71: #{resblock3d_forward.7} parent=47 // pred_check
                _
              $region72: #{resblock3d_forward.7} parent=47 // pred_check_branch
                %380 = sbr.rel target = $region74
              $region73: #{resblock3d_forward.7} parent=47 // pred_region
                _
              $region74: #{resblock3d_forward.7} parent=47 // pred_fallthru
                _
            $region48: #{resblock3d_forward.7} parent=43 // pred_fallthru
              _
            // Predicated region
            $region49: #{resblock3d_forward.7} parent=43 // pred_check
              _
            $region50: #{resblock3d_forward.7} parent=43 // pred_check_branch
              %231 = sbr.rel target = $region52
            $region51: #{resblock3d_forward.7} parent=43 // pred_region
              loop: start=0, step=1, limit=1
              $region53: #{resblock3d_forward.7} parent=51 // loop_pre_header
                _
              $region54: #{resblock3d_forward.7} parent=51 // loop_header
                %s234 = sphi 0, %s238
                %p235 = scmp.ge.s32.totalorder %s234, 1
                %s239 = sphi %s225, %s225
                %s240 = sphi %s220, %s220
              $region55: #{resblock3d_forward.7} parent=51 // loop_header_branch
                %237 = sbr.rel (%p235) target = $region59
              $region56: #{resblock3d_forward.7} parent=51 // loop_body
                %v241 = vld [vmem:[%s239] sm:$0xff]
                %242 = vst [vmem:[%s240] sm:$0xff] %v241
                %v243 = vld [vmem:[%s239 + $0x10] sm:$0xff]
                %244 = vst [vmem:[%s240 + $0x8] sm:$0xff] %v243
                %v245 = vld [vmem:[%s239 + $0x20] sm:$0xff]
                %246 = vst [vmem:[%s240 + $0x10] sm:$0xff] %v245
                %v247 = vld [vmem:[%s239 + $0x30] sm:$0xff]
                %248 = vst [vmem:[%s240 + $0x18] sm:$0xff] %v247
                %v249 = vld [vmem:[%s239 + $0x40] sm:$0xff]
                %250 = vst [vmem:[%s240 + $0x20] sm:$0xff] %v249
                %v251 = vld [vmem:[%s239 + $0x50] sm:$0xff]
                %252 = vst [vmem:[%s240 + $0x28] sm:$0xff] %v251
                %v253 = vld [vmem:[%s239 + $0x60] sm:$0xff]
                %254 = vst [vmem:[%s240 + $0x30] sm:$0xff] %v253
                %v255 = vld [vmem:[%s239 + $0x70] sm:$0xff]
                %256 = vst [vmem:[%s240 + $0x38] sm:$0xff] %v255
                %v257 = vld [vmem:[%s239 + $0x80] sm:$0xff]
                %258 = vst [vmem:[%s240 + $0x40] sm:$0xff] %v257
                %v259 = vld [vmem:[%s239 + $0x90] sm:$0xff]
                %260 = vst [vmem:[%s240 + $0x48] sm:$0xff] %v259
                %v261 = vld [vmem:[%s239 + $0xa0] sm:$0xff]
                %262 = vst [vmem:[%s240 + $0x50] sm:$0xff] %v261
                %v263 = vld [vmem:[%s239 + $0xb0] sm:$0xff]
                %264 = vst [vmem:[%s240 + $0x58] sm:$0xff] %v263
                %v265 = vld [vmem:[%s239 + $0xc0] sm:$0xff]
                %266 = vst [vmem:[%s240 + $0x60] sm:$0xff] %v265
                %v267 = vld [vmem:[%s239 + $0xd0] sm:$0xff]
                %268 = vst [vmem:[%s240 + $0x68] sm:$0xff] %v267
                %v269 = vld [vmem:[%s239 + $0xe0] sm:$0xff]
                %270 = vst [vmem:[%s240 + $0x70] sm:$0xff] %v269
                %v271 = vld [vmem:[%s239 + $0xf0] sm:$0xff]
                %272 = vst [vmem:[%s240 + $0x78] sm:$0xff] %v271
                %v273 = vld [vmem:[%s239 + $0x100] sm:$0xff]
                %274 = vst [vmem:[%s240 + $0x80] sm:$0xff] %v273
                %v275 = vld [vmem:[%s239 + $0x110] sm:$0xff]
                %276 = vst [vmem:[%s240 + $0x88] sm:$0xff] %v275
                %v277 = vld [vmem:[%s239 + $0x120] sm:$0xff]
                %278 = vst [vmem:[%s240 + $0x90] sm:$0xff] %v277
                %v279 = vld [vmem:[%s239 + $0x130] sm:$0xff]
                %280 = vst [vmem:[%s240 + $0x98] sm:$0xff] %v279
                %v281 = vld [vmem:[%s239 + $0x140] sm:$0xff]
                %282 = vst [vmem:[%s240 + $0xa0] sm:$0xff] %v281
                %v283 = vld [vmem:[%s239 + $0x150] sm:$0xff]
                %284 = vst [vmem:[%s240 + $0xa8] sm:$0xff] %v283
                %v285 = vld [vmem:[%s239 + $0x160] sm:$0xff]
                %286 = vst [vmem:[%s240 + $0xb0] sm:$0xff] %v285
                %v287 = vld [vmem:[%s239 + $0x170] sm:$0xff]
                %288 = vst [vmem:[%s240 + $0xb8] sm:$0xff] %v287
                %v289 = vld [vmem:[%s239 + $0x180] sm:$0xff]
                %290 = vst [vmem:[%s240 + $0xc0] sm:$0xff] %v289
                %v291 = vld [vmem:[%s239 + $0x190] sm:$0xff]
                %292 = vst [vmem:[%s240 + $0xc8] sm:$0xff] %v291
                %v293 = vld [vmem:[%s239 + $0x1a0] sm:$0xff]
                %294 = vst [vmem:[%s240 + $0xd0] sm:$0xff] %v293
                %v295 = vld [vmem:[%s239 + $0x1b0] sm:$0xff]
                %296 = vst [vmem:[%s240 + $0xd8] sm:$0xff] %v295
                %v297 = vld [vmem:[%s239 + $0x1c0] sm:$0xff]
                %298 = vst [vmem:[%s240 + $0xe0] sm:$0xff] %v297
                %v299 = vld [vmem:[%s239 + $0x1d0] sm:$0xff]
                %300 = vst [vmem:[%s240 + $0xe8] sm:$0xff] %v299
                %v301 = vld [vmem:[%s239 + $0x1e0] sm:$0xff]
                %302 = vst [vmem:[%s240 + $0xf0] sm:$0xff] %v301
                %v303 = vld [vmem:[%s239 + $0x1f0] sm:$0xff]
                %304 = vst [vmem:[%s240 + $0xf8] sm:$0xff] %v303
              $region57: #{resblock3d_forward.7} parent=51 // loop_footer
                %s238 = sadd.s32 1, %s234
              $region58: #{resblock3d_forward.7} parent=51 // loop_footer_branch
                %233 = sbr.rel target = $region54
              $region59: #{resblock3d_forward.7} parent=51 // loop_exit
                _
            $region52: #{resblock3d_forward.7} parent=43 // pred_fallthru
              _
          $region44: #{resblock3d_forward.7} parent=39 // pred_fallthru
            _
          %381 = vnop
        $region40: #{resblock3d_forward.7} parent=31 // pred_fallthru
          _
      $region32: #{resblock3d_forward.7} parent=5 // pred_fallthru
        _
      %p382 = scmp.le.s32.totalorder 1, %s12
      %p383 = scmp.lt.s32.totalorder %s12, 5
      %p384 = pnand %p382, %p383
      %p385 = pneg %p384
      // Predicated region
      $region75: #{resblock3d_forward.7} parent=5 // pred_check
        _
      $region76: #{resblock3d_forward.7} parent=5 // pred_check_branch
        %387 = sbr.rel (%p384) target = $region78
      $region77: #{resblock3d_forward.7} parent=5 // pred_region
        %s388 = ssub.s32 %s12, 1
        %s389 = sand.u32 %s51, 1
        %s390 = sand.u32 %s51, 1
        %s391 = smul.addr %s390, 256
        %s392 = scalar_lea.vmem [#allocation2], %s391
        // Predicated region
        $region79: #{resblock3d_forward.7} parent=77 // pred_check
          %p393 = pneg %p64
        $region80: #{resblock3d_forward.7} parent=77 // pred_check_branch
          %395 = sbr.rel (%p393) target = $region82
        $region81: #{resblock3d_forward.7} parent=77 // pred_region
          _
        $region82: #{resblock3d_forward.7} parent=77 // pred_fallthru
          _
        %s396 = smul.u32 32, %s17
        %p397 = scmp.lt.s32.totalorder %s396, 127
        %s398 = scalar_select %p397, %s396, 127
        %s399 = smul.addr %s398, 8
        %s400 = scalar_lea.vmem %s0, %s399
        %p401 = pneg %p38
        %p402 = pneg %p35
        %s403 = sand.u32 %s51, 1
        %s404 = sand.u32 %s51, 1
        %s405 = smul.addr %s404, 256
        %s406 = scalar_lea.vmem [#allocation2], %s405
        %p407 = pneg %p64
        %p408 = pneg %p61
        %p409 = pneg %p85
        %p410 = pneg %p82
        %p411 = pneg %p106
        %p412 = pneg %p103
        %p413 = pneg %p127
        %p414 = pneg %p124
        %p415 = pneg %p148
        %p416 = pneg %p145
        %p417 = pneg %p174
        %p418 = pneg %p171
        %s419 = smul.u32 32, %s17
        %p420 = scmp.lt.s32.totalorder %s419, 127
        %s421 = scalar_select %p420, %s419, 127
        %s422 = smul.addr %s421, 8
        %s423 = scalar_lea.vmem %s6, %s422
        %s424 = smul.u32 32, %s17
        %p425 = scmp.lt.s32.totalorder %s424, 127
        %s426 = scalar_select %p425, %s424, 127
        %s427 = smul.addr %s426, 8
        %s428 = scalar_lea.vmem %s0, %s427
        %s429 = smul.u32 32, %s17
        %s430 = smul.u32 32, %s17
        %s431 = smul.u32 32, %s17
        %p432 = scmp.lt.s32.totalorder %s431, 127
        %s433 = scalar_select %p432, %s431, 127
        %s434 = smul.addr %s433, 8
        %s435 = scalar_lea.vmem %s6, %s434
        %s436 = smul.u32 32, %s17
        %v437 = vld [vmem:[%s428] sm:$0xff]
        %v438 = vld [vmem:[%s428 + $0x8] sm:$0xff]
        %v439 = vld [vmem:[%s428 + $0x10] sm:$0xff]
        %v440 = vld [vmem:[%s428 + $0x18] sm:$0xff]
        %v441 = vld [vmem:[%s428 + $0x20] sm:$0xff]
        %v442 = vld [vmem:[%s428 + $0x28] sm:$0xff]
        %v443 = vld [vmem:[%s428 + $0x30] sm:$0xff]
        %v444 = vld [vmem:[%s428 + $0x38] sm:$0xff]
        %v445 = vld [vmem:[%s428 + $0x40] sm:$0xff]
        %v446 = vld [vmem:[%s428 + $0x48] sm:$0xff]
        %v447 = vld [vmem:[%s428 + $0x50] sm:$0xff]
        %v448 = vld [vmem:[%s428 + $0x58] sm:$0xff]
        %v449 = vld [vmem:[%s428 + $0x60] sm:$0xff]
        %v450 = vld [vmem:[%s428 + $0x68] sm:$0xff]
        %v451 = vld [vmem:[%s428 + $0x70] sm:$0xff]
        %v452 = vld [vmem:[%s428 + $0x78] sm:$0xff]
        %v453 = vld [vmem:[%s428 + $0x80] sm:$0xff]
        %v454 = vld [vmem:[%s428 + $0x88] sm:$0xff]
        %v455 = vld [vmem:[%s428 + $0x90] sm:$0xff]
        %v456 = vld [vmem:[%s428 + $0x98] sm:$0xff]
        %v457 = vld [vmem:[%s428 + $0xa0] sm:$0xff]
        %v458 = vld [vmem:[%s428 + $0xa8] sm:$0xff]
        %v459 = vld [vmem:[%s428 + $0xb0] sm:$0xff]
        %v460 = vld [vmem:[%s428 + $0xb8] sm:$0xff]
        %v461 = vld [vmem:[%s428 + $0xc0] sm:$0xff]
        %v462 = vld [vmem:[%s428 + $0xc8] sm:$0xff]
        %v463 = vld [vmem:[%s428 + $0xd0] sm:$0xff]
        %v464 = vld [vmem:[%s428 + $0xd8] sm:$0xff]
        %v465 = vld [vmem:[%s428 + $0xe0] sm:$0xff]
        %v466 = vld [vmem:[%s428 + $0xe8] sm:$0xff]
        %v467 = vld [vmem:[%s428 + $0xf0] sm:$0xff]
        %v468 = vld [vmem:[%s428 + $0xf8] sm:$0xff]
        %v469 = vld [vmem:[%s2] sm:$0x1]
        %v471 = vlaneseq
        %v472 = vshrl.u32 %v471, 7
        %v473 = vsub.s32 0, %v472
        %v474 = vrot.slane %v469, %v473
        %v476 = vmul.f32 %v437, %v474
        %v477 = vmul.f32 %v438, %v474
        %v478 = vmul.f32 %v439, %v474
        %v479 = vmul.f32 %v440, %v474
        %v480 = vmul.f32 %v441, %v474
        %v481 = vmul.f32 %v442, %v474
        %v482 = vmul.f32 %v443, %v474
        %v483 = vmul.f32 %v444, %v474
        %v484 = vmul.f32 %v445, %v474
        %v485 = vmul.f32 %v446, %v474
        %v486 = vmul.f32 %v447, %v474
        %v487 = vmul.f32 %v448, %v474
        %v488 = vmul.f32 %v449, %v474
        %v489 = vmul.f32 %v450, %v474
        %v490 = vmul.f32 %v451, %v474
        %v491 = vmul.f32 %v452, %v474
        %v492 = vmul.f32 %v453, %v474
        %v493 = vmul.f32 %v454, %v474
        %v494 = vmul.f32 %v455, %v474
        %v495 = vmul.f32 %v456, %v474
        %v496 = vmul.f32 %v457, %v474
        %v497 = vmul.f32 %v458, %v474
        %v498 = vmul.f32 %v459, %v474
        %v499 = vmul.f32 %v460, %v474
        %v500 = vmul.f32 %v461, %v474
        %v501 = vmul.f32 %v462, %v474
        %v502 = vmul.f32 %v463, %v474
        %v503 = vmul.f32 %v464, %v474
        %v504 = vmul.f32 %v465, %v474
        %v505 = vmul.f32 %v466, %v474
        %v506 = vmul.f32 %v467, %v474
        %v507 = vmul.f32 %v468, %v474
        %v508 = vld [vmem:[%s3] sm:$0x1]
        %v510 = vlaneseq
        %v511 = vshrl.u32 %v510, 7
        %v512 = vsub.s32 0, %v511
        %v513 = vrot.slane %v508, %v512
        %v515 = vadd.f32 %v476, %v513
        %v516 = vadd.f32 %v477, %v513
        %v517 = vadd.f32 %v478, %v513
        %v518 = vadd.f32 %v479, %v513
        %v519 = vadd.f32 %v480, %v513
        %v520 = vadd.f32 %v481, %v513
        %v521 = vadd.f32 %v482, %v513
        %v522 = vadd.f32 %v483, %v513
        %v523 = vadd.f32 %v484, %v513
        %v524 = vadd.f32 %v485, %v513
        %v525 = vadd.f32 %v486, %v513
        %v526 = vadd.f32 %v487, %v513
        %v527 = vadd.f32 %v488, %v513
        %v528 = vadd.f32 %v489, %v513
        %v529 = vadd.f32 %v490, %v513
        %v530 = vadd.f32 %v491, %v513
        %v531 = vadd.f32 %v492, %v513
        %v532 = vadd.f32 %v493, %v513
        %v533 = vadd.f32 %v494, %v513
        %v534 = vadd.f32 %v495, %v513
        %v535 = vadd.f32 %v496, %v513
        %v536 = vadd.f32 %v497, %v513
        %v537 = vadd.f32 %v498, %v513
        %v538 = vadd.f32 %v499, %v513
        %v539 = vadd.f32 %v500, %v513
        %v540 = vadd.f32 %v501, %v513
        %v541 = vadd.f32 %v502, %v513
        %v542 = vadd.f32 %v503, %v513
        %v543 = vadd.f32 %v504, %v513
        %v544 = vadd.f32 %v505, %v513
        %v545 = vadd.f32 %v506, %v513
        %v546 = vadd.f32 %v507, %v513
        %v547 = vld [vmem:[%s392] sm:$0xff]
        %v548 = vld [vmem:[%s392 + $0x8] sm:$0xff]
        %v549 = vld [vmem:[%s392 + $0x10] sm:$0xff]
        %v550 = vld [vmem:[%s392 + $0x18] sm:$0xff]
        %v551 = vld [vmem:[%s392 + $0x20] sm:$0xff]
        %v552 = vld [vmem:[%s392 + $0x28] sm:$0xff]
        %v553 = vld [vmem:[%s392 + $0x30] sm:$0xff]
        %v554 = vld [vmem:[%s392 + $0x38] sm:$0xff]
        %v555 = vld [vmem:[%s392 + $0x40] sm:$0xff]
        %v556 = vld [vmem:[%s392 + $0x48] sm:$0xff]
        %v557 = vld [vmem:[%s392 + $0x50] sm:$0xff]
        %v558 = vld [vmem:[%s392 + $0x58] sm:$0xff]
        %v559 = vld [vmem:[%s392 + $0x60] sm:$0xff]
        %v560 = vld [vmem:[%s392 + $0x68] sm:$0xff]
        %v561 = vld [vmem:[%s392 + $0x70] sm:$0xff]
        %v562 = vld [vmem:[%s392 + $0x78] sm:$0xff]
        %v563 = vld [vmem:[%s392 + $0x80] sm:$0xff]
        %v564 = vld [vmem:[%s392 + $0x88] sm:$0xff]
        %v565 = vld [vmem:[%s392 + $0x90] sm:$0xff]
        %v566 = vld [vmem:[%s392 + $0x98] sm:$0xff]
        %v567 = vld [vmem:[%s392 + $0xa0] sm:$0xff]
        %v568 = vld [vmem:[%s392 + $0xa8] sm:$0xff]
        %v569 = vld [vmem:[%s392 + $0xb0] sm:$0xff]
        %v570 = vld [vmem:[%s392 + $0xb8] sm:$0xff]
        %v571 = vld [vmem:[%s392 + $0xc0] sm:$0xff]
        %v572 = vld [vmem:[%s392 + $0xc8] sm:$0xff]
        %v573 = vld [vmem:[%s392 + $0xd0] sm:$0xff]
        %v574 = vld [vmem:[%s392 + $0xd8] sm:$0xff]
        %v575 = vld [vmem:[%s392 + $0xe0] sm:$0xff]
        %v576 = vld [vmem:[%s392 + $0xe8] sm:$0xff]
        %v577 = vld [vmem:[%s392 + $0xf0] sm:$0xff]
        %v578 = vld [vmem:[%s392 + $0xf8] sm:$0xff]
        %v579 = vld [vmem:[%s4] sm:$0x1]
        %v581 = vlaneseq
        %v582 = vshrl.u32 %v581, 7
        %v583 = vsub.s32 0, %v582
        %v584 = vrot.slane %v579, %v583
        %v586 = vmul.f32 %v547, %v584
        %v587 = vmul.f32 %v548, %v584
        %v588 = vmul.f32 %v549, %v584
        %v589 = vmul.f32 %v550, %v584
        %v590 = vmul.f32 %v551, %v584
        %v591 = vmul.f32 %v552, %v584
        %v592 = vmul.f32 %v553, %v584
        %v593 = vmul.f32 %v554, %v584
        %v594 = vmul.f32 %v555, %v584
        %v595 = vmul.f32 %v556, %v584
        %v596 = vmul.f32 %v557, %v584
        %v597 = vmul.f32 %v558, %v584
        %v598 = vmul.f32 %v559, %v584
        %v599 = vmul.f32 %v560, %v584
        %v600 = vmul.f32 %v561, %v584
        %v601 = vmul.f32 %v562, %v584
        %v602 = vmul.f32 %v563, %v584
        %v603 = vmul.f32 %v564, %v584
        %v604 = vmul.f32 %v565, %v584
        %v605 = vmul.f32 %v566, %v584
        %v606 = vmul.f32 %v567, %v584
        %v607 = vmul.f32 %v568, %v584
        %v608 = vmul.f32 %v569, %v584
        %v609 = vmul.f32 %v570, %v584
        %v610 = vmul.f32 %v571, %v584
        %v611 = vmul.f32 %v572, %v584
        %v612 = vmul.f32 %v573, %v584
        %v613 = vmul.f32 %v574, %v584
        %v614 = vmul.f32 %v575, %v584
        %v615 = vmul.f32 %v576, %v584
        %v616 = vmul.f32 %v577, %v584
        %v617 = vmul.f32 %v578, %v584
        %v618 = vld [vmem:[%s5] sm:$0x1]
        %v620 = vlaneseq
        %v621 = vshrl.u32 %v620, 7
        %v622 = vsub.s32 0, %v621
        %v623 = vrot.slane %v618, %v622
        %v625 = vadd.f32 %v586, %v623
        %v626 = vadd.f32 %v587, %v623
        %v627 = vadd.f32 %v588, %v623
        %v628 = vadd.f32 %v589, %v623
        %v629 = vadd.f32 %v590, %v623
        %v630 = vadd.f32 %v591, %v623
        %v631 = vadd.f32 %v592, %v623
        %v632 = vadd.f32 %v593, %v623
        %v633 = vadd.f32 %v594, %v623
        %v634 = vadd.f32 %v595, %v623
        %v635 = vadd.f32 %v596, %v623
        %v636 = vadd.f32 %v597, %v623
        %v637 = vadd.f32 %v598, %v623
        %v638 = vadd.f32 %v599, %v623
        %v639 = vadd.f32 %v600, %v623
        %v640 = vadd.f32 %v601, %v623
        %v641 = vadd.f32 %v602, %v623
        %v642 = vadd.f32 %v603, %v623
        %v643 = vadd.f32 %v604, %v623
        %v644 = vadd.f32 %v605, %v623
        %v645 = vadd.f32 %v606, %v623
        %v646 = vadd.f32 %v607, %v623
        %v647 = vadd.f32 %v608, %v623
        %v648 = vadd.f32 %v609, %v623
        %v649 = vadd.f32 %v610, %v623
        %v650 = vadd.f32 %v611, %v623
        %v651 = vadd.f32 %v612, %v623
        %v652 = vadd.f32 %v613, %v623
        %v653 = vadd.f32 %v614, %v623
        %v654 = vadd.f32 %v615, %v623
        %v655 = vadd.f32 %v616, %v623
        %v656 = vadd.f32 %v617, %v623
        %v657 = vadd.f32 %v515, %v625
        %v658 = vadd.f32 %v516, %v626
        %v659 = vadd.f32 %v517, %v627
        %v660 = vadd.f32 %v518, %v628
        %v661 = vadd.f32 %v519, %v629
        %v662 = vadd.f32 %v520, %v630
        %v663 = vadd.f32 %v521, %v631
        %v664 = vadd.f32 %v522, %v632
        %v665 = vadd.f32 %v523, %v633
        %v666 = vadd.f32 %v524, %v634
        %v667 = vadd.f32 %v525, %v635
        %v668 = vadd.f32 %v526, %v636
        %v669 = vadd.f32 %v527, %v637
        %v670 = vadd.f32 %v528, %v638
        %v671 = vadd.f32 %v529, %v639
        %v672 = vadd.f32 %v530, %v640
        %v673 = vadd.f32 %v531, %v641
        %v674 = vadd.f32 %v532, %v642
        %v675 = vadd.f32 %v533, %v643
        %v676 = vadd.f32 %v534, %v644
        %v677 = vadd.f32 %v535, %v645
        %v678 = vadd.f32 %v536, %v646
        %v679 = vadd.f32 %v537, %v647
        %v680 = vadd.f32 %v538, %v648
        %v681 = vadd.f32 %v539, %v649
        %v682 = vadd.f32 %v540, %v650
        %v683 = vadd.f32 %v541, %v651
        %v684 = vadd.f32 %v542, %v652
        %v685 = vadd.f32 %v543, %v653
        %v686 = vadd.f32 %v544, %v654
        %v687 = vadd.f32 %v545, %v655
        %v688 = vadd.f32 %v546, %v656
        %v689 = vmax.f32 %v657, 0.0
        %v690 = vmax.f32 %v658, 0.0
        %v691 = vmax.f32 %v659, 0.0
        %v692 = vmax.f32 %v660, 0.0
        %v693 = vmax.f32 %v661, 0.0
        %v694 = vmax.f32 %v662, 0.0
        %v695 = vmax.f32 %v663, 0.0
        %v696 = vmax.f32 %v664, 0.0
        %v697 = vmax.f32 %v665, 0.0
        %v698 = vmax.f32 %v666, 0.0
        %v699 = vmax.f32 %v667, 0.0
        %v700 = vmax.f32 %v668, 0.0
        %v701 = vmax.f32 %v669, 0.0
        %v702 = vmax.f32 %v670, 0.0
        %v703 = vmax.f32 %v671, 0.0
        %v704 = vmax.f32 %v672, 0.0
        %v705 = vmax.f32 %v673, 0.0
        %v706 = vmax.f32 %v674, 0.0
        %v707 = vmax.f32 %v675, 0.0
        %v708 = vmax.f32 %v676, 0.0
        %v709 = vmax.f32 %v677, 0.0
        %v710 = vmax.f32 %v678, 0.0
        %v711 = vmax.f32 %v679, 0.0
        %v712 = vmax.f32 %v680, 0.0
        %v713 = vmax.f32 %v681, 0.0
        %v714 = vmax.f32 %v682, 0.0
        %v715 = vmax.f32 %v683, 0.0
        %v716 = vmax.f32 %v684, 0.0
        %v717 = vmax.f32 %v685, 0.0
        %v718 = vmax.f32 %v686, 0.0
        %v719 = vmax.f32 %v687, 0.0
        %v720 = vmax.f32 %v688, 0.0
        %721 = vst [vmem:[%s435] sm:$0xff] %v689
        %722 = vst [vmem:[%s435 + $0x8] sm:$0xff] %v690
        %723 = vst [vmem:[%s435 + $0x10] sm:$0xff] %v691
        %724 = vst [vmem:[%s435 + $0x18] sm:$0xff] %v692
        %725 = vst [vmem:[%s435 + $0x20] sm:$0xff] %v693
        %726 = vst [vmem:[%s435 + $0x28] sm:$0xff] %v694
        %727 = vst [vmem:[%s435 + $0x30] sm:$0xff] %v695
        %728 = vst [vmem:[%s435 + $0x38] sm:$0xff] %v696
        %729 = vst [vmem:[%s435 + $0x40] sm:$0xff] %v697
        %730 = vst [vmem:[%s435 + $0x48] sm:$0xff] %v698
        %731 = vst [vmem:[%s435 + $0x50] sm:$0xff] %v699
        %732 = vst [vmem:[%s435 + $0x58] sm:$0xff] %v700
        %733 = vst [vmem:[%s435 + $0x60] sm:$0xff] %v701
        %734 = vst [vmem:[%s435 + $0x68] sm:$0xff] %v702
        %735 = vst [vmem:[%s435 + $0x70] sm:$0xff] %v703
        %736 = vst [vmem:[%s435 + $0x78] sm:$0xff] %v704
        %737 = vst [vmem:[%s435 + $0x80] sm:$0xff] %v705
        %738 = vst [vmem:[%s435 + $0x88] sm:$0xff] %v706
        %739 = vst [vmem:[%s435 + $0x90] sm:$0xff] %v707
        %740 = vst [vmem:[%s435 + $0x98] sm:$0xff] %v708
        %741 = vst [vmem:[%s435 + $0xa0] sm:$0xff] %v709
        %742 = vst [vmem:[%s435 + $0xa8] sm:$0xff] %v710
        %743 = vst [vmem:[%s435 + $0xb0] sm:$0xff] %v711
        %744 = vst [vmem:[%s435 + $0xb8] sm:$0xff] %v712
        %745 = vst [vmem:[%s435 + $0xc0] sm:$0xff] %v713
        %746 = vst [vmem:[%s435 + $0xc8] sm:$0xff] %v714
        %747 = vst [vmem:[%s435 + $0xd0] sm:$0xff] %v715
        %748 = vst [vmem:[%s435 + $0xd8] sm:$0xff] %v716
        %749 = vst [vmem:[%s435 + $0xe0] sm:$0xff] %v717
        %750 = vst [vmem:[%s435 + $0xe8] sm:$0xff] %v718
        %751 = vst [vmem:[%s435 + $0xf0] sm:$0xff] %v719
        %752 = vst [vmem:[%s435 + $0xf8] sm:$0xff] %v720
        %s753 = smul.u32 32, %s17
        %p754 = scmp.lt.s32.totalorder %s753, 127
        %s755 = scalar_select %p754, %s753, 127
        %s756 = smul.addr %s755, 8
        %s757 = scalar_lea.vmem %s6, %s756
        // Predicated region
        $region83: #{resblock3d_forward.7} parent=77 // pred_check
          %p758 = pneg %p171
        $region84: #{resblock3d_forward.7} parent=77 // pred_check_branch
          %760 = sbr.rel (%p758) target = $region86
        $region85: #{resblock3d_forward.7} parent=77 // pred_region
          %s761 = smul.u32 32, %s17
        $region86: #{resblock3d_forward.7} parent=77 // pred_fallthru
          _
      $region78: #{resblock3d_forward.7} parent=5 // pred_fallthru
        _
      %p762 = scmp.le.s32.totalorder 2, %s12
      // Predicated region
      $region87: #{resblock3d_forward.7} parent=5 // pred_check
        %p763 = pneg %p762
      $region88: #{resblock3d_forward.7} parent=5 // pred_check_branch
        %765 = sbr.rel (%p763) target = $region90
      $region89: #{resblock3d_forward.7} parent=5 // pred_region
        %s766 = ssub.s32 %s12, 2
        // Predicated region
        $region91: #{resblock3d_forward.7} parent=89 // pred_check
          %p767 = pneg %p177
        $region92: #{resblock3d_forward.7} parent=89 // pred_check_branch
          %769 = sbr.rel (%p767) target = $region94
        $region93: #{resblock3d_forward.7} parent=89 // pred_region
          %s770 = smul.u32 32, %s18
          %p771 = scmp.lt.s32.totalorder %s770, 127
          %s772 = scalar_select %p771, %s770, 127
          %s773 = smul.addr %s772, 8
          %s774 = scalar_lea.vmem %s6, %s773
        $region94: #{resblock3d_forward.7} parent=89 // pred_fallthru
          _
      $region90: #{resblock3d_forward.7} parent=5 // pred_fallthru
        _
    $region6: #{resblock3d_forward.7} parent=1 // loop_footer
      %s16 = sadd.s32 1, %s12
    $region7: #{resblock3d_forward.7} parent=1 // loop_footer_branch
      %11 = sbr.rel target = $region3
    $region8: #{resblock3d_forward.7} parent=1 // loop_exit
      _

</llo_original>
